<compile_context>
chip_gen: v6e
topology: v6e:2x2x1
jax: 0.10.0
libtpu: 0.0.40
codegen_flags: <defaults>
</compile_context>

<pallas_src>
import functools

import numpy as np
import jax
import jax.numpy as jnp
from jax import lax
from jax.experimental import pallas as pl
from jax.experimental.pallas import tpu as pltpu

D_MODEL = 32
D_FFN = 64
N_HEADS = 4
N_LEVELS = 2
N_POINTS = 4
TEMPORAL_SHAPES = (10, 6)     # per-level temporal lengths; Len_in = Len_q = 16
LN_EPS = 1e-5


# ----------------------------- fused Pallas kernel ---------------------------

def _encoder_layer_kernel(src_ref, pos_ref, ref_ref,
                          lvlsel_ref, tf_ref, base_ref, rowbase_ref,
                          bd_ref, rep_ref, hmask_ref,
                          wv_ref, bv_ref, woa_ref, boa_ref, wo_ref, bo_ref,
                          g1_ref, be1_ref, w1_ref, b1_ref, w2_ref, b2_ref,
                          g2_ref, be2_ref, o_ref, *,
                          n_heads, n_levels, n_points):
    f32 = jnp.float32
    src = src_ref[...]                       # (M, D)   M = b_tile * Len
    pos = pos_ref[...]                       # (M, D)
    refp = ref_ref[...]                      # (M, L_pad)  (zero padded levels)
    hlp = n_heads * n_levels * n_points      # flattened (head, level, point)
    hl = rep_ref.shape[0]                    # b_tile * H * Len (value-stack rows)

    q = src + pos                            # with_pos_embed

    # ---- projections: value, and merged (offset | attention-logit) matmul ----
    value = jnp.dot(src, wv_ref[...], preferred_element_type=f32) + bv_ref[...]
    oa = jnp.dot(q, woa_ref[...], preferred_element_type=f32) + boa_ref[...]
    off = oa[:, :hlp]                        # (M, HLP)
    logits = oa[:, hlp:]                     # (M, HLP)

    # ---- per-head softmax: one row-max/exp pass + block-diag-ones matmul ----
    e = jnp.exp(logits - jnp.max(logits, axis=-1, keepdims=True))
    den = jnp.dot(e, bd_ref[...], preferred_element_type=f32)     # per-group sums
    attn = e * pl.reciprocal(den, approx=False)

    # ---- 1-D grid_sample (align_corners=False, zeros padding) weights ----
    t_f = tf_ref[...]                                             # (1, HLP)
    ref_full = jnp.dot(refp, lvlsel_ref[...], preferred_element_type=f32)
    x = ref_full * t_f + off - 0.5                                # pixel coord
    i0f = jnp.floor(x)
    frac = x - i0f
    valid0 = ((i0f >= 0.0) & (i0f < t_f)).astype(f32)
    valid1 = ((i0f + 1.0 >= 0.0) & (i0f + 1.0 < t_f)).astype(f32)
    # Zero the weights with validity BEFORE scattering so any out-of-range
    # neighbor that aliases another head/level/sequence column contributes 0.
    w0 = attn * (1.0 - frac) * valid0
    w1 = attn * frac * valid1

    # ---- scatter both neighbors with ONE compare; right neighbor via roll ----
    gi = i0f.astype(jnp.int32) + base_ref[...] + rowbase_ref[...]  # (M, HLP)
    gi = jnp.where(gi < 0, hl - 1, gi)     # -1 wraps so the +1 roll hits col 0
    col = lax.broadcasted_iota(jnp.int32, (1, hlp, hl), 2)
    m0 = col == gi[:, :, None]                                     # (M, HLP, HL)
    s0 = jnp.sum(jnp.where(m0, w0[:, :, None], 0.0), axis=1)       # (M, HL)
    s1 = jnp.sum(jnp.where(m0, w1[:, :, None], 0.0), axis=1)       # (M, HL)
    w_cat = s0 + pltpu.roll(s1, shift=1, axis=1)
    # TODO(synk): at realistic Len/Lq this (M, HLP, HL) one-hot must be chunked
    # over the HLP axis (or contracted on the MXU via dot_general), Lq-tiled,
    # and sized per-generation (v7x has only 64 MiB VMEM); the head-masked
    # dense stack should then become a head-batched dot_general.

    # ---- block-diagonal value stack (precomputed replicate + head mask) ----
    v_stack = jnp.dot(rep_ref[...], value, preferred_element_type=f32) * hmask_ref[...]
    attn_out = jnp.dot(w_cat, v_stack, preferred_element_type=f32)        # (M, D)
    src2 = jnp.dot(attn_out, wo_ref[...], preferred_element_type=f32) + bo_ref[...]

    # ---- residual + LayerNorm1 (dropout1 = identity, eval) ----
    s = src + src2
    mu = jnp.mean(s, axis=-1, keepdims=True)
    var = jnp.mean(jnp.square(s - mu), axis=-1, keepdims=True)
    s1n = (s - mu) * lax.rsqrt(var + LN_EPS) * g1_ref[...] + be1_ref[...]

    # ---- FFN (ReLU) + residual + LayerNorm2 (dropout2/3 = identity) ----
    hdn = jnp.maximum(jnp.dot(s1n, w1_ref[...], preferred_element_type=f32)
                      + b1_ref[...], 0.0)
    y = jnp.dot(hdn, w2_ref[...], preferred_element_type=f32) + b2_ref[...]
    s2 = s1n + y
    mu2 = jnp.mean(s2, axis=-1, keepdims=True)
    var2 = jnp.mean(jnp.square(s2 - mu2), axis=-1, keepdims=True)
    o_ref[...] = (s2 - mu2) * lax.rsqrt(var2 + LN_EPS) * g2_ref[...] + be2_ref[...]


def _full_spec(a):
    zeros = (0,) * a.ndim
    return pl.BlockSpec(a.shape, lambda i, z=zeros: z)


def _build_constants(b_tile, len_in, temporal_shapes, level_start, l_pad):
    h, l, p, d = N_HEADS, N_LEVELS, N_POINTS, D_MODEL
    hlp, lp, dh = h * l * p, l * p, d // h
    j = np.arange(hlp)
    lvl_of_col = (j % lp) // p
    head_of_col = j // lp

    t_f = np.asarray(temporal_shapes, np.float32)[lvl_of_col].reshape(1, hlp)
    base = (np.asarray(level_start, np.int64)[lvl_of_col]
            + head_of_col * len_in).astype(np.int32).reshape(1, hlp)
    lvlsel = np.zeros((l_pad, hlp), np.float32)
    lvlsel[lvl_of_col, j] = 1.0
    bd = (head_of_col[:, None] == head_of_col[None, :]).astype(np.float32)

    m = b_tile * len_in
    hl = b_tile * h * len_in
    rowbase = ((np.arange(m) // len_in) * h * len_in).astype(np.int32).reshape(m, 1)

    rows = np.arange(hl)
    b_of = rows // (h * len_in)
    h_of = (rows // len_in) % h
    t_of = rows % len_in
    rep = np.zeros((hl, m), np.float32)
    rep[rows, b_of * len_in + t_of] = 1.0
    hmask = (h_of[:, None] == (np.arange(d) // dh)[None, :]).astype(np.float32)

    return tuple(jnp.asarray(c) for c in
                 (lvlsel, t_f, base, rowbase, bd, rep, hmask))


# ----------------------------- layer forward --------------------------------

def encoder_layer_forward(params, src, pos, reference_points,
                          temporal_shapes, level_start_index,
                          padding_mask=None, b_tile=None):
    # src, pos: (N, Len, D); reference_points: (N, Len, n_levels, 1)
    if padding_mask is not None:
        # TODO(synk): padding_mask path not fused; only mask=None is exercised.
        raise NotImplementedError("padding_mask is not supported in the fused kernel")

    n, len_in, d = src.shape
    if b_tile is None:
        b_tile = n            # whole batch in one step (best on 1-TC v5e/v6e);
                              # pass b_tile = n // 2 on v7x to use both TCs.
    assert n % b_tile == 0
    m_t = b_tile * len_in
    hlp = N_HEADS * N_LEVELS * N_POINTS
    l_pad = max(8, ((N_LEVELS + 7) // 8) * 8)   # pad the level axis for the MXU

    src_f = src.reshape(n * len_in, d)
    pos_f = pos.reshape(n * len_in, d)
    ref_f = reference_points[..., 0].reshape(n * len_in, N_LEVELS)
    ref_pad = jnp.pad(ref_f, ((0, 0), (0, l_pad - N_LEVELS)))

    consts = _build_constants(b_tile, len_in, temporal_shapes,
                              level_start_index, l_pad)

    # merged offset|attention projection weights (single MXU pass in-kernel)
    w_oa = jnp.concatenate([params["w_off"], params["w_attn"]], axis=1)   # (D, 2*HLP)
    b_oa = jnp.concatenate([params["b_off"], params["b_attn"]], axis=0)   # (2*HLP,)

    weights = [
        params["w_value"], params["b_value"].reshape(1, d),
        w_oa, b_oa.reshape(1, 2 * hlp),
        params["w_out"], params["b_out"].reshape(1, d),
        params["g1"].reshape(1, d), params["be1"].reshape(1, d),
        params["w1"], params["b1"].reshape(1, D_FFN),
        params["w2"], params["b2"].reshape(1, d),
        params["g2"].reshape(1, d), params["be2"].reshape(1, d),
    ]

    kernel = functools.partial(
        _encoder_layer_kernel,
        n_heads=N_HEADS, n_levels=N_LEVELS, n_points=N_POINTS)

    in_specs = [
        pl.BlockSpec((m_t, d), lambda i: (i, 0)),          # src (flattened rows)
        pl.BlockSpec((m_t, d), lambda i: (i, 0)),          # pos
        pl.BlockSpec((m_t, l_pad), lambda i: (i, 0)),      # reference points
    ] + [_full_spec(c) for c in consts] + [_full_spec(w) for w in weights]

    out = pl.pallas_call(
        kernel,
        grid=(n // b_tile,),
        in_specs=in_specs,
        out_specs=pl.BlockSpec((m_t, d), lambda i: (i, 0)),
        out_shape=jax.ShapeDtypeStruct((n * len_in, d), jnp.float32),
        compiler_params=pltpu.CompilerParams(
            dimension_semantics=("parallel",)),
    )(src_f, pos_f, ref_pad, *consts, *weights)
    return out.reshape(n, len_in, d)


# -------------------------- pure-JAX reference -------------------------------

def reference_forward(params, src, pos, reference_points,
                      temporal_shapes, level_start_index):
    n, len_in, d = src.shape
    dh = d // N_HEADS

    def lin(x, w, b):
        return x @ w + b

    def ln(x, g, b):
        mu = x.mean(-1, keepdims=True)
        var = ((x - mu) ** 2).mean(-1, keepdims=True)
        return (x - mu) / jnp.sqrt(var + LN_EPS) * g + b

    q = src + pos
    value = lin(src, params["w_value"], params["b_value"]).reshape(n, len_in, N_HEADS, dh)
    off = lin(q, params["w_off"], params["b_off"]).reshape(n, len_in, N_HEADS, N_LEVELS, N_POINTS)
    logits = lin(q, params["w_attn"], params["b_attn"]).reshape(n, len_in, N_HEADS, N_LEVELS * N_POINTS)
    attn = jax.nn.softmax(logits, -1).reshape(n, len_in, N_HEADS, N_LEVELS, N_POINTS)

    out = jnp.zeros((n, len_in, N_HEADS, dh), jnp.float32)
    for l in range(N_LEVELS):
        t_l = int(temporal_shapes[l])
        s0 = int(level_start_index[l])
        v_l = value[:, s0:s0 + t_l]                              # (N, T, H, Dh)
        ref_l = reference_points[:, :, l, 0][:, :, None, None]   # (N, Lq, 1, 1)
        loc = ref_l + off[:, :, :, l, :] / float(t_l)            # (N, Lq, H, P)
        x = loc * float(t_l) - 0.5
        i0 = jnp.floor(x).astype(jnp.int32)
        frac = x - jnp.floor(x)

        def gather(idx):
            valid = ((idx >= 0) & (idx < t_l)).astype(jnp.float32)
            oh = jax.nn.one_hot(jnp.clip(idx, 0, t_l - 1), t_l, dtype=jnp.float32)
            oh = oh * valid[..., None]
            return jnp.einsum('nqhpt,nthd->nqhpd', oh, v_l)

        samp = gather(i0) * (1.0 - frac)[..., None] + gather(i0 + 1) * frac[..., None]
        out = out + jnp.sum(samp * attn[:, :, :, l, :, None], axis=3)

    out = out.reshape(n, len_in, d)
    src2 = lin(out, params["w_out"], params["b_out"])
    s1 = ln(src + src2, params["g1"], params["be1"])
    h = jax.nn.relu(lin(s1, params["w1"], params["b1"]))
    s2 = lin(h, params["w2"], params["b2"])
    return ln(s1 + s2, params["g2"], params["be2"])


# --------------------------------- main --------------------------------------

if __name__ == "__main__":
    key = jax.random.PRNGKey(0)
    keys = jax.random.split(key, 16)
    N = 2
    D = D_MODEL
    LEN_IN = sum(TEMPORAL_SHAPES)
    HLP = N_HEADS * N_LEVELS * N_POINTS

    def rnd(k, shape, scale=0.1):
        return scale * jax.random.normal(k, shape, jnp.float32)

    # deterministic synthetic parameters (PyTorch Linear(out,in) stored transposed as (in,out))
    params = {
        "w_value": rnd(keys[0], (D, D)), "b_value": rnd(keys[1], (D,)),
        "w_off": rnd(keys[2], (D, HLP), 0.5), "b_off": rnd(keys[3], (HLP,), 0.5),
        "w_attn": rnd(keys[4], (D, HLP)), "b_attn": rnd(keys[5], (HLP,)),
        "w_out": rnd(keys[6], (D, D)), "b_out": rnd(keys[7], (D,)),
        "g1": jnp.ones((D,), jnp.float32), "be1": jnp.zeros((D,), jnp.float32),
        "w1": rnd(keys[8], (D, D_FFN)), "b1": rnd(keys[9], (D_FFN,)),
        "w2": rnd(keys[10], (D_FFN, D)), "b2": rnd(keys[11], (D,)),
        "g2": jnp.ones((D,), jnp.float32), "be2": jnp.zeros((D,), jnp.float32),
    }

    src = jax.random.normal(keys[12], (N, LEN_IN, D), jnp.float32)
    pos = jax.random.normal(keys[13], (N, LEN_IN, D), jnp.float32)
    reference_points = jax.random.uniform(keys[14], (N, LEN_IN, N_LEVELS, 1),
                                          jnp.float32)
    level_start_index = []
    acc = 0
    for t in TEMPORAL_SHAPES:
        level_start_index.append(acc)
        acc += t
    level_start_index = tuple(level_start_index)

    out = encoder_layer_forward(params, src, pos, reference_points,
                                TEMPORAL_SHAPES, level_start_index,
                                padding_mask=None)
    out = jax.block_until_ready(out)

    ref = reference_forward(params, src, pos, reference_points,
                            TEMPORAL_SHAPES, level_start_index)
    assert out.shape == (N, LEN_IN, D)
    assert jnp.allclose(out, ref, atol=2e-3, rtol=2e-3), \
        float(jnp.max(jnp.abs(out - ref)))
    print("KERNEL_OK")
</pallas_src>

<mosaic_0001>
module attributes {stable_mosaic.version = 11 : i64} {
  func.func @_encoder_layer_kernel(%arg0: i32, %arg1: memref<32x32xf32, #tpu.memory_space<vmem>>, %arg2: memref<32x32xf32, #tpu.memory_space<vmem>>, %arg3: memref<32x8xf32, #tpu.memory_space<vmem>>, %arg4: memref<8x32xf32, #tpu.memory_space<vmem>>, %arg5: memref<1x32xf32, #tpu.memory_space<vmem>>, %arg6: memref<1x32xi32, #tpu.memory_space<vmem>>, %arg7: memref<32x1xi32, #tpu.memory_space<vmem>>, %arg8: memref<32x32xf32, #tpu.memory_space<vmem>>, %arg9: memref<128x32xf32, #tpu.memory_space<vmem>>, %arg10: memref<128x32xf32, #tpu.memory_space<vmem>>, %arg11: memref<32x32xf32, #tpu.memory_space<vmem>>, %arg12: memref<1x32xf32, #tpu.memory_space<vmem>>, %arg13: memref<32x64xf32, #tpu.memory_space<vmem>>, %arg14: memref<1x64xf32, #tpu.memory_space<vmem>>, %arg15: memref<32x32xf32, #tpu.memory_space<vmem>>, %arg16: memref<1x32xf32, #tpu.memory_space<vmem>>, %arg17: memref<1x32xf32, #tpu.memory_space<vmem>>, %arg18: memref<1x32xf32, #tpu.memory_space<vmem>>, %arg19: memref<32x64xf32, #tpu.memory_space<vmem>>, %arg20: memref<1x64xf32, #tpu.memory_space<vmem>>, %arg21: memref<64x32xf32, #tpu.memory_space<vmem>>, %arg22: memref<1x32xf32, #tpu.memory_space<vmem>>, %arg23: memref<1x32xf32, #tpu.memory_space<vmem>>, %arg24: memref<1x32xf32, #tpu.memory_space<vmem>>, %arg25: memref<32x32xf32, #tpu.memory_space<vmem>>) attributes {dimension_semantics = [#tpu.dimension_semantics<parallel>], iteration_bounds = array<i64: 1>, scalar_prefetch = 0 : i64, scratch_operands = 0 : i64, tpu.core_type = #tpu.core_type<tc>, window_params = [{transform_indices = @transform_0, window_bounds = array<i64: 32, 32>}, {transform_indices = @transform_1, window_bounds = array<i64: 32, 32>}, {transform_indices = @transform_2, window_bounds = array<i64: 32, 8>}, {pipeline_mode = #tpu.pipeline_mode<synchronous>, transform_indices = @transform_3, window_bounds = array<i64: 8, 32>}, {pipeline_mode = #tpu.pipeline_mode<synchronous>, transform_indices = @transform_4, window_bounds = array<i64: 1, 32>}, {pipeline_mode = #tpu.pipeline_mode<synchronous>, transform_indices = @transform_5, window_bounds = array<i64: 1, 32>}, {pipeline_mode = #tpu.pipeline_mode<synchronous>, transform_indices = @transform_6, window_bounds = array<i64: 32, 1>}, {pipeline_mode = #tpu.pipeline_mode<synchronous>, transform_indices = @transform_7, window_bounds = array<i64: 32, 32>}, {pipeline_mode = #tpu.pipeline_mode<synchronous>, transform_indices = @transform_8, window_bounds = array<i64: 128, 32>}, {pipeline_mode = #tpu.pipeline_mode<synchronous>, transform_indices = @transform_9, window_bounds = array<i64: 128, 32>}, {pipeline_mode = #tpu.pipeline_mode<synchronous>, transform_indices = @transform_10, window_bounds = array<i64: 32, 32>}, {pipeline_mode = #tpu.pipeline_mode<synchronous>, transform_indices = @transform_11, window_bounds = array<i64: 1, 32>}, {pipeline_mode = #tpu.pipeline_mode<synchronous>, transform_indices = @transform_12, window_bounds = array<i64: 32, 64>}, {pipeline_mode = #tpu.pipeline_mode<synchronous>, transform_indices = @transform_13, window_bounds = array<i64: 1, 64>}, {pipeline_mode = #tpu.pipeline_mode<synchronous>, transform_indices = @transform_14, window_bounds = array<i64: 32, 32>}, {pipeline_mode = #tpu.pipeline_mode<synchronous>, transform_indices = @transform_15, window_bounds = array<i64: 1, 32>}, {pipeline_mode = #tpu.pipeline_mode<synchronous>, transform_indices = @transform_16, window_bounds = array<i64: 1, 32>}, {pipeline_mode = #tpu.pipeline_mode<synchronous>, transform_indices = @transform_17, window_bounds = array<i64: 1, 32>}, {pipeline_mode = #tpu.pipeline_mode<synchronous>, transform_indices = @transform_18, window_bounds = array<i64: 32, 64>}, {pipeline_mode = #tpu.pipeline_mode<synchronous>, transform_indices = @transform_19, window_bounds = array<i64: 1, 64>}, {pipeline_mode = #tpu.pipeline_mode<synchronous>, transform_indices = @transform_20, window_bounds = array<i64: 64, 32>}, {pipeline_mode = #tpu.pipeline_mode<synchronous>, transform_indices = @transform_21, window_bounds = array<i64: 1, 32>}, {pipeline_mode = #tpu.pipeline_mode<synchronous>, transform_indices = @transform_22, window_bounds = array<i64: 1, 32>}, {pipeline_mode = #tpu.pipeline_mode<synchronous>, transform_indices = @transform_23, window_bounds = array<i64: 1, 32>}, {transform_indices = @transform_24, window_bounds = array<i64: 32, 32>}]} {
    %c0 = arith.constant 0 : index
    %c0_0 = arith.constant 0 : index
    %0 = vector.load %arg1[%c0, %c0_0] : memref<32x32xf32, #tpu.memory_space<vmem>>, vector<32x32xf32>
    %c0_1 = arith.constant 0 : index
    %c0_2 = arith.constant 0 : index
    %1 = vector.load %arg2[%c0_1, %c0_2] : memref<32x32xf32, #tpu.memory_space<vmem>>, vector<32x32xf32>
    %c0_3 = arith.constant 0 : index
    %c0_4 = arith.constant 0 : index
    %2 = vector.load %arg3[%c0_3, %c0_4] : memref<32x8xf32, #tpu.memory_space<vmem>>, vector<32x8xf32>
    %3 = arith.addf %0, %1 : vector<32x32xf32>
    %c0_5 = arith.constant 0 : index
    %c0_6 = arith.constant 0 : index
    %4 = vector.load %arg11[%c0_5, %c0_6] : memref<32x32xf32, #tpu.memory_space<vmem>>, vector<32x32xf32>
    %cst = arith.constant dense<0.000000e+00> : vector<32x32xf32>
    %5 = tpu.matmul %0, %4, %cst {dimension_numbers = #tpu.dot_dimension_numbers<[1], [0], [0], [1], [0, 0, 1, 1], [], []>} : vector<32x32xf32>, vector<32x32xf32>, vector<32x32xf32> -> vector<32x32xf32>
    %c0_7 = arith.constant 0 : index
    %c0_8 = arith.constant 0 : index
    %6 = vector.load %arg12[%c0_7, %c0_8] : memref<1x32xf32, #tpu.memory_space<vmem>>, vector<1x32xf32>
    %7 = vector.broadcast %6 : vector<1x32xf32> to vector<32x32xf32>
    %8 = arith.addf %5, %7 : vector<32x32xf32>
    %c0_9 = arith.constant 0 : index
    %c0_10 = arith.constant 0 : index
    %9 = vector.load %arg13[%c0_9, %c0_10] : memref<32x64xf32, #tpu.memory_space<vmem>>, vector<32x64xf32>
    %cst_11 = arith.constant dense<0.000000e+00> : vector<32x64xf32>
    %10 = tpu.matmul %3, %9, %cst_11 {dimension_numbers = #tpu.dot_dimension_numbers<[1], [0], [0], [1], [0, 0, 1, 1], [], []>} : vector<32x32xf32>, vector<32x64xf32>, vector<32x64xf32> -> vector<32x64xf32>
    %c0_12 = arith.constant 0 : index
    %c0_13 = arith.constant 0 : index
    %11 = vector.load %arg14[%c0_12, %c0_13] : memref<1x64xf32, #tpu.memory_space<vmem>>, vector<1x64xf32>
    %12 = vector.broadcast %11 : vector<1x64xf32> to vector<32x64xf32>
    %13 = arith.addf %10, %12 : vector<32x64xf32>
    %14 = vector.extract_strided_slice %13 {offsets = [0, 0], sizes = [32, 32], strides = [1, 1]} : vector<32x64xf32> to vector<32x32xf32>
    %15 = vector.extract_strided_slice %13 {offsets = [0, 32], sizes = [32, 32], strides = [1, 1]} : vector<32x64xf32> to vector<32x32xf32>
    %cst_14 = arith.constant dense<0xFF800000> : vector<32xf32>
    %16 = vector.multi_reduction <maximumf>, %15, %cst_14 [1] : vector<32x32xf32> to vector<32xf32>
    %17 = vector.shape_cast %16 : vector<32xf32> to vector<32x1xf32>
    %18 = vector.broadcast %17 : vector<32x1xf32> to vector<32x32xf32>
    %19 = arith.subf %15, %18 : vector<32x32xf32>
    %20 = math.exp %19 : vector<32x32xf32>
    %c0_15 = arith.constant 0 : index
    %c0_16 = arith.constant 0 : index
    %21 = vector.load %arg8[%c0_15, %c0_16] : memref<32x32xf32, #tpu.memory_space<vmem>>, vector<32x32xf32>
    %cst_17 = arith.constant dense<0.000000e+00> : vector<32x32xf32>
    %22 = tpu.matmul %20, %21, %cst_17 {dimension_numbers = #tpu.dot_dimension_numbers<[1], [0], [0], [1], [0, 0, 1, 1], [], []>} : vector<32x32xf32>, vector<32x32xf32>, vector<32x32xf32> -> vector<32x32xf32>
    %23 = tpu.reciprocal %22 : vector<32x32xf32> -> vector<32x32xf32>
    %24 = arith.mulf %20, %23 : vector<32x32xf32>
    %c0_18 = arith.constant 0 : index
    %c0_19 = arith.constant 0 : index
    %25 = vector.load %arg5[%c0_18, %c0_19] : memref<1x32xf32, #tpu.memory_space<vmem>>, vector<1x32xf32>
    %c0_20 = arith.constant 0 : index
    %c0_21 = arith.constant 0 : index
    %26 = vector.load %arg4[%c0_20, %c0_21] : memref<8x32xf32, #tpu.memory_space<vmem>>, vector<8x32xf32>
    %cst_22 = arith.constant dense<0.000000e+00> : vector<32x32xf32>
    %27 = tpu.matmul %2, %26, %cst_22 {dimension_numbers = #tpu.dot_dimension_numbers<[1], [0], [0], [1], [0, 0, 1, 1], [], []>} : vector<32x8xf32>, vector<8x32xf32>, vector<32x32xf32> -> vector<32x32xf32>
    %28 = vector.broadcast %25 : vector<1x32xf32> to vector<32x32xf32>
    %29 = arith.mulf %27, %28 : vector<32x32xf32>
    %30 = arith.addf %29, %14 : vector<32x32xf32>
    %cst_23 = arith.constant 5.000000e-01 : f32
    %31 = vector.broadcast %cst_23 : f32 to vector<32x32xf32>
    %32 = arith.subf %30, %31 : vector<32x32xf32>
    %33 = math.floor %32 : vector<32x32xf32>
    %34 = arith.subf %32, %33 : vector<32x32xf32>
    %cst_24 = arith.constant 0.000000e+00 : f32
    %35 = vector.broadcast %cst_24 : f32 to vector<32x32xf32>
    %36 = arith.cmpf oge, %33, %35 : vector<32x32xf32>
    %37 = vector.broadcast %25 : vector<1x32xf32> to vector<32x32xf32>
    %38 = arith.cmpf olt, %33, %37 : vector<32x32xf32>
    %39 = arith.andi %36, %38 : vector<32x32xi1>
    %40 = arith.extui %39 : vector<32x32xi1> to vector<32x32xi32>
    %41 = arith.sitofp %40 : vector<32x32xi32> to vector<32x32xf32>
    %cst_25 = arith.constant 1.000000e+00 : f32
    %42 = vector.broadcast %cst_25 : f32 to vector<32x32xf32>
    %43 = arith.addf %33, %42 : vector<32x32xf32>
    %cst_26 = arith.constant 0.000000e+00 : f32
    %44 = vector.broadcast %cst_26 : f32 to vector<32x32xf32>
    %45 = arith.cmpf oge, %43, %44 : vector<32x32xf32>
    %cst_27 = arith.constant 1.000000e+00 : f32
    %46 = vector.broadcast %cst_27 : f32 to vector<32x32xf32>
    %47 = arith.addf %33, %46 : vector<32x32xf32>
    %48 = vector.broadcast %25 : vector<1x32xf32> to vector<32x32xf32>
    %49 = arith.cmpf olt, %47, %48 : vector<32x32xf32>
    %50 = arith.andi %45, %49 : vector<32x32xi1>
    %51 = arith.extui %50 : vector<32x32xi1> to vector<32x32xi32>
    %52 = arith.sitofp %51 : vector<32x32xi32> to vector<32x32xf32>
    %cst_28 = arith.constant 1.000000e+00 : f32
    %53 = vector.broadcast %cst_28 : f32 to vector<32x32xf32>
    %54 = arith.subf %53, %34 : vector<32x32xf32>
    %55 = arith.mulf %24, %54 : vector<32x32xf32>
    %56 = arith.mulf %55, %41 : vector<32x32xf32>
    %57 = arith.mulf %24, %34 : vector<32x32xf32>
    %58 = arith.mulf %57, %52 : vector<32x32xf32>
    %59 = arith.fptosi %33 : vector<32x32xf32> to vector<32x32xi32>
    %c0_29 = arith.constant 0 : index
    %c0_30 = arith.constant 0 : index
    %60 = vector.load %arg6[%c0_29, %c0_30] : memref<1x32xi32, #tpu.memory_space<vmem>>, vector<1x32xi32>
    %61 = vector.broadcast %60 : vector<1x32xi32> to vector<32x32xi32>
    %62 = arith.addi %59, %61 : vector<32x32xi32>
    %c0_31 = arith.constant 0 : index
    %c0_32 = arith.constant 0 : index
    %63 = vector.load %arg7[%c0_31, %c0_32] : memref<32x1xi32, #tpu.memory_space<vmem>>, vector<32x1xi32>
    %64 = vector.broadcast %63 : vector<32x1xi32> to vector<32x32xi32>
    %65 = arith.addi %62, %64 : vector<32x32xi32>
    %c0_i32 = arith.constant 0 : i32
    %66 = vector.broadcast %c0_i32 : i32 to vector<32x32xi32>
    %67 = arith.cmpi slt, %65, %66 : vector<32x32xi32>
    %c127_i32 = arith.constant 127 : i32
    %68 = vector.broadcast %c127_i32 : i32 to vector<32x32xi32>
    %69 = arith.select %67, %68, %65 : vector<32x32xi1>, vector<32x32xi32>
    %70 = tpu.iota {dimensions = array<i32: 2>} : vector<1x32x128xi32>
    %71 = vector.shape_cast %69 : vector<32x32xi32> to vector<32x32x1xi32>
    %72 = vector.broadcast %70 : vector<1x32x128xi32> to vector<32x32x128xi32>
    %73 = vector.broadcast %71 : vector<32x32x1xi32> to vector<32x32x128xi32>
    %74 = arith.cmpi eq, %72, %73 : vector<32x32x128xi32>
    %75 = vector.shape_cast %56 : vector<32x32xf32> to vector<32x32x1xf32>
    %cst_33 = arith.constant 0.000000e+00 : f32
    %76 = vector.shape_cast %75 : vector<32x32x1xf32> to vector<32x32x1xf32>
    %77 = vector.broadcast %76 : vector<32x32x1xf32> to vector<32x32x128xf32>
    %78 = vector.broadcast %cst_33 : f32 to vector<32x32x128xf32>
    %79 = arith.select %74, %77, %78 : vector<32x32x128xi1>, vector<32x32x128xf32>
    %cst_34 = arith.constant dense<0.000000e+00> : vector<32x128xf32>
    %80 = vector.multi_reduction <add>, %79, %cst_34 [1] : vector<32x32x128xf32> to vector<32x128xf32>
    %81 = vector.shape_cast %58 : vector<32x32xf32> to vector<32x32x1xf32>
    %cst_35 = arith.constant 0.000000e+00 : f32
    %82 = vector.shape_cast %81 : vector<32x32x1xf32> to vector<32x32x1xf32>
    %83 = vector.broadcast %82 : vector<32x32x1xf32> to vector<32x32x128xf32>
    %84 = vector.broadcast %cst_35 : f32 to vector<32x32x128xf32>
    %85 = arith.select %74, %83, %84 : vector<32x32x128xi1>, vector<32x32x128xf32>
    %cst_36 = arith.constant dense<0.000000e+00> : vector<32x128xf32>
    %86 = vector.multi_reduction <add>, %85, %cst_36 [1] : vector<32x32x128xf32> to vector<32x128xf32>
    %c1_i32 = arith.constant 1 : i32
    %87 = tpu.dynamic_rotate %86 by %c1_i32 dim 1 : vector<32x128xf32>, i32 -> vector<32x128xf32>
    %88 = arith.addf %80, %87 : vector<32x128xf32>
    %c0_37 = arith.constant 0 : index
    %c0_38 = arith.constant 0 : index
    %89 = vector.load %arg9[%c0_37, %c0_38] : memref<128x32xf32, #tpu.memory_space<vmem>>, vector<128x32xf32>
    %cst_39 = arith.constant dense<0.000000e+00> : vector<128x32xf32>
    %90 = tpu.matmul %89, %8, %cst_39 {dimension_numbers = #tpu.dot_dimension_numbers<[1], [0], [0], [1], [0, 0, 1, 1], [], []>} : vector<128x32xf32>, vector<32x32xf32>, vector<128x32xf32> -> vector<128x32xf32>
    %c0_40 = arith.constant 0 : index
    %c0_41 = arith.constant 0 : index
    %91 = vector.load %arg10[%c0_40, %c0_41] : memref<128x32xf32, #tpu.memory_space<vmem>>, vector<128x32xf32>
    %92 = arith.mulf %90, %91 : vector<128x32xf32>
    %cst_42 = arith.constant dense<0.000000e+00> : vector<32x32xf32>
    %93 = tpu.matmul %88, %92, %cst_42 {dimension_numbers = #tpu.dot_dimension_numbers<[1], [0], [0], [1], [0, 0, 1, 1], [], []>} : vector<32x128xf32>, vector<128x32xf32>, vector<32x32xf32> -> vector<32x32xf32>
    %c0_43 = arith.constant 0 : index
    %c0_44 = arith.constant 0 : index
    %94 = vector.load %arg15[%c0_43, %c0_44] : memref<32x32xf32, #tpu.memory_space<vmem>>, vector<32x32xf32>
    %cst_45 = arith.constant dense<0.000000e+00> : vector<32x32xf32>
    %95 = tpu.matmul %93, %94, %cst_45 {dimension_numbers = #tpu.dot_dimension_numbers<[1], [0], [0], [1], [0, 0, 1, 1], [], []>} : vector<32x32xf32>, vector<32x32xf32>, vector<32x32xf32> -> vector<32x32xf32>
    %c0_46 = arith.constant 0 : index
    %c0_47 = arith.constant 0 : index
    %96 = vector.load %arg16[%c0_46, %c0_47] : memref<1x32xf32, #tpu.memory_space<vmem>>, vector<1x32xf32>
    %97 = vector.broadcast %96 : vector<1x32xf32> to vector<32x32xf32>
    %98 = arith.addf %95, %97 : vector<32x32xf32>
    %99 = arith.addf %0, %98 : vector<32x32xf32>
    %cst_48 = arith.constant dense<0.000000e+00> : vector<32xf32>
    %100 = vector.multi_reduction <add>, %99, %cst_48 [1] : vector<32x32xf32> to vector<32xf32>
    %101 = vector.shape_cast %100 : vector<32xf32> to vector<32x1xf32>
    %cst_49 = arith.constant 3.200000e+01 : f32
    %102 = vector.broadcast %cst_49 : f32 to vector<32x1xf32>
    %103 = arith.divf %101, %102 : vector<32x1xf32>
    %104 = vector.broadcast %103 : vector<32x1xf32> to vector<32x32xf32>
    %105 = arith.subf %99, %104 : vector<32x32xf32>
    %106 = arith.mulf %105, %105 : vector<32x32xf32>
    %cst_50 = arith.constant dense<0.000000e+00> : vector<32xf32>
    %107 = vector.multi_reduction <add>, %106, %cst_50 [1] : vector<32x32xf32> to vector<32xf32>
    %108 = vector.shape_cast %107 : vector<32xf32> to vector<32x1xf32>
    %cst_51 = arith.constant 3.200000e+01 : f32
    %109 = vector.broadcast %cst_51 : f32 to vector<32x1xf32>
    %110 = arith.divf %108, %109 : vector<32x1xf32>
    %111 = vector.broadcast %103 : vector<32x1xf32> to vector<32x32xf32>
    %112 = arith.subf %99, %111 : vector<32x32xf32>
    %cst_52 = arith.constant 9.99999974E-6 : f32
    %113 = vector.broadcast %cst_52 : f32 to vector<32x1xf32>
    %114 = arith.addf %110, %113 : vector<32x1xf32>
    %115 = math.rsqrt %114 : vector<32x1xf32>
    %116 = vector.broadcast %115 : vector<32x1xf32> to vector<32x32xf32>
    %117 = arith.mulf %112, %116 : vector<32x32xf32>
    %c0_53 = arith.constant 0 : index
    %c0_54 = arith.constant 0 : index
    %118 = vector.load %arg17[%c0_53, %c0_54] : memref<1x32xf32, #tpu.memory_space<vmem>>, vector<1x32xf32>
    %119 = vector.broadcast %118 : vector<1x32xf32> to vector<32x32xf32>
    %120 = arith.mulf %117, %119 : vector<32x32xf32>
    %c0_55 = arith.constant 0 : index
    %c0_56 = arith.constant 0 : index
    %121 = vector.load %arg18[%c0_55, %c0_56] : memref<1x32xf32, #tpu.memory_space<vmem>>, vector<1x32xf32>
    %122 = vector.broadcast %121 : vector<1x32xf32> to vector<32x32xf32>
    %123 = arith.addf %120, %122 : vector<32x32xf32>
    %c0_57 = arith.constant 0 : index
    %c0_58 = arith.constant 0 : index
    %124 = vector.load %arg19[%c0_57, %c0_58] : memref<32x64xf32, #tpu.memory_space<vmem>>, vector<32x64xf32>
    %cst_59 = arith.constant dense<0.000000e+00> : vector<32x64xf32>
    %125 = tpu.matmul %123, %124, %cst_59 {dimension_numbers = #tpu.dot_dimension_numbers<[1], [0], [0], [1], [0, 0, 1, 1], [], []>} : vector<32x32xf32>, vector<32x64xf32>, vector<32x64xf32> -> vector<32x64xf32>
    %c0_60 = arith.constant 0 : index
    %c0_61 = arith.constant 0 : index
    %126 = vector.load %arg20[%c0_60, %c0_61] : memref<1x64xf32, #tpu.memory_space<vmem>>, vector<1x64xf32>
    %127 = vector.broadcast %126 : vector<1x64xf32> to vector<32x64xf32>
    %128 = arith.addf %125, %127 : vector<32x64xf32>
    %cst_62 = arith.constant 0.000000e+00 : f32
    %129 = vector.broadcast %cst_62 : f32 to vector<32x64xf32>
    %130 = arith.maximumf %128, %129 : vector<32x64xf32>
    %c0_63 = arith.constant 0 : index
    %c0_64 = arith.constant 0 : index
    %131 = vector.load %arg21[%c0_63, %c0_64] : memref<64x32xf32, #tpu.memory_space<vmem>>, vector<64x32xf32>
    %cst_65 = arith.constant dense<0.000000e+00> : vector<32x32xf32>
    %132 = tpu.matmul %130, %131, %cst_65 {dimension_numbers = #tpu.dot_dimension_numbers<[1], [0], [0], [1], [0, 0, 1, 1], [], []>} : vector<32x64xf32>, vector<64x32xf32>, vector<32x32xf32> -> vector<32x32xf32>
    %c0_66 = arith.constant 0 : index
    %c0_67 = arith.constant 0 : index
    %133 = vector.load %arg22[%c0_66, %c0_67] : memref<1x32xf32, #tpu.memory_space<vmem>>, vector<1x32xf32>
    %134 = vector.broadcast %133 : vector<1x32xf32> to vector<32x32xf32>
    %135 = arith.addf %132, %134 : vector<32x32xf32>
    %136 = arith.addf %123, %135 : vector<32x32xf32>
    %cst_68 = arith.constant dense<0.000000e+00> : vector<32xf32>
    %137 = vector.multi_reduction <add>, %136, %cst_68 [1] : vector<32x32xf32> to vector<32xf32>
    %138 = vector.shape_cast %137 : vector<32xf32> to vector<32x1xf32>
    %cst_69 = arith.constant 3.200000e+01 : f32
    %139 = vector.broadcast %cst_69 : f32 to vector<32x1xf32>
    %140 = arith.divf %138, %139 : vector<32x1xf32>
    %141 = vector.broadcast %140 : vector<32x1xf32> to vector<32x32xf32>
    %142 = arith.subf %136, %141 : vector<32x32xf32>
    %143 = arith.mulf %142, %142 : vector<32x32xf32>
    %cst_70 = arith.constant dense<0.000000e+00> : vector<32xf32>
    %144 = vector.multi_reduction <add>, %143, %cst_70 [1] : vector<32x32xf32> to vector<32xf32>
    %145 = vector.shape_cast %144 : vector<32xf32> to vector<32x1xf32>
    %cst_71 = arith.constant 3.200000e+01 : f32
    %146 = vector.broadcast %cst_71 : f32 to vector<32x1xf32>
    %147 = arith.divf %145, %146 : vector<32x1xf32>
    %148 = vector.broadcast %140 : vector<32x1xf32> to vector<32x32xf32>
    %149 = arith.subf %136, %148 : vector<32x32xf32>
    %cst_72 = arith.constant 9.99999974E-6 : f32
    %150 = vector.broadcast %cst_72 : f32 to vector<32x1xf32>
    %151 = arith.addf %147, %150 : vector<32x1xf32>
    %152 = math.rsqrt %151 : vector<32x1xf32>
    %153 = vector.broadcast %152 : vector<32x1xf32> to vector<32x32xf32>
    %154 = arith.mulf %149, %153 : vector<32x32xf32>
    %c0_73 = arith.constant 0 : index
    %c0_74 = arith.constant 0 : index
    %155 = vector.load %arg23[%c0_73, %c0_74] : memref<1x32xf32, #tpu.memory_space<vmem>>, vector<1x32xf32>
    %156 = vector.broadcast %155 : vector<1x32xf32> to vector<32x32xf32>
    %157 = arith.mulf %154, %156 : vector<32x32xf32>
    %c0_75 = arith.constant 0 : index
    %c0_76 = arith.constant 0 : index
    %158 = vector.load %arg24[%c0_75, %c0_76] : memref<1x32xf32, #tpu.memory_space<vmem>>, vector<1x32xf32>
    %159 = vector.broadcast %158 : vector<1x32xf32> to vector<32x32xf32>
    %160 = arith.addf %157, %159 : vector<32x32xf32>
    %c0_77 = arith.constant 0 : index
    %c0_78 = arith.constant 0 : index
    %161 = vector.load %arg25[%c0_77, %c0_78] : memref<32x32xf32, #tpu.memory_space<vmem>>, vector<32x32xf32>
    tpu.vector_store %arg25[%c0_77, %c0_78], %160 {strides = array<i32>} : memref<32x32xf32, #tpu.memory_space<vmem>>, vector<32x32xf32>,
    return
  }
  func.func @transform_0(%arg0: i32) -> (i32, i32) {
    %c0_i32 = arith.constant 0 : i32
    %c0_i32_0 = arith.constant 0 : i32
    return %arg0, %c0_i32 : i32, i32
  }
  func.func @transform_1(%arg0: i32) -> (i32, i32) {
    %c0_i32 = arith.constant 0 : i32
    %c0_i32_0 = arith.constant 0 : i32
    return %arg0, %c0_i32 : i32, i32
  }
  func.func @transform_2(%arg0: i32) -> (i32, i32) {
    %c0_i32 = arith.constant 0 : i32
    %c0_i32_0 = arith.constant 0 : i32
    return %arg0, %c0_i32 : i32, i32
  }
  func.func @transform_3(%arg0: i32) -> (i32, i32) {
    %c0_i32 = arith.constant 0 : i32
    %c0_i32_0 = arith.constant 0 : i32
    %c0_i32_1 = arith.constant 0 : i32
    return %c0_i32, %c0_i32_0 : i32, i32
  }
  func.func @transform_4(%arg0: i32) -> (i32, i32) {
    %c0_i32 = arith.constant 0 : i32
    %c0_i32_0 = arith.constant 0 : i32
    %c0_i32_1 = arith.constant 0 : i32
    return %c0_i32, %c0_i32_0 : i32, i32
  }
  func.func @transform_5(%arg0: i32) -> (i32, i32) {
    %c0_i32 = arith.constant 0 : i32
    %c0_i32_0 = arith.constant 0 : i32
    %c0_i32_1 = arith.constant 0 : i32
    return %c0_i32, %c0_i32_0 : i32, i32
  }
  func.func @transform_6(%arg0: i32) -> (i32, i32) {
    %c0_i32 = arith.constant 0 : i32
    %c0_i32_0 = arith.constant 0 : i32
    %c0_i32_1 = arith.constant 0 : i32
    return %c0_i32, %c0_i32_0 : i32, i32
  }
  func.func @transform_7(%arg0: i32) -> (i32, i32) {
    %c0_i32 = arith.constant 0 : i32
    %c0_i32_0 = arith.constant 0 : i32
    %c0_i32_1 = arith.constant 0 : i32
    return %c0_i32, %c0_i32_0 : i32, i32
  }
  func.func @transform_8(%arg0: i32) -> (i32, i32) {
    %c0_i32 = arith.constant 0 : i32
    %c0_i32_0 = arith.constant 0 : i32
    %c0_i32_1 = arith.constant 0 : i32
    return %c0_i32, %c0_i32_0 : i32, i32
  }
  func.func @transform_9(%arg0: i32) -> (i32, i32) {
    %c0_i32 = arith.constant 0 : i32
    %c0_i32_0 = arith.constant 0 : i32
    %c0_i32_1 = arith.constant 0 : i32
    return %c0_i32, %c0_i32_0 : i32, i32
  }
  func.func @transform_10(%arg0: i32) -> (i32, i32) {
    %c0_i32 = arith.constant 0 : i32
    %c0_i32_0 = arith.constant 0 : i32
    %c0_i32_1 = arith.constant 0 : i32
    return %c0_i32, %c0_i32_0 : i32, i32
  }
  func.func @transform_11(%arg0: i32) -> (i32, i32) {
    %c0_i32 = arith.constant 0 : i32
    %c0_i32_0 = arith.constant 0 : i32
    %c0_i32_1 = arith.constant 0 : i32
    return %c0_i32, %c0_i32_0 : i32, i32
  }
  func.func @transform_12(%arg0: i32) -> (i32, i32) {
    %c0_i32 = arith.constant 0 : i32
    %c0_i32_0 = arith.constant 0 : i32
    %c0_i32_1 = arith.constant 0 : i32
    return %c0_i32, %c0_i32_0 : i32, i32
  }
  func.func @transform_13(%arg0: i32) -> (i32, i32) {
    %c0_i32 = arith.constant 0 : i32
    %c0_i32_0 = arith.constant 0 : i32
    %c0_i32_1 = arith.constant 0 : i32
    return %c0_i32, %c0_i32_0 : i32, i32
  }
  func.func @transform_14(%arg0: i32) -> (i32, i32) {
    %c0_i32 = arith.constant 0 : i32
    %c0_i32_0 = arith.constant 0 : i32
    %c0_i32_1 = arith.constant 0 : i32
    return %c0_i32, %c0_i32_0 : i32, i32
  }
  func.func @transform_15(%arg0: i32) -> (i32, i32) {
    %c0_i32 = arith.constant 0 : i32
    %c0_i32_0 = arith.constant 0 : i32
    %c0_i32_1 = arith.constant 0 : i32
    return %c0_i32, %c0_i32_0 : i32, i32
  }
  func.func @transform_16(%arg0: i32) -> (i32, i32) {
    %c0_i32 = arith.constant 0 : i32
    %c0_i32_0 = arith.constant 0 : i32
    %c0_i32_1 = arith.constant 0 : i32
    return %c0_i32, %c0_i32_0 : i32, i32
  }
  func.func @transform_17(%arg0: i32) -> (i32, i32) {
    %c0_i32 = arith.constant 0 : i32
    %c0_i32_0 = arith.constant 0 : i32
    %c0_i32_1 = arith.constant 0 : i32
    return %c0_i32, %c0_i32_0 : i32, i32
  }
  func.func @transform_18(%arg0: i32) -> (i32, i32) {
    %c0_i32 = arith.constant 0 : i32
    %c0_i32_0 = arith.constant 0 : i32
    %c0_i32_1 = arith.constant 0 : i32
    return %c0_i32, %c0_i32_0 : i32, i32
  }
  func.func @transform_19(%arg0: i32) -> (i32, i32) {
    %c0_i32 = arith.constant 0 : i32
    %c0_i32_0 = arith.constant 0 : i32
    %c0_i32_1 = arith.constant 0 : i32
    return %c0_i32, %c0_i32_0 : i32, i32
  }
  func.func @transform_20(%arg0: i32) -> (i32, i32) {
    %c0_i32 = arith.constant 0 : i32
    %c0_i32_0 = arith.constant 0 : i32
    %c0_i32_1 = arith.constant 0 : i32
    return %c0_i32, %c0_i32_0 : i32, i32
  }
  func.func @transform_21(%arg0: i32) -> (i32, i32) {
    %c0_i32 = arith.constant 0 : i32
    %c0_i32_0 = arith.constant 0 : i32
    %c0_i32_1 = arith.constant 0 : i32
    return %c0_i32, %c0_i32_0 : i32, i32
  }
  func.func @transform_22(%arg0: i32) -> (i32, i32) {
    %c0_i32 = arith.constant 0 : i32
    %c0_i32_0 = arith.constant 0 : i32
    %c0_i32_1 = arith.constant 0 : i32
    return %c0_i32, %c0_i32_0 : i32, i32
  }
  func.func @transform_23(%arg0: i32) -> (i32, i32) {
    %c0_i32 = arith.constant 0 : i32
    %c0_i32_0 = arith.constant 0 : i32
    %c0_i32_1 = arith.constant 0 : i32
    return %c0_i32, %c0_i32_0 : i32, i32
  }
  func.func @transform_24(%arg0: i32) -> (i32, i32) {
    %c0_i32 = arith.constant 0 : i32
    %c0_i32_0 = arith.constant 0 : i32
    return %arg0, %c0_i32 : i32, i32
  }
}

</mosaic_0001>

<llo_original>
// kernel: tpu_custom_call.1
$region0: #{tpu_custom_call.1}
  #allocation0 [shape = 'u32[]', space=smem, size = 0x4, offset = 0x4, fixed_abs, tag = 'smem constant byte address 0x4 - core index']
  #allocation1 [shape = 'u32[144,128]{1,0:T(1,128)}', space=vmem, size = 0x12000, scoped, tag = 'internal scratch']
  %s0 = inlined_call_operand.vmem [shape: f32[32,32], index: 0, kind: input, shape index: {}]
  %s1 = inlined_call_operand.vmem [shape: f32[32,32], index: 1, kind: input, shape index: {}]
  %s2 = inlined_call_operand.vmem [shape: f32[32,8], index: 2, kind: input, shape index: {}]
  %s3 = inlined_call_operand.vmem [shape: f32[8,32], index: 3, kind: input, shape index: {}]
  %s4 = inlined_call_operand.vmem [shape: f32[1,32], index: 4, kind: input, shape index: {}]
  %s5 = inlined_call_operand.vmem [shape: s32[1,32], index: 5, kind: input, shape index: {}]
  %s6 = inlined_call_operand.vmem [shape: s32[32,1], index: 6, kind: input, shape index: {}]
  %s7 = inlined_call_operand.vmem [shape: f32[32,32], index: 7, kind: input, shape index: {}]
  %s8 = inlined_call_operand.vmem [shape: f32[128,32], index: 8, kind: input, shape index: {}]
  %s9 = inlined_call_operand.vmem [shape: f32[128,32], index: 9, kind: input, shape index: {}]
  %s10 = inlined_call_operand.vmem [shape: f32[32,32], index: 10, kind: input, shape index: {}]
  %s11 = inlined_call_operand.vmem [shape: f32[1,32], index: 11, kind: input, shape index: {}]
  %s12 = inlined_call_operand.vmem [shape: f32[32,64], index: 12, kind: input, shape index: {}]
  %s13 = inlined_call_operand.vmem [shape: f32[1,64], index: 13, kind: input, shape index: {}]
  %s14 = inlined_call_operand.vmem [shape: f32[32,32], index: 14, kind: input, shape index: {}]
  %s15 = inlined_call_operand.vmem [shape: f32[1,32], index: 15, kind: input, shape index: {}]
  %s16 = inlined_call_operand.vmem [shape: f32[1,32], index: 16, kind: input, shape index: {}]
  %s17 = inlined_call_operand.vmem [shape: f32[1,32], index: 17, kind: input, shape index: {}]
  %s18 = inlined_call_operand.vmem [shape: f32[32,64], index: 18, kind: input, shape index: {}]
  %s19 = inlined_call_operand.vmem [shape: f32[1,64], index: 19, kind: input, shape index: {}]
  %s20 = inlined_call_operand.vmem [shape: f32[64,32], index: 20, kind: input, shape index: {}]
  %s21 = inlined_call_operand.vmem [shape: f32[1,32], index: 21, kind: input, shape index: {}]
  %s22 = inlined_call_operand.vmem [shape: f32[1,32], index: 22, kind: input, shape index: {}]
  %s23 = inlined_call_operand.vmem [shape: f32[1,32], index: 23, kind: input, shape index: {}]
  %s24 = inlined_call_operand.hbm [shape: f32[32,32], index: 24, kind: output, shape index: {}]
  %s25 = sld [smem:[#allocation0]]
  $region106: #{tpu_custom_call.1} parent=0
    _
  %s27 = ssub.s32 1, %s25
  %s28 = scalar_select 0, %s27, %s25
  $region1: #{tpu_custom_call.1} parent=0
    #allocation2 [shape = 'u8[16384]{0}', space=vmem, size = 0x4000, scoped, tag = 'output window, operand 0, single buffered']
    #allocation3 [shape = 's32[1]{0}', space=sflag, size = 0x4, scoped, tag = 'scoped memory for tpu_custom_call.1']
    %29 = vsyncpa [#allocation3], 0
    // Predicated region
    $region2: #{tpu_custom_call.1} parent=1 // pred_check
      _
    $region3: #{tpu_custom_call.1} parent=1 // pred_check_branch
      %31 = sbr.rel (0) target = $region5
    $region4: #{tpu_custom_call.1} parent=1 // pred_region
      _
    $region5: #{tpu_custom_call.1} parent=1 // pred_fallthru
      _
    // Predicated region
    $region6: #{tpu_custom_call.1} parent=1 // pred_check
      _
    $region7: #{tpu_custom_call.1} parent=1 // pred_check_branch
      %33 = sbr.rel (0) target = $region9
    $region8: #{tpu_custom_call.1} parent=1 // pred_region
      _
    $region9: #{tpu_custom_call.1} parent=1 // pred_fallthru
      _
    // Predicated region
    $region10: #{tpu_custom_call.1} parent=1 // pred_check
      _
    $region11: #{tpu_custom_call.1} parent=1 // pred_check_branch
      %35 = sbr.rel (0) target = $region13
    $region12: #{tpu_custom_call.1} parent=1 // pred_region
      _
    $region13: #{tpu_custom_call.1} parent=1 // pred_fallthru
      _
    // Predicated region
    $region14: #{tpu_custom_call.1} parent=1 // pred_check
      _
    $region15: #{tpu_custom_call.1} parent=1 // pred_check_branch
      %37 = sbr.rel (0) target = $region17
    $region16: #{tpu_custom_call.1} parent=1 // pred_region
      _
    $region17: #{tpu_custom_call.1} parent=1 // pred_fallthru
      _
    // Predicated region
    $region18: #{tpu_custom_call.1} parent=1 // pred_check
      _
    $region19: #{tpu_custom_call.1} parent=1 // pred_check_branch
      %39 = sbr.rel (0) target = $region21
    $region20: #{tpu_custom_call.1} parent=1 // pred_region
      _
    $region21: #{tpu_custom_call.1} parent=1 // pred_fallthru
      _
    // Predicated region
    $region22: #{tpu_custom_call.1} parent=1 // pred_check
      _
    $region23: #{tpu_custom_call.1} parent=1 // pred_check_branch
      %41 = sbr.rel (0) target = $region25
    $region24: #{tpu_custom_call.1} parent=1 // pred_region
      _
    $region25: #{tpu_custom_call.1} parent=1 // pred_fallthru
      _
    // Predicated region
    $region26: #{tpu_custom_call.1} parent=1 // pred_check
      _
    $region27: #{tpu_custom_call.1} parent=1 // pred_check_branch
      %43 = sbr.rel (0) target = $region29
    $region28: #{tpu_custom_call.1} parent=1 // pred_region
      _
    $region29: #{tpu_custom_call.1} parent=1 // pred_fallthru
      _
    // Predicated region
    $region30: #{tpu_custom_call.1} parent=1 // pred_check
      _
    $region31: #{tpu_custom_call.1} parent=1 // pred_check_branch
      %45 = sbr.rel (0) target = $region33
    $region32: #{tpu_custom_call.1} parent=1 // pred_region
      _
    $region33: #{tpu_custom_call.1} parent=1 // pred_fallthru
      _
    // Predicated region
    $region34: #{tpu_custom_call.1} parent=1 // pred_check
      _
    $region35: #{tpu_custom_call.1} parent=1 // pred_check_branch
      %47 = sbr.rel (0) target = $region37
    $region36: #{tpu_custom_call.1} parent=1 // pred_region
      _
    $region37: #{tpu_custom_call.1} parent=1 // pred_fallthru
      _
    // Predicated region
    $region38: #{tpu_custom_call.1} parent=1 // pred_check
      _
    $region39: #{tpu_custom_call.1} parent=1 // pred_check_branch
      %49 = sbr.rel (0) target = $region41
    $region40: #{tpu_custom_call.1} parent=1 // pred_region
      _
    $region41: #{tpu_custom_call.1} parent=1 // pred_fallthru
      _
    // Predicated region
    $region42: #{tpu_custom_call.1} parent=1 // pred_check
      _
    $region43: #{tpu_custom_call.1} parent=1 // pred_check_branch
      %51 = sbr.rel (0) target = $region45
    $region44: #{tpu_custom_call.1} parent=1 // pred_region
      _
    $region45: #{tpu_custom_call.1} parent=1 // pred_fallthru
      _
    // Predicated region
    $region46: #{tpu_custom_call.1} parent=1 // pred_check
      _
    $region47: #{tpu_custom_call.1} parent=1 // pred_check_branch
      %53 = sbr.rel (0) target = $region49
    $region48: #{tpu_custom_call.1} parent=1 // pred_region
      _
    $region49: #{tpu_custom_call.1} parent=1 // pred_fallthru
      _
    // Predicated region
    $region50: #{tpu_custom_call.1} parent=1 // pred_check
      _
    $region51: #{tpu_custom_call.1} parent=1 // pred_check_branch
      %55 = sbr.rel (0) target = $region53
    $region52: #{tpu_custom_call.1} parent=1 // pred_region
      _
    $region53: #{tpu_custom_call.1} parent=1 // pred_fallthru
      _
    // Predicated region
    $region54: #{tpu_custom_call.1} parent=1 // pred_check
      _
    $region55: #{tpu_custom_call.1} parent=1 // pred_check_branch
      %57 = sbr.rel (0) target = $region57
    $region56: #{tpu_custom_call.1} parent=1 // pred_region
      _
    $region57: #{tpu_custom_call.1} parent=1 // pred_fallthru
      _
    // Predicated region
    $region58: #{tpu_custom_call.1} parent=1 // pred_check
      _
    $region59: #{tpu_custom_call.1} parent=1 // pred_check_branch
      %59 = sbr.rel (0) target = $region61
    $region60: #{tpu_custom_call.1} parent=1 // pred_region
      _
    $region61: #{tpu_custom_call.1} parent=1 // pred_fallthru
      _
    // Predicated region
    $region62: #{tpu_custom_call.1} parent=1 // pred_check
      _
    $region63: #{tpu_custom_call.1} parent=1 // pred_check_branch
      %61 = sbr.rel (0) target = $region65
    $region64: #{tpu_custom_call.1} parent=1 // pred_region
      _
    $region65: #{tpu_custom_call.1} parent=1 // pred_fallthru
      _
    // Predicated region
    $region66: #{tpu_custom_call.1} parent=1 // pred_check
      _
    $region67: #{tpu_custom_call.1} parent=1 // pred_check_branch
      %63 = sbr.rel (0) target = $region69
    $region68: #{tpu_custom_call.1} parent=1 // pred_region
      _
    $region69: #{tpu_custom_call.1} parent=1 // pred_fallthru
      _
    // Predicated region
    $region70: #{tpu_custom_call.1} parent=1 // pred_check
      _
    $region71: #{tpu_custom_call.1} parent=1 // pred_check_branch
      %65 = sbr.rel (0) target = $region73
    $region72: #{tpu_custom_call.1} parent=1 // pred_region
      _
    $region73: #{tpu_custom_call.1} parent=1 // pred_fallthru
      _
    // Predicated region
    $region74: #{tpu_custom_call.1} parent=1 // pred_check
      _
    $region75: #{tpu_custom_call.1} parent=1 // pred_check_branch
      %67 = sbr.rel (0) target = $region77
    $region76: #{tpu_custom_call.1} parent=1 // pred_region
      _
    $region77: #{tpu_custom_call.1} parent=1 // pred_fallthru
      _
    // Predicated region
    $region78: #{tpu_custom_call.1} parent=1 // pred_check
      _
    $region79: #{tpu_custom_call.1} parent=1 // pred_check_branch
      %69 = sbr.rel (0) target = $region81
    $region80: #{tpu_custom_call.1} parent=1 // pred_region
      _
    $region81: #{tpu_custom_call.1} parent=1 // pred_fallthru
      _
    // Predicated region
    $region82: #{tpu_custom_call.1} parent=1 // pred_check
      _
    $region83: #{tpu_custom_call.1} parent=1 // pred_check_branch
      %71 = sbr.rel (0) target = $region85
    $region84: #{tpu_custom_call.1} parent=1 // pred_region
      _
    $region85: #{tpu_custom_call.1} parent=1 // pred_fallthru
      _
    // Predicated region
    $region86: #{tpu_custom_call.1} parent=1 // pred_check
      _
    $region87: #{tpu_custom_call.1} parent=1 // pred_check_branch
      %73 = sbr.rel (0) target = $region89
    $region88: #{tpu_custom_call.1} parent=1 // pred_region
      _
    $region89: #{tpu_custom_call.1} parent=1 // pred_fallthru
      _
    // Predicated region
    $region90: #{tpu_custom_call.1} parent=1 // pred_check
      _
    $region91: #{tpu_custom_call.1} parent=1 // pred_check_branch
      %75 = sbr.rel (0) target = $region93
    $region92: #{tpu_custom_call.1} parent=1 // pred_region
      _
    $region93: #{tpu_custom_call.1} parent=1 // pred_fallthru
      _
    // Predicated region
    $region94: #{tpu_custom_call.1} parent=1 // pred_check
      _
    $region95: #{tpu_custom_call.1} parent=1 // pred_check_branch
      %77 = sbr.rel (0) target = $region97
    $region96: #{tpu_custom_call.1} parent=1 // pred_region
      _
    $region97: #{tpu_custom_call.1} parent=1 // pred_fallthru
      _
    %v78 = vld [vmem:[%s0] sm:$0xff]
    %v79 = vld [vmem:[%s0 + $0x8] sm:$0xff]
    %v80 = vld [vmem:[%s0 + $0x10] sm:$0xff]
    %v81 = vld [vmem:[%s0 + $0x18] sm:$0xff]
    %v82 = vld [vmem:[%s1] sm:$0xff]
    %v83 = vld [vmem:[%s1 + $0x8] sm:$0xff]
    %v84 = vld [vmem:[%s1 + $0x10] sm:$0xff]
    %v85 = vld [vmem:[%s1 + $0x18] sm:$0xff]
    %v86 = vld [vmem:[%s2] sm:$0xff]
    %v87 = vld [vmem:[%s2 + $0x8] sm:$0xff]
    %v88 = vld [vmem:[%s2 + $0x10] sm:$0xff]
    %v89 = vld [vmem:[%s2 + $0x18] sm:$0xff]
    %v90 = vadd.f32 %v78, %v82
    %v91 = vadd.f32 %v79, %v83
    %v92 = vadd.f32 %v80, %v84
    %v93 = vadd.f32 %v81, %v85
    %v94 = vld [vmem:[%s10] sm:$0xff]
    %v95 = vld [vmem:[%s10 + $0x8] sm:$0xff]
    %v96 = vld [vmem:[%s10 + $0x10] sm:$0xff]
    %v97 = vld [vmem:[%s10 + $0x18] sm:$0xff]
    %v98 = vld [vmem:[%s11] sm:$0x1]
    %v100 = vlaneseq
    %v101 = vshrl.u32 %v100, 7
    %v102 = vsub.s32 0, %v101
    %v103 = vrot.slane %v98, %v102
    %vm105 = vcmask 261120
    %v107 = vsel %vm105, %v78, 0
    %v110 = vsel %vm105, %v79, 0
    %v113 = vsel %vm105, %v80, 0
    %v116 = vsel %vm105, %v81, 0
    %118 = vmatprep.subr.mxu0 0.0
    %119 = vmatpush1.msra.mxu0 0.0
    %120 = vmatprep.subr.mxu0 0.0
    %121 = vmatpush1.msra.mxu0 0.0
    %122 = vmatprep.subr.mxu0 0.0
    %123 = vmatpush1.msra.mxu0 0.0
    %124 = vmatprep.subr.mxu0 0.0
    %125 = vmatpush1.msra.mxu0 0.0
    %126 = vmatprep.subr.mxu0 0.0
    %127 = vmatpush1.msra.mxu0 0.0
    %128 = vmatprep.subr.mxu0 0.0
    %129 = vmatpush1.msra.mxu0 0.0
    %130 = vmatprep.subr.mxu0 0.0
    %131 = vmatpush1.msra.mxu0 0.0
    %132 = vmatprep.subr.mxu0 0.0
    %133 = vmatpush1.msra.mxu0 0.0
    %134 = vmatprep.subr.mxu0 0.0
    %135 = vmatpush1.msra.mxu0 0.0
    %136 = vmatprep.subr.mxu0 0.0
    %137 = vmatpush1.msra.mxu0 0.0
    %138 = vmatprep.subr.mxu0 0.0
    %139 = vmatpush1.msra.mxu0 0.0
    %140 = vmatprep.subr.mxu0 0.0
    %141 = vmatpush1.msra.mxu0 0.0
    %142 = vmatprep.subr.mxu0 0.0
    %143 = vmatpush1.msra.mxu0 %v97
    %144 = vmatprep.subr.mxu0 0.0
    %145 = vmatpush1.msra.mxu0 %v96
    %146 = vmatprep.subr.mxu0 0.0
    %147 = vmatpush1.msra.mxu0 %v95
    %148 = vmatprep.subr.mxu0 0.0
    %149 = vmatpush1.msra.mxu0 %v94
    %150 = vmatprep.subr.mxu0 0.0
    %151 = vmatpush2.msra.mxu0 0.0
    %152 = vmatprep.subr.mxu0 0.0
    %153 = vmatpush2.msra.mxu0 0.0
    %154 = vmatprep.subr.mxu0 0.0
    %155 = vmatpush2.msra.mxu0 0.0
    %156 = vmatprep.subr.mxu0 0.0
    %157 = vmatpush2.msra.mxu0 0.0
    %158 = vmatprep.subr.mxu0 0.0
    %159 = vmatpush2.msra.mxu0 0.0
    %160 = vmatprep.subr.mxu0 0.0
    %161 = vmatpush2.msra.mxu0 0.0
    %162 = vmatprep.subr.mxu0 0.0
    %163 = vmatpush2.msra.mxu0 0.0
    %164 = vmatprep.subr.mxu0 0.0
    %165 = vmatpush2.msra.mxu0 0.0
    %166 = vmatprep.subr.mxu0 0.0
    %167 = vmatpush2.msra.mxu0 0.0
    %168 = vmatprep.subr.mxu0 0.0
    %169 = vmatpush2.msra.mxu0 0.0
    %170 = vmatprep.subr.mxu0 0.0
    %171 = vmatpush2.msra.mxu0 0.0
    %172 = vmatprep.subr.mxu0 0.0
    %173 = vmatpush2.msra.mxu0 0.0
    %174 = vmatprep.subr.mxu0 0.0
    %175 = vmatpush2.msra.mxu0 0.0
    %176 = vmatprep.subr.mxu0 0.0
    %177 = vmatpush2.msra.mxu0 0.0
    %178 = vmatprep.subr.mxu0 0.0
    %179 = vmatpush2.msra.mxu0 0.0
    %180 = vmatprep.subr.mxu0 0.0
    %181 = vmatpush2.msra.mxu0 0.0
    %182 = vmatprep.mubr.f32.mxu0 0.0
    %183 = vmatmul.mubr.f32.gmra.mxu0 %v107
    %v184 = vpop.f32.mrf.mxu0
    %v185 = vadd.f32 %v103, %v184
    %v186 = vpop.f32.mrf.mxu0
    %187 = vmatprep.mubr.f32.mxu0 0.0
    %188 = vmatmul.mubr.f32.gmra.mxu0 %v110
    %v189 = vpop.f32.mrf.mxu0
    %v190 = vadd.f32 %v103, %v189
    %v191 = vpop.f32.mrf.mxu0
    %192 = vmatprep.mubr.f32.mxu0 0.0
    %193 = vmatmul.mubr.f32.gmra.mxu0 %v113
    %v194 = vpop.f32.mrf.mxu0
    %v195 = vadd.f32 %v103, %v194
    %v196 = vpop.f32.mrf.mxu0
    %197 = vmatprep.mubr.f32.mxu0 0.0
    %198 = vmatmul.mubr.f32.gmra.mxu0 %v116
    %v199 = vpop.f32.mrf.mxu0
    %v200 = vadd.f32 %v103, %v199
    %v201 = vpop.f32.mrf.mxu0
    %202 = vdwg.mxu0
    %v203 = vld [vmem:[%s12] sm:$0xff]
    %v204 = vld [vmem:[%s12 + $0x8] sm:$0xff]
    %v205 = vld [vmem:[%s12 + $0x10] sm:$0xff]
    %v206 = vld [vmem:[%s12 + $0x18] sm:$0xff]
    %v207 = vld [vmem:[%s13] sm:$0x1]
    %v209 = vlaneseq
    %v210 = vshrl.u32 %v209, 7
    %v211 = vsub.s32 0, %v210
    %v212 = vrot.slane %v207, %v211
    %v215 = vsel %vm105, %v90, 0
    %v218 = vsel %vm105, %v91, 0
    %v221 = vsel %vm105, %v92, 0
    %v224 = vsel %vm105, %v93, 0
    %226 = vmatprep.subr.mxu0 0.0
    %227 = vmatpush1.msra.mxu0 0.0
    %228 = vmatprep.subr.mxu0 0.0
    %229 = vmatpush1.msra.mxu0 0.0
    %230 = vmatprep.subr.mxu0 0.0
    %231 = vmatpush1.msra.mxu0 0.0
    %232 = vmatprep.subr.mxu0 0.0
    %233 = vmatpush1.msra.mxu0 0.0
    %234 = vmatprep.subr.mxu0 0.0
    %235 = vmatpush1.msra.mxu0 0.0
    %236 = vmatprep.subr.mxu0 0.0
    %237 = vmatpush1.msra.mxu0 0.0
    %238 = vmatprep.subr.mxu0 0.0
    %239 = vmatpush1.msra.mxu0 0.0
    %240 = vmatprep.subr.mxu0 0.0
    %241 = vmatpush1.msra.mxu0 0.0
    %242 = vmatprep.subr.mxu0 0.0
    %243 = vmatpush1.msra.mxu0 0.0
    %244 = vmatprep.subr.mxu0 0.0
    %245 = vmatpush1.msra.mxu0 0.0
    %246 = vmatprep.subr.mxu0 0.0
    %247 = vmatpush1.msra.mxu0 0.0
    %248 = vmatprep.subr.mxu0 0.0
    %249 = vmatpush1.msra.mxu0 0.0
    %250 = vmatprep.subr.mxu0 0.0
    %251 = vmatpush1.msra.mxu0 %v206
    %252 = vmatprep.subr.mxu0 0.0
    %253 = vmatpush1.msra.mxu0 %v205
    %254 = vmatprep.subr.mxu0 0.0
    %255 = vmatpush1.msra.mxu0 %v204
    %256 = vmatprep.subr.mxu0 0.0
    %257 = vmatpush1.msra.mxu0 %v203
    %258 = vmatprep.subr.mxu0 0.0
    %259 = vmatpush2.msra.mxu0 0.0
    %260 = vmatprep.subr.mxu0 0.0
    %261 = vmatpush2.msra.mxu0 0.0
    %262 = vmatprep.subr.mxu0 0.0
    %263 = vmatpush2.msra.mxu0 0.0
    %264 = vmatprep.subr.mxu0 0.0
    %265 = vmatpush2.msra.mxu0 0.0
    %266 = vmatprep.subr.mxu0 0.0
    %267 = vmatpush2.msra.mxu0 0.0
    %268 = vmatprep.subr.mxu0 0.0
    %269 = vmatpush2.msra.mxu0 0.0
    %270 = vmatprep.subr.mxu0 0.0
    %271 = vmatpush2.msra.mxu0 0.0
    %272 = vmatprep.subr.mxu0 0.0
    %273 = vmatpush2.msra.mxu0 0.0
    %274 = vmatprep.subr.mxu0 0.0
    %275 = vmatpush2.msra.mxu0 0.0
    %276 = vmatprep.subr.mxu0 0.0
    %277 = vmatpush2.msra.mxu0 0.0
    %278 = vmatprep.subr.mxu0 0.0
    %279 = vmatpush2.msra.mxu0 0.0
    %280 = vmatprep.subr.mxu0 0.0
    %281 = vmatpush2.msra.mxu0 0.0
    %282 = vmatprep.subr.mxu0 0.0
    %283 = vmatpush2.msra.mxu0 0.0
    %284 = vmatprep.subr.mxu0 0.0
    %285 = vmatpush2.msra.mxu0 0.0
    %286 = vmatprep.subr.mxu0 0.0
    %287 = vmatpush2.msra.mxu0 0.0
    %288 = vmatprep.subr.mxu0 0.0
    %289 = vmatpush2.msra.mxu0 0.0
    %290 = vmatprep.mubr.f32.mxu0 0.0
    %291 = vmatmul.mubr.f32.gmra.mxu0 %v215
    %v292 = vpop.f32.mrf.mxu0
    %v293 = vadd.f32 %v212, %v292
    %v294 = vpop.f32.mrf.mxu0
    %295 = vmatprep.mubr.f32.mxu0 0.0
    %296 = vmatmul.mubr.f32.gmra.mxu0 %v218
    %v297 = vpop.f32.mrf.mxu0
    %v298 = vadd.f32 %v212, %v297
    %v299 = vpop.f32.mrf.mxu0
    %300 = vmatprep.mubr.f32.mxu0 0.0
    %301 = vmatmul.mubr.f32.gmra.mxu0 %v221
    %v302 = vpop.f32.mrf.mxu0
    %v303 = vadd.f32 %v212, %v302
    %v304 = vpop.f32.mrf.mxu0
    %305 = vmatprep.mubr.f32.mxu0 0.0
    %306 = vmatmul.mubr.f32.gmra.mxu0 %v224
    %v307 = vpop.f32.mrf.mxu0
    %v308 = vadd.f32 %v212, %v307
    %v309 = vpop.f32.mrf.mxu0
    %310 = vdwg.mxu0
    %vm311 = vcmask 523520
    %v312 = vsel %vm311, %v293, -inf
    %313 = vmax.xlane.f32.xlu0 %v312
    %v314 = vpop.xlane.xlu0 %313
    %v315 = vsel %vm311, %v298, -inf
    %316 = vmax.xlane.f32.xlu0 %v315
    %v317 = vpop.xlane.xlu0 %316
    %v318 = vsel %vm311, %v303, -inf
    %319 = vmax.xlane.f32.xlu0 %v318
    %v320 = vpop.xlane.xlu0 %319
    %v321 = vsel %vm311, %v308, -inf
    %322 = vmax.xlane.f32.xlu0 %v321
    %v323 = vpop.xlane.xlu0 %322
    %v324 = vsub.f32 %v293, %v314
    %v325 = vsub.f32 %v298, %v317
    %v326 = vsub.f32 %v303, %v320
    %v327 = vsub.f32 %v308, %v323
    %v328 = vmul.f32 %v324, 1.442695
    %v329 = vpow.pop %v328
    %v330 = vmul.f32 %v325, 1.442695
    %v331 = vpow.pop %v330
    %v332 = vmul.f32 %v326, 1.442695
    %v333 = vpow.pop %v332
    %v334 = vmul.f32 %v327, 1.442695
    %v335 = vpow.pop %v334
    %v336 = vld [vmem:[%s7] sm:$0xff]
    %v337 = vld [vmem:[%s7 + $0x8] sm:$0xff]
    %v338 = vld [vmem:[%s7 + $0x10] sm:$0xff]
    %v339 = vld [vmem:[%s7 + $0x18] sm:$0xff]
    %344 = vrot.lane.b32.xlu0 %v329, 96
    %v345 = vpop.permute.xlu0 %344
    %346 = vrot.lane.b32.xlu0 %v331, 96
    %v347 = vpop.permute.xlu0 %346
    %348 = vrot.lane.b32.xlu0 %v333, 96
    %v349 = vpop.permute.xlu0 %348
    %350 = vrot.lane.b32.xlu0 %v335, 96
    %v351 = vpop.permute.xlu0 %350
    %v352 = vsel %vm105, %v345, 0
    %v354 = vsel %vm105, %v347, 0
    %v356 = vsel %vm105, %v349, 0
    %v358 = vsel %vm105, %v351, 0
    %360 = vmatprep.subr.mxu0 0.0
    %361 = vmatpush1.msra.mxu0 0.0
    %362 = vmatprep.subr.mxu0 0.0
    %363 = vmatpush1.msra.mxu0 0.0
    %364 = vmatprep.subr.mxu0 0.0
    %365 = vmatpush1.msra.mxu0 0.0
    %366 = vmatprep.subr.mxu0 0.0
    %367 = vmatpush1.msra.mxu0 0.0
    %368 = vmatprep.subr.mxu0 0.0
    %369 = vmatpush1.msra.mxu0 0.0
    %370 = vmatprep.subr.mxu0 0.0
    %371 = vmatpush1.msra.mxu0 0.0
    %372 = vmatprep.subr.mxu0 0.0
    %373 = vmatpush1.msra.mxu0 0.0
    %374 = vmatprep.subr.mxu0 0.0
    %375 = vmatpush1.msra.mxu0 0.0
    %376 = vmatprep.subr.mxu0 0.0
    %377 = vmatpush1.msra.mxu0 0.0
    %378 = vmatprep.subr.mxu0 0.0
    %379 = vmatpush1.msra.mxu0 0.0
    %380 = vmatprep.subr.mxu0 0.0
    %381 = vmatpush1.msra.mxu0 0.0
    %382 = vmatprep.subr.mxu0 0.0
    %383 = vmatpush1.msra.mxu0 0.0
    %384 = vmatprep.subr.mxu0 0.0
    %385 = vmatpush1.msra.mxu0 %v339
    %386 = vmatprep.subr.mxu0 0.0
    %387 = vmatpush1.msra.mxu0 %v338
    %388 = vmatprep.subr.mxu0 0.0
    %389 = vmatpush1.msra.mxu0 %v337
    %390 = vmatprep.subr.mxu0 0.0
    %391 = vmatpush1.msra.mxu0 %v336
    %392 = vmatprep.subr.mxu0 0.0
    %393 = vmatpush2.msra.mxu0 0.0
    %394 = vmatprep.subr.mxu0 0.0
    %395 = vmatpush2.msra.mxu0 0.0
    %396 = vmatprep.subr.mxu0 0.0
    %397 = vmatpush2.msra.mxu0 0.0
    %398 = vmatprep.subr.mxu0 0.0
    %399 = vmatpush2.msra.mxu0 0.0
    %400 = vmatprep.subr.mxu0 0.0
    %401 = vmatpush2.msra.mxu0 0.0
    %402 = vmatprep.subr.mxu0 0.0
    %403 = vmatpush2.msra.mxu0 0.0
    %404 = vmatprep.subr.mxu0 0.0
    %405 = vmatpush2.msra.mxu0 0.0
    %406 = vmatprep.subr.mxu0 0.0
    %407 = vmatpush2.msra.mxu0 0.0
    %408 = vmatprep.subr.mxu0 0.0
    %409 = vmatpush2.msra.mxu0 0.0
    %410 = vmatprep.subr.mxu0 0.0
    %411 = vmatpush2.msra.mxu0 0.0
    %412 = vmatprep.subr.mxu0 0.0
    %413 = vmatpush2.msra.mxu0 0.0
    %414 = vmatprep.subr.mxu0 0.0
    %415 = vmatpush2.msra.mxu0 0.0
    %416 = vmatprep.subr.mxu0 0.0
    %417 = vmatpush2.msra.mxu0 0.0
    %418 = vmatprep.subr.mxu0 0.0
    %419 = vmatpush2.msra.mxu0 0.0
    %420 = vmatprep.subr.mxu0 0.0
    %421 = vmatpush2.msra.mxu0 0.0
    %422 = vmatprep.subr.mxu0 0.0
    %423 = vmatpush2.msra.mxu0 0.0
    %424 = vmatprep.mubr.f32.mxu0 0.0
    %425 = vmatmul.mubr.f32.gmra.mxu0 %v352
    %v426 = vpop.f32.mrf.mxu0
    %v427 = vadd.f32 0.0, %v426
    %v428 = vpop.f32.mrf.mxu0
    %429 = vmatprep.mubr.f32.mxu0 0.0
    %430 = vmatmul.mubr.f32.gmra.mxu0 %v354
    %v431 = vpop.f32.mrf.mxu0
    %v432 = vadd.f32 0.0, %v431
    %v433 = vpop.f32.mrf.mxu0
    %434 = vmatprep.mubr.f32.mxu0 0.0
    %435 = vmatmul.mubr.f32.gmra.mxu0 %v356
    %v436 = vpop.f32.mrf.mxu0
    %v437 = vadd.f32 0.0, %v436
    %v438 = vpop.f32.mrf.mxu0
    %439 = vmatprep.mubr.f32.mxu0 0.0
    %440 = vmatmul.mubr.f32.gmra.mxu0 %v358
    %v441 = vpop.f32.mrf.mxu0
    %v442 = vadd.f32 0.0, %v441
    %v443 = vpop.f32.mrf.mxu0
    %444 = vdwg.mxu0
    %v445 = vrcp.pop %v427
    %v446 = vrcp.pop %v432
    %v447 = vrcp.pop %v437
    %v448 = vrcp.pop %v442
    %453 = vrot.lane.b32.xlu0 %v445, 32
    %v454 = vpop.permute.xlu0 %453
    %455 = vrot.lane.b32.xlu0 %v446, 32
    %v456 = vpop.permute.xlu0 %455
    %457 = vrot.lane.b32.xlu0 %v447, 32
    %v458 = vpop.permute.xlu0 %457
    %459 = vrot.lane.b32.xlu0 %v448, 32
    %v460 = vpop.permute.xlu0 %459
    %v465 = vmul.f32 %v329, %v454
    %v466 = vmul.f32 %v331, %v456
    %v467 = vmul.f32 %v333, %v458
    %v468 = vmul.f32 %v335, %v460
    %v469 = vld [vmem:[%s4] sm:$0x1]
    %v470 = vld [vmem:[%s3] sm:$0xff]
    %vm471 = vcmask 64512
    %v473 = vsel %vm471, %v86, 0
    %v476 = vsel %vm471, %v87, 0
    %v479 = vsel %vm471, %v88, 0
    %v482 = vsel %vm471, %v89, 0
    %484 = vmatprep.subr.mxu0 0.0
    %485 = vmatpush1.msra.mxu0 0.0
    %486 = vmatprep.subr.mxu0 0.0
    %487 = vmatpush1.msra.mxu0 0.0
    %488 = vmatprep.subr.mxu0 0.0
    %489 = vmatpush1.msra.mxu0 0.0
    %490 = vmatprep.subr.mxu0 0.0
    %491 = vmatpush1.msra.mxu0 0.0
    %492 = vmatprep.subr.mxu0 0.0
    %493 = vmatpush1.msra.mxu0 0.0
    %494 = vmatprep.subr.mxu0 0.0
    %495 = vmatpush1.msra.mxu0 0.0
    %496 = vmatprep.subr.mxu0 0.0
    %497 = vmatpush1.msra.mxu0 0.0
    %498 = vmatprep.subr.mxu0 0.0
    %499 = vmatpush1.msra.mxu0 0.0
    %500 = vmatprep.subr.mxu0 0.0
    %501 = vmatpush1.msra.mxu0 0.0
    %502 = vmatprep.subr.mxu0 0.0
    %503 = vmatpush1.msra.mxu0 0.0
    %504 = vmatprep.subr.mxu0 0.0
    %505 = vmatpush1.msra.mxu0 0.0
    %506 = vmatprep.subr.mxu0 0.0
    %507 = vmatpush1.msra.mxu0 0.0
    %508 = vmatprep.subr.mxu0 0.0
    %509 = vmatpush1.msra.mxu0 0.0
    %510 = vmatprep.subr.mxu0 0.0
    %511 = vmatpush1.msra.mxu0 0.0
    %512 = vmatprep.subr.mxu0 0.0
    %513 = vmatpush1.msra.mxu0 0.0
    %514 = vmatprep.subr.mxu0 0.0
    %515 = vmatpush1.msra.mxu0 %v470
    %516 = vmatprep.subr.mxu0 0.0
    %517 = vmatpush2.msra.mxu0 0.0
    %518 = vmatprep.subr.mxu0 0.0
    %519 = vmatpush2.msra.mxu0 0.0
    %520 = vmatprep.subr.mxu0 0.0
    %521 = vmatpush2.msra.mxu0 0.0
    %522 = vmatprep.subr.mxu0 0.0
    %523 = vmatpush2.msra.mxu0 0.0
    %524 = vmatprep.subr.mxu0 0.0
    %525 = vmatpush2.msra.mxu0 0.0
    %526 = vmatprep.subr.mxu0 0.0
    %527 = vmatpush2.msra.mxu0 0.0
    %528 = vmatprep.subr.mxu0 0.0
    %529 = vmatpush2.msra.mxu0 0.0
    %530 = vmatprep.subr.mxu0 0.0
    %531 = vmatpush2.msra.mxu0 0.0
    %532 = vmatprep.subr.mxu0 0.0
    %533 = vmatpush2.msra.mxu0 0.0
    %534 = vmatprep.subr.mxu0 0.0
    %535 = vmatpush2.msra.mxu0 0.0
    %536 = vmatprep.subr.mxu0 0.0
    %537 = vmatpush2.msra.mxu0 0.0
    %538 = vmatprep.subr.mxu0 0.0
    %539 = vmatpush2.msra.mxu0 0.0
    %540 = vmatprep.subr.mxu0 0.0
    %541 = vmatpush2.msra.mxu0 0.0
    %542 = vmatprep.subr.mxu0 0.0
    %543 = vmatpush2.msra.mxu0 0.0
    %544 = vmatprep.subr.mxu0 0.0
    %545 = vmatpush2.msra.mxu0 0.0
    %546 = vmatprep.subr.mxu0 0.0
    %547 = vmatpush2.msra.mxu0 0.0
    %548 = vmatprep.mubr.f32.mxu0 0.0
    %549 = vmatmul.mubr.f32.gmra.mxu0 %v473
    %v550 = vpop.f32.mrf.mxu0
    %v551 = vadd.f32 0.0, %v550
    %v552 = vpop.f32.mrf.mxu0
    %553 = vmatprep.mubr.f32.mxu0 0.0
    %554 = vmatmul.mubr.f32.gmra.mxu0 %v476
    %v555 = vpop.f32.mrf.mxu0
    %v556 = vadd.f32 0.0, %v555
    %v557 = vpop.f32.mrf.mxu0
    %558 = vmatprep.mubr.f32.mxu0 0.0
    %559 = vmatmul.mubr.f32.gmra.mxu0 %v479
    %v560 = vpop.f32.mrf.mxu0
    %v561 = vadd.f32 0.0, %v560
    %v562 = vpop.f32.mrf.mxu0
    %563 = vmatprep.mubr.f32.mxu0 0.0
    %564 = vmatmul.mubr.f32.gmra.mxu0 %v482
    %v565 = vpop.f32.mrf.mxu0
    %v566 = vadd.f32 0.0, %v565
    %v567 = vpop.f32.mrf.mxu0
    %568 = vdwg.mxu0
    %v570 = vlaneseq
    %v571 = vshrl.u32 %v570, 7
    %v572 = vsub.s32 0, %v571
    %v573 = vrot.slane %v469, %v572
    %v575 = vmul.f32 %v551, %v573
    %v576 = vmul.f32 %v556, %v573
    %v577 = vmul.f32 %v561, %v573
    %v578 = vmul.f32 %v566, %v573
    %v579 = vadd.f32 %v575, %v293
    %v580 = vadd.f32 %v576, %v298
    %v581 = vadd.f32 %v577, %v303
    %v582 = vadd.f32 %v578, %v308
    %v583 = vsub.f32 %v579, 0.5
    %v584 = vsub.f32 %v580, 0.5
    %v585 = vsub.f32 %v581, 0.5
    %v586 = vsub.f32 %v582, 0.5
    %v587 = vfloor.f32 %v583
    %v588 = vfloor.f32 %v584
    %v589 = vfloor.f32 %v585
    %v590 = vfloor.f32 %v586
    %v591 = vsub.f32 %v583, %v587
    %v592 = vsub.f32 %v584, %v588
    %v593 = vsub.f32 %v585, %v589
    %v594 = vsub.f32 %v586, %v590
    %vm595 = vcmp.ge.f32.partialorder %v587, 0.0
    %vm596 = vcmp.ge.f32.partialorder %v588, 0.0
    %vm597 = vcmp.ge.f32.partialorder %v589, 0.0
    %vm598 = vcmp.ge.f32.partialorder %v590, 0.0
    %vm599 = vcmp.lt.f32.partialorder %v587, %v573
    %vm600 = vcmp.lt.f32.partialorder %v588, %v573
    %vm601 = vcmp.lt.f32.partialorder %v589, %v573
    %vm602 = vcmp.lt.f32.partialorder %v590, %v573
    %vm603 = vmand %vm595, %vm599
    %vm604 = vmand %vm596, %vm600
    %vm605 = vmand %vm597, %vm601
    %vm606 = vmand %vm598, %vm602
    %v607 = vsel %vm603, 1, 0
    %v608 = vsel %vm604, 1, 0
    %v609 = vsel %vm605, 1, 0
    %v610 = vsel %vm606, 1, 0
    %v611 = vcvt.s32.f32 %v607
    %v612 = vcvt.s32.f32 %v608
    %v613 = vcvt.s32.f32 %v609
    %v614 = vcvt.s32.f32 %v610
    %v615 = vadd.f32 %v587, 1.0
    %v616 = vadd.f32 %v588, 1.0
    %v617 = vadd.f32 %v589, 1.0
    %v618 = vadd.f32 %v590, 1.0
    %vm619 = vcmp.ge.f32.partialorder %v615, 0.0
    %vm620 = vcmp.ge.f32.partialorder %v616, 0.0
    %vm621 = vcmp.ge.f32.partialorder %v617, 0.0
    %vm622 = vcmp.ge.f32.partialorder %v618, 0.0
    %vm623 = vcmp.lt.f32.partialorder %v615, %v573
    %vm624 = vcmp.lt.f32.partialorder %v616, %v573
    %vm625 = vcmp.lt.f32.partialorder %v617, %v573
    %vm626 = vcmp.lt.f32.partialorder %v618, %v573
    %vm627 = vmand %vm619, %vm623
    %vm628 = vmand %vm620, %vm624
    %vm629 = vmand %vm621, %vm625
    %vm630 = vmand %vm622, %vm626
    %v631 = vsel %vm627, 1, 0
    %v632 = vsel %vm628, 1, 0
    %v633 = vsel %vm629, 1, 0
    %v634 = vsel %vm630, 1, 0
    %v635 = vcvt.s32.f32 %v631
    %v636 = vcvt.s32.f32 %v632
    %v637 = vcvt.s32.f32 %v633
    %v638 = vcvt.s32.f32 %v634
    %v639 = vsub.f32 1.0, %v591
    %v640 = vsub.f32 1.0, %v592
    %v641 = vsub.f32 1.0, %v593
    %v642 = vsub.f32 1.0, %v594
    %647 = vrot.lane.b32.xlu0 %v639, 32
    %v648 = vpop.permute.xlu0 %647
    %649 = vrot.lane.b32.xlu0 %v640, 32
    %v650 = vpop.permute.xlu0 %649
    %651 = vrot.lane.b32.xlu0 %v641, 32
    %v652 = vpop.permute.xlu0 %651
    %653 = vrot.lane.b32.xlu0 %v642, 32
    %v654 = vpop.permute.xlu0 %653
    %v659 = vmul.f32 %v465, %v648
    %v660 = vmul.f32 %v466, %v650
    %v661 = vmul.f32 %v467, %v652
    %v662 = vmul.f32 %v468, %v654
    %667 = vrot.lane.b32.xlu0 %v611, 32
    %v668 = vpop.permute.xlu0 %667
    %669 = vrot.lane.b32.xlu0 %v612, 32
    %v670 = vpop.permute.xlu0 %669
    %671 = vrot.lane.b32.xlu0 %v613, 32
    %v672 = vpop.permute.xlu0 %671
    %673 = vrot.lane.b32.xlu0 %v614, 32
    %v674 = vpop.permute.xlu0 %673
    %v679 = vmul.f32 %v659, %v668
    %v680 = vmul.f32 %v660, %v670
    %v681 = vmul.f32 %v661, %v672
    %v682 = vmul.f32 %v662, %v674
    %687 = vrot.lane.b32.xlu0 %v591, 32
    %v688 = vpop.permute.xlu0 %687
    %689 = vrot.lane.b32.xlu0 %v592, 32
    %v690 = vpop.permute.xlu0 %689
    %691 = vrot.lane.b32.xlu0 %v593, 32
    %v692 = vpop.permute.xlu0 %691
    %693 = vrot.lane.b32.xlu0 %v594, 32
    %v694 = vpop.permute.xlu0 %693
    %v699 = vmul.f32 %v465, %v688
    %v700 = vmul.f32 %v466, %v690
    %v701 = vmul.f32 %v467, %v692
    %v702 = vmul.f32 %v468, %v694
    %707 = vrot.lane.b32.xlu0 %v635, 32
    %v708 = vpop.permute.xlu0 %707
    %709 = vrot.lane.b32.xlu0 %v636, 32
    %v710 = vpop.permute.xlu0 %709
    %711 = vrot.lane.b32.xlu0 %v637, 32
    %v712 = vpop.permute.xlu0 %711
    %713 = vrot.lane.b32.xlu0 %v638, 32
    %v714 = vpop.permute.xlu0 %713
    %v719 = vmul.f32 %v699, %v708
    %v720 = vmul.f32 %v700, %v710
    %v721 = vmul.f32 %v701, %v712
    %v722 = vmul.f32 %v702, %v714
    %v723 = vcvt.f32.s32.to.zero.pseudo %v587
    %v724 = vcvt.f32.s32.to.zero.pseudo %v588
    %v725 = vcvt.f32.s32.to.zero.pseudo %v589
    %v726 = vcvt.f32.s32.to.zero.pseudo %v590
    %v727 = vld [vmem:[%s5] sm:$0x1]
    %v728 = vlaneseq
    %v729 = vshrl.u32 %v728, 7
    %v730 = vsub.s32 0, %v729
    %v731 = vrot.slane %v727, %v730
    %v732 = vadd.s32 %v723, %v731
    %v733 = vadd.s32 %v724, %v731
    %v734 = vadd.s32 %v725, %v731
    %v735 = vadd.s32 %v726, %v731
    %v736 = vld [vmem:[%s6] sm:$0xff]
    %v737 = vld [vmem:[%s6 + $0x8] sm:$0xff]
    %v738 = vld [vmem:[%s6 + $0x10] sm:$0xff]
    %v739 = vld [vmem:[%s6 + $0x18] sm:$0xff]
    %740 = vset.pattern.permute.xlu0 0
    %741 = vperm.xlu0 %740, %v736
    %v742 = vpop.permute.xlu0 %741
    %743 = vset.pattern.permute.xlu0 0
    %744 = vperm.xlu0 %743, %v737
    %v745 = vpop.permute.xlu0 %744
    %746 = vset.pattern.permute.xlu0 0
    %747 = vperm.xlu0 %746, %v738
    %v748 = vpop.permute.xlu0 %747
    %749 = vset.pattern.permute.xlu0 0
    %750 = vperm.xlu0 %749, %v739
    %v751 = vpop.permute.xlu0 %750
    %v752 = vadd.s32 %v732, %v742
    %v753 = vadd.s32 %v733, %v745
    %v754 = vadd.s32 %v734, %v748
    %v755 = vadd.s32 %v735, %v751
    %vm756 = vcmp.lt.s32.totalorder %v752, 0
    %vm757 = vcmp.lt.s32.totalorder %v753, 0
    %vm758 = vcmp.lt.s32.totalorder %v754, 0
    %vm759 = vcmp.lt.s32.totalorder %v755, 0
    %v760 = vsel %vm756, 127, %v752
    %v761 = vsel %vm757, 127, %v753
    %v762 = vsel %vm758, 127, %v754
    %v763 = vsel %vm759, 127, %v755
    %v764 = vlaneseq
    %v765 = vand.u32 %v764, 127
    %v766 = vlaneseq
    %v767 = vshrl.u32 %v766, 7
    %v768 = vsub.s32 0, %v767
    %v769 = vrot.slane %v760, %v768
    %771 = vbcast.lane.b32.xlu0 %v769, 256
    %v772 = vpop.permute.xlu0 %771
    %s774 = sor.u32 256, 8
    %775 = vbcast.lane.b32.xlu0 %v769, %s774
    %v776 = vpop.permute.xlu0 %775
    %s778 = sor.u32 256, 16
    %779 = vbcast.lane.b32.xlu0 %v769, %s778
    %v780 = vpop.permute.xlu0 %779
    %s782 = sor.u32 256, 24
    %783 = vbcast.lane.b32.xlu0 %v769, %s782
    %v784 = vpop.permute.xlu0 %783
    %v785 = vlaneseq
    %v786 = vshrl.u32 %v785, 7
    %v787 = vsub.s32 1, %v786
    %v788 = vrot.slane %v760, %v787
    %790 = vbcast.lane.b32.xlu0 %v788, 256
    %v791 = vpop.permute.xlu0 %790
    %s793 = sor.u32 256, 8
    %794 = vbcast.lane.b32.xlu0 %v788, %s793
    %v795 = vpop.permute.xlu0 %794
    %s797 = sor.u32 256, 16
    %798 = vbcast.lane.b32.xlu0 %v788, %s797
    %v799 = vpop.permute.xlu0 %798
    %s801 = sor.u32 256, 24
    %802 = vbcast.lane.b32.xlu0 %v788, %s801
    %v803 = vpop.permute.xlu0 %802
    %v804 = vlaneseq
    %v805 = vshrl.u32 %v804, 7
    %v806 = vsub.s32 2, %v805
    %v807 = vrot.slane %v760, %v806
    %809 = vbcast.lane.b32.xlu0 %v807, 256
    %v810 = vpop.permute.xlu0 %809
    %s812 = sor.u32 256, 8
    %813 = vbcast.lane.b32.xlu0 %v807, %s812
    %v814 = vpop.permute.xlu0 %813
    %s816 = sor.u32 256, 16
    %817 = vbcast.lane.b32.xlu0 %v807, %s816
    %v818 = vpop.permute.xlu0 %817
    %s820 = sor.u32 256, 24
    %821 = vbcast.lane.b32.xlu0 %v807, %s820
    %v822 = vpop.permute.xlu0 %821
    %v823 = vlaneseq
    %v824 = vshrl.u32 %v823, 7
    %v825 = vsub.s32 3, %v824
    %v826 = vrot.slane %v760, %v825
    %828 = vbcast.lane.b32.xlu0 %v826, 256
    %v829 = vpop.permute.xlu0 %828
    %s831 = sor.u32 256, 8
    %832 = vbcast.lane.b32.xlu0 %v826, %s831
    %v833 = vpop.permute.xlu0 %832
    %s835 = sor.u32 256, 16
    %836 = vbcast.lane.b32.xlu0 %v826, %s835
    %v837 = vpop.permute.xlu0 %836
    %s839 = sor.u32 256, 24
    %840 = vbcast.lane.b32.xlu0 %v826, %s839
    %v841 = vpop.permute.xlu0 %840
    %v842 = vlaneseq
    %v843 = vshrl.u32 %v842, 7
    %v844 = vsub.s32 4, %v843
    %v845 = vrot.slane %v760, %v844
    %847 = vbcast.lane.b32.xlu0 %v845, 256
    %v848 = vpop.permute.xlu0 %847
    %s850 = sor.u32 256, 8
    %851 = vbcast.lane.b32.xlu0 %v845, %s850
    %v852 = vpop.permute.xlu0 %851
    %s854 = sor.u32 256, 16
    %855 = vbcast.lane.b32.xlu0 %v845, %s854
    %v856 = vpop.permute.xlu0 %855
    %s858 = sor.u32 256, 24
    %859 = vbcast.lane.b32.xlu0 %v845, %s858
    %v860 = vpop.permute.xlu0 %859
    %v861 = vlaneseq
    %v862 = vshrl.u32 %v861, 7
    %v863 = vsub.s32 5, %v862
    %v864 = vrot.slane %v760, %v863
    %866 = vbcast.lane.b32.xlu0 %v864, 256
    %v867 = vpop.permute.xlu0 %866
    %s869 = sor.u32 256, 8
    %870 = vbcast.lane.b32.xlu0 %v864, %s869
    %v871 = vpop.permute.xlu0 %870
    %s873 = sor.u32 256, 16
    %874 = vbcast.lane.b32.xlu0 %v864, %s873
    %v875 = vpop.permute.xlu0 %874
    %s877 = sor.u32 256, 24
    %878 = vbcast.lane.b32.xlu0 %v864, %s877
    %v879 = vpop.permute.xlu0 %878
    %v880 = vlaneseq
    %v881 = vshrl.u32 %v880, 7
    %v882 = vsub.s32 6, %v881
    %v883 = vrot.slane %v760, %v882
    %885 = vbcast.lane.b32.xlu0 %v883, 256
    %v886 = vpop.permute.xlu0 %885
    %s888 = sor.u32 256, 8
    %889 = vbcast.lane.b32.xlu0 %v883, %s888
    %v890 = vpop.permute.xlu0 %889
    %s892 = sor.u32 256, 16
    %893 = vbcast.lane.b32.xlu0 %v883, %s892
    %v894 = vpop.permute.xlu0 %893
    %s896 = sor.u32 256, 24
    %897 = vbcast.lane.b32.xlu0 %v883, %s896
    %v898 = vpop.permute.xlu0 %897
    %v899 = vlaneseq
    %v900 = vshrl.u32 %v899, 7
    %v901 = vsub.s32 7, %v900
    %v902 = vrot.slane %v760, %v901
    %904 = vbcast.lane.b32.xlu0 %v902, 256
    %v905 = vpop.permute.xlu0 %904
    %s907 = sor.u32 256, 8
    %908 = vbcast.lane.b32.xlu0 %v902, %s907
    %v909 = vpop.permute.xlu0 %908
    %s911 = sor.u32 256, 16
    %912 = vbcast.lane.b32.xlu0 %v902, %s911
    %v913 = vpop.permute.xlu0 %912
    %s915 = sor.u32 256, 24
    %916 = vbcast.lane.b32.xlu0 %v902, %s915
    %v917 = vpop.permute.xlu0 %916
    %v918 = vlaneseq
    %v919 = vshrl.u32 %v918, 7
    %v920 = vsub.s32 0, %v919
    %v921 = vrot.slane %v761, %v920
    %923 = vbcast.lane.b32.xlu0 %v921, 256
    %v924 = vpop.permute.xlu0 %923
    %s926 = sor.u32 256, 8
    %927 = vbcast.lane.b32.xlu0 %v921, %s926
    %v928 = vpop.permute.xlu0 %927
    %s930 = sor.u32 256, 16
    %931 = vbcast.lane.b32.xlu0 %v921, %s930
    %v932 = vpop.permute.xlu0 %931
    %s934 = sor.u32 256, 24
    %935 = vbcast.lane.b32.xlu0 %v921, %s934
    %v936 = vpop.permute.xlu0 %935
    %v937 = vlaneseq
    %v938 = vshrl.u32 %v937, 7
    %v939 = vsub.s32 1, %v938
    %v940 = vrot.slane %v761, %v939
    %942 = vbcast.lane.b32.xlu0 %v940, 256
    %v943 = vpop.permute.xlu0 %942
    %s945 = sor.u32 256, 8
    %946 = vbcast.lane.b32.xlu0 %v940, %s945
    %v947 = vpop.permute.xlu0 %946
    %s949 = sor.u32 256, 16
    %950 = vbcast.lane.b32.xlu0 %v940, %s949
    %v951 = vpop.permute.xlu0 %950
    %s953 = sor.u32 256, 24
    %954 = vbcast.lane.b32.xlu0 %v940, %s953
    %v955 = vpop.permute.xlu0 %954
    %v956 = vlaneseq
    %v957 = vshrl.u32 %v956, 7
    %v958 = vsub.s32 2, %v957
    %v959 = vrot.slane %v761, %v958
    %961 = vbcast.lane.b32.xlu0 %v959, 256
    %v962 = vpop.permute.xlu0 %961
    %s964 = sor.u32 256, 8
    %965 = vbcast.lane.b32.xlu0 %v959, %s964
    %v966 = vpop.permute.xlu0 %965
    %s968 = sor.u32 256, 16
    %969 = vbcast.lane.b32.xlu0 %v959, %s968
    %v970 = vpop.permute.xlu0 %969
    %s972 = sor.u32 256, 24
    %973 = vbcast.lane.b32.xlu0 %v959, %s972
    %v974 = vpop.permute.xlu0 %973
    %v975 = vlaneseq
    %v976 = vshrl.u32 %v975, 7
    %v977 = vsub.s32 3, %v976
    %v978 = vrot.slane %v761, %v977
    %980 = vbcast.lane.b32.xlu0 %v978, 256
    %v981 = vpop.permute.xlu0 %980
    %s983 = sor.u32 256, 8
    %984 = vbcast.lane.b32.xlu0 %v978, %s983
    %v985 = vpop.permute.xlu0 %984
    %s987 = sor.u32 256, 16
    %988 = vbcast.lane.b32.xlu0 %v978, %s987
    %v989 = vpop.permute.xlu0 %988
    %s991 = sor.u32 256, 24
    %992 = vbcast.lane.b32.xlu0 %v978, %s991
    %v993 = vpop.permute.xlu0 %992
    %v994 = vlaneseq
    %v995 = vshrl.u32 %v994, 7
    %v996 = vsub.s32 4, %v995
    %v997 = vrot.slane %v761, %v996
    %999 = vbcast.lane.b32.xlu0 %v997, 256
    %v1000 = vpop.permute.xlu0 %999
    %s1002 = sor.u32 256, 8
    %1003 = vbcast.lane.b32.xlu0 %v997, %s1002
    %v1004 = vpop.permute.xlu0 %1003
    %s1006 = sor.u32 256, 16
    %1007 = vbcast.lane.b32.xlu0 %v997, %s1006
    %v1008 = vpop.permute.xlu0 %1007
    %s1010 = sor.u32 256, 24
    %1011 = vbcast.lane.b32.xlu0 %v997, %s1010
    %v1012 = vpop.permute.xlu0 %1011
    %v1013 = vlaneseq
    %v1014 = vshrl.u32 %v1013, 7
    %v1015 = vsub.s32 5, %v1014
    %v1016 = vrot.slane %v761, %v1015
    %1018 = vbcast.lane.b32.xlu0 %v1016, 256
    %v1019 = vpop.permute.xlu0 %1018
    %s1021 = sor.u32 256, 8
    %1022 = vbcast.lane.b32.xlu0 %v1016, %s1021
    %v1023 = vpop.permute.xlu0 %1022
    %s1025 = sor.u32 256, 16
    %1026 = vbcast.lane.b32.xlu0 %v1016, %s1025
    %v1027 = vpop.permute.xlu0 %1026
    %s1029 = sor.u32 256, 24
    %1030 = vbcast.lane.b32.xlu0 %v1016, %s1029
    %v1031 = vpop.permute.xlu0 %1030
    %v1032 = vlaneseq
    %v1033 = vshrl.u32 %v1032, 7
    %v1034 = vsub.s32 6, %v1033
    %v1035 = vrot.slane %v761, %v1034
    %1037 = vbcast.lane.b32.xlu0 %v1035, 256
    %v1038 = vpop.permute.xlu0 %1037
    %s1040 = sor.u32 256, 8
    %1041 = vbcast.lane.b32.xlu0 %v1035, %s1040
    %v1042 = vpop.permute.xlu0 %1041
    %s1044 = sor.u32 256, 16
    %1045 = vbcast.lane.b32.xlu0 %v1035, %s1044
    %v1046 = vpop.permute.xlu0 %1045
    %s1048 = sor.u32 256, 24
    %1049 = vbcast.lane.b32.xlu0 %v1035, %s1048
    %v1050 = vpop.permute.xlu0 %1049
    %v1051 = vlaneseq
    %v1052 = vshrl.u32 %v1051, 7
    %v1053 = vsub.s32 7, %v1052
    %v1054 = vrot.slane %v761, %v1053
    %1056 = vbcast.lane.b32.xlu0 %v1054, 256
    %v1057 = vpop.permute.xlu0 %1056
    %s1059 = sor.u32 256, 8
    %1060 = vbcast.lane.b32.xlu0 %v1054, %s1059
    %v1061 = vpop.permute.xlu0 %1060
    %s1063 = sor.u32 256, 16
    %1064 = vbcast.lane.b32.xlu0 %v1054, %s1063
    %v1065 = vpop.permute.xlu0 %1064
    %s1067 = sor.u32 256, 24
    %1068 = vbcast.lane.b32.xlu0 %v1054, %s1067
    %v1069 = vpop.permute.xlu0 %1068
    %v1070 = vlaneseq
    %v1071 = vshrl.u32 %v1070, 7
    %v1072 = vsub.s32 0, %v1071
    %v1073 = vrot.slane %v762, %v1072
    %1075 = vbcast.lane.b32.xlu0 %v1073, 256
    %v1076 = vpop.permute.xlu0 %1075
    %s1078 = sor.u32 256, 8
    %1079 = vbcast.lane.b32.xlu0 %v1073, %s1078
    %v1080 = vpop.permute.xlu0 %1079
    %s1082 = sor.u32 256, 16
    %1083 = vbcast.lane.b32.xlu0 %v1073, %s1082
    %v1084 = vpop.permute.xlu0 %1083
    %s1086 = sor.u32 256, 24
    %1087 = vbcast.lane.b32.xlu0 %v1073, %s1086
    %v1088 = vpop.permute.xlu0 %1087
    %v1089 = vlaneseq
    %v1090 = vshrl.u32 %v1089, 7
    %v1091 = vsub.s32 1, %v1090
    %v1092 = vrot.slane %v762, %v1091
    %1094 = vbcast.lane.b32.xlu0 %v1092, 256
    %v1095 = vpop.permute.xlu0 %1094
    %s1097 = sor.u32 256, 8
    %1098 = vbcast.lane.b32.xlu0 %v1092, %s1097
    %v1099 = vpop.permute.xlu0 %1098
    %s1101 = sor.u32 256, 16
    %1102 = vbcast.lane.b32.xlu0 %v1092, %s1101
    %v1103 = vpop.permute.xlu0 %1102
    %s1105 = sor.u32 256, 24
    %1106 = vbcast.lane.b32.xlu0 %v1092, %s1105
    %v1107 = vpop.permute.xlu0 %1106
    %v1108 = vlaneseq
    %v1109 = vshrl.u32 %v1108, 7
    %v1110 = vsub.s32 2, %v1109
    %v1111 = vrot.slane %v762, %v1110
    %1113 = vbcast.lane.b32.xlu0 %v1111, 256
    %v1114 = vpop.permute.xlu0 %1113
    %s1116 = sor.u32 256, 8
    %1117 = vbcast.lane.b32.xlu0 %v1111, %s1116
    %v1118 = vpop.permute.xlu0 %1117
    %s1120 = sor.u32 256, 16
    %1121 = vbcast.lane.b32.xlu0 %v1111, %s1120
    %v1122 = vpop.permute.xlu0 %1121
    %s1124 = sor.u32 256, 24
    %1125 = vbcast.lane.b32.xlu0 %v1111, %s1124
    %v1126 = vpop.permute.xlu0 %1125
    %v1127 = vlaneseq
    %v1128 = vshrl.u32 %v1127, 7
    %v1129 = vsub.s32 3, %v1128
    %v1130 = vrot.slane %v762, %v1129
    %1132 = vbcast.lane.b32.xlu0 %v1130, 256
    %v1133 = vpop.permute.xlu0 %1132
    %s1135 = sor.u32 256, 8
    %1136 = vbcast.lane.b32.xlu0 %v1130, %s1135
    %v1137 = vpop.permute.xlu0 %1136
    %s1139 = sor.u32 256, 16
    %1140 = vbcast.lane.b32.xlu0 %v1130, %s1139
    %v1141 = vpop.permute.xlu0 %1140
    %s1143 = sor.u32 256, 24
    %1144 = vbcast.lane.b32.xlu0 %v1130, %s1143
    %v1145 = vpop.permute.xlu0 %1144
    %v1146 = vlaneseq
    %v1147 = vshrl.u32 %v1146, 7
    %v1148 = vsub.s32 4, %v1147
    %v1149 = vrot.slane %v762, %v1148
    %1151 = vbcast.lane.b32.xlu0 %v1149, 256
    %v1152 = vpop.permute.xlu0 %1151
    %s1154 = sor.u32 256, 8
    %1155 = vbcast.lane.b32.xlu0 %v1149, %s1154
    %v1156 = vpop.permute.xlu0 %1155
    %s1158 = sor.u32 256, 16
    %1159 = vbcast.lane.b32.xlu0 %v1149, %s1158
    %v1160 = vpop.permute.xlu0 %1159
    %s1162 = sor.u32 256, 24
    %1163 = vbcast.lane.b32.xlu0 %v1149, %s1162
    %v1164 = vpop.permute.xlu0 %1163
    %v1165 = vlaneseq
    %v1166 = vshrl.u32 %v1165, 7
    %v1167 = vsub.s32 5, %v1166
    %v1168 = vrot.slane %v762, %v1167
    %1170 = vbcast.lane.b32.xlu0 %v1168, 256
    %v1171 = vpop.permute.xlu0 %1170
    %s1173 = sor.u32 256, 8
    %1174 = vbcast.lane.b32.xlu0 %v1168, %s1173
    %v1175 = vpop.permute.xlu0 %1174
    %s1177 = sor.u32 256, 16
    %1178 = vbcast.lane.b32.xlu0 %v1168, %s1177
    %v1179 = vpop.permute.xlu0 %1178
    %s1181 = sor.u32 256, 24
    %1182 = vbcast.lane.b32.xlu0 %v1168, %s1181
    %v1183 = vpop.permute.xlu0 %1182
    %v1184 = vlaneseq
    %v1185 = vshrl.u32 %v1184, 7
    %v1186 = vsub.s32 6, %v1185
    %v1187 = vrot.slane %v762, %v1186
    %1189 = vbcast.lane.b32.xlu0 %v1187, 256
    %v1190 = vpop.permute.xlu0 %1189
    %s1192 = sor.u32 256, 8
    %1193 = vbcast.lane.b32.xlu0 %v1187, %s1192
    %v1194 = vpop.permute.xlu0 %1193
    %s1196 = sor.u32 256, 16
    %1197 = vbcast.lane.b32.xlu0 %v1187, %s1196
    %v1198 = vpop.permute.xlu0 %1197
    %s1200 = sor.u32 256, 24
    %1201 = vbcast.lane.b32.xlu0 %v1187, %s1200
    %v1202 = vpop.permute.xlu0 %1201
    %v1203 = vlaneseq
    %v1204 = vshrl.u32 %v1203, 7
    %v1205 = vsub.s32 7, %v1204
    %v1206 = vrot.slane %v762, %v1205
    %1208 = vbcast.lane.b32.xlu0 %v1206, 256
    %v1209 = vpop.permute.xlu0 %1208
    %s1211 = sor.u32 256, 8
    %1212 = vbcast.lane.b32.xlu0 %v1206, %s1211
    %v1213 = vpop.permute.xlu0 %1212
    %s1215 = sor.u32 256, 16
    %1216 = vbcast.lane.b32.xlu0 %v1206, %s1215
    %v1217 = vpop.permute.xlu0 %1216
    %s1219 = sor.u32 256, 24
    %1220 = vbcast.lane.b32.xlu0 %v1206, %s1219
    %v1221 = vpop.permute.xlu0 %1220
    %v1222 = vlaneseq
    %v1223 = vshrl.u32 %v1222, 7
    %v1224 = vsub.s32 0, %v1223
    %v1225 = vrot.slane %v763, %v1224
    %1227 = vbcast.lane.b32.xlu0 %v1225, 256
    %v1228 = vpop.permute.xlu0 %1227
    %s1230 = sor.u32 256, 8
    %1231 = vbcast.lane.b32.xlu0 %v1225, %s1230
    %v1232 = vpop.permute.xlu0 %1231
    %s1234 = sor.u32 256, 16
    %1235 = vbcast.lane.b32.xlu0 %v1225, %s1234
    %v1236 = vpop.permute.xlu0 %1235
    %s1238 = sor.u32 256, 24
    %1239 = vbcast.lane.b32.xlu0 %v1225, %s1238
    %v1240 = vpop.permute.xlu0 %1239
    %v1241 = vlaneseq
    %v1242 = vshrl.u32 %v1241, 7
    %v1243 = vsub.s32 1, %v1242
    %v1244 = vrot.slane %v763, %v1243
    %1246 = vbcast.lane.b32.xlu0 %v1244, 256
    %v1247 = vpop.permute.xlu0 %1246
    %s1249 = sor.u32 256, 8
    %1250 = vbcast.lane.b32.xlu0 %v1244, %s1249
    %v1251 = vpop.permute.xlu0 %1250
    %s1253 = sor.u32 256, 16
    %1254 = vbcast.lane.b32.xlu0 %v1244, %s1253
    %v1255 = vpop.permute.xlu0 %1254
    %s1257 = sor.u32 256, 24
    %1258 = vbcast.lane.b32.xlu0 %v1244, %s1257
    %v1259 = vpop.permute.xlu0 %1258
    %v1260 = vlaneseq
    %v1261 = vshrl.u32 %v1260, 7
    %v1262 = vsub.s32 2, %v1261
    %v1263 = vrot.slane %v763, %v1262
    %1265 = vbcast.lane.b32.xlu0 %v1263, 256
    %v1266 = vpop.permute.xlu0 %1265
    %s1268 = sor.u32 256, 8
    %1269 = vbcast.lane.b32.xlu0 %v1263, %s1268
    %v1270 = vpop.permute.xlu0 %1269
    %s1272 = sor.u32 256, 16
    %1273 = vbcast.lane.b32.xlu0 %v1263, %s1272
    %v1274 = vpop.permute.xlu0 %1273
    %s1276 = sor.u32 256, 24
    %1277 = vbcast.lane.b32.xlu0 %v1263, %s1276
    %v1278 = vpop.permute.xlu0 %1277
    %v1279 = vlaneseq
    %v1280 = vshrl.u32 %v1279, 7
    %v1281 = vsub.s32 3, %v1280
    %v1282 = vrot.slane %v763, %v1281
    %1284 = vbcast.lane.b32.xlu0 %v1282, 256
    %v1285 = vpop.permute.xlu0 %1284
    %s1287 = sor.u32 256, 8
    %1288 = vbcast.lane.b32.xlu0 %v1282, %s1287
    %v1289 = vpop.permute.xlu0 %1288
    %s1291 = sor.u32 256, 16
    %1292 = vbcast.lane.b32.xlu0 %v1282, %s1291
    %v1293 = vpop.permute.xlu0 %1292
    %s1295 = sor.u32 256, 24
    %1296 = vbcast.lane.b32.xlu0 %v1282, %s1295
    %v1297 = vpop.permute.xlu0 %1296
    %v1298 = vlaneseq
    %v1299 = vshrl.u32 %v1298, 7
    %v1300 = vsub.s32 4, %v1299
    %v1301 = vrot.slane %v763, %v1300
    %1303 = vbcast.lane.b32.xlu0 %v1301, 256
    %v1304 = vpop.permute.xlu0 %1303
    %s1306 = sor.u32 256, 8
    %1307 = vbcast.lane.b32.xlu0 %v1301, %s1306
    %v1308 = vpop.permute.xlu0 %1307
    %s1310 = sor.u32 256, 16
    %1311 = vbcast.lane.b32.xlu0 %v1301, %s1310
    %v1312 = vpop.permute.xlu0 %1311
    %s1314 = sor.u32 256, 24
    %1315 = vbcast.lane.b32.xlu0 %v1301, %s1314
    %v1316 = vpop.permute.xlu0 %1315
    %v1317 = vlaneseq
    %v1318 = vshrl.u32 %v1317, 7
    %v1319 = vsub.s32 5, %v1318
    %v1320 = vrot.slane %v763, %v1319
    %1322 = vbcast.lane.b32.xlu0 %v1320, 256
    %v1323 = vpop.permute.xlu0 %1322
    %s1325 = sor.u32 256, 8
    %1326 = vbcast.lane.b32.xlu0 %v1320, %s1325
    %v1327 = vpop.permute.xlu0 %1326
    %s1329 = sor.u32 256, 16
    %1330 = vbcast.lane.b32.xlu0 %v1320, %s1329
    %v1331 = vpop.permute.xlu0 %1330
    %s1333 = sor.u32 256, 24
    %1334 = vbcast.lane.b32.xlu0 %v1320, %s1333
    %v1335 = vpop.permute.xlu0 %1334
    %v1336 = vlaneseq
    %v1337 = vshrl.u32 %v1336, 7
    %v1338 = vsub.s32 6, %v1337
    %v1339 = vrot.slane %v763, %v1338
    %1341 = vbcast.lane.b32.xlu0 %v1339, 256
    %v1342 = vpop.permute.xlu0 %1341
    %s1344 = sor.u32 256, 8
    %1345 = vbcast.lane.b32.xlu0 %v1339, %s1344
    %v1346 = vpop.permute.xlu0 %1345
    %s1348 = sor.u32 256, 16
    %1349 = vbcast.lane.b32.xlu0 %v1339, %s1348
    %v1350 = vpop.permute.xlu0 %1349
    %s1352 = sor.u32 256, 24
    %1353 = vbcast.lane.b32.xlu0 %v1339, %s1352
    %v1354 = vpop.permute.xlu0 %1353
    %v1355 = vlaneseq
    %v1356 = vshrl.u32 %v1355, 7
    %v1357 = vsub.s32 7, %v1356
    %v1358 = vrot.slane %v763, %v1357
    %1360 = vbcast.lane.b32.xlu0 %v1358, 256
    %v1361 = vpop.permute.xlu0 %1360
    %s1363 = sor.u32 256, 8
    %1364 = vbcast.lane.b32.xlu0 %v1358, %s1363
    %v1365 = vpop.permute.xlu0 %1364
    %s1367 = sor.u32 256, 16
    %1368 = vbcast.lane.b32.xlu0 %v1358, %s1367
    %v1369 = vpop.permute.xlu0 %1368
    %s1371 = sor.u32 256, 24
    %1372 = vbcast.lane.b32.xlu0 %v1358, %s1371
    %v1373 = vpop.permute.xlu0 %1372
    %vm1374 = vcmp.eq.s32.totalorder %v765, %v772
    %vm1375 = vcmp.eq.s32.totalorder %v765, %v776
    %vm1376 = vcmp.eq.s32.totalorder %v765, %v780
    %vm1377 = vcmp.eq.s32.totalorder %v765, %v784
    %vm1378 = vcmp.eq.s32.totalorder %v765, %v791
    %vm1379 = vcmp.eq.s32.totalorder %v765, %v795
    %vm1380 = vcmp.eq.s32.totalorder %v765, %v799
    %vm1381 = vcmp.eq.s32.totalorder %v765, %v803
    %vm1382 = vcmp.eq.s32.totalorder %v765, %v810
    %vm1383 = vcmp.eq.s32.totalorder %v765, %v814
    %vm1384 = vcmp.eq.s32.totalorder %v765, %v818
    %vm1385 = vcmp.eq.s32.totalorder %v765, %v822
    %vm1386 = vcmp.eq.s32.totalorder %v765, %v829
    %vm1387 = vcmp.eq.s32.totalorder %v765, %v833
    %vm1388 = vcmp.eq.s32.totalorder %v765, %v837
    %vm1389 = vcmp.eq.s32.totalorder %v765, %v841
    %vm1390 = vcmp.eq.s32.totalorder %v765, %v848
    %vm1391 = vcmp.eq.s32.totalorder %v765, %v852
    %vm1392 = vcmp.eq.s32.totalorder %v765, %v856
    %vm1393 = vcmp.eq.s32.totalorder %v765, %v860
    %vm1394 = vcmp.eq.s32.totalorder %v765, %v867
    %vm1395 = vcmp.eq.s32.totalorder %v765, %v871
    %vm1396 = vcmp.eq.s32.totalorder %v765, %v875
    %vm1397 = vcmp.eq.s32.totalorder %v765, %v879
    %vm1398 = vcmp.eq.s32.totalorder %v765, %v886
    %vm1399 = vcmp.eq.s32.totalorder %v765, %v890
    %vm1400 = vcmp.eq.s32.totalorder %v765, %v894
    %vm1401 = vcmp.eq.s32.totalorder %v765, %v898
    %vm1402 = vcmp.eq.s32.totalorder %v765, %v905
    %vm1403 = vcmp.eq.s32.totalorder %v765, %v909
    %vm1404 = vcmp.eq.s32.totalorder %v765, %v913
    %vm1405 = vcmp.eq.s32.totalorder %v765, %v917
    %vm1406 = vcmp.eq.s32.totalorder %v765, %v924
    %vm1407 = vcmp.eq.s32.totalorder %v765, %v928
    %vm1408 = vcmp.eq.s32.totalorder %v765, %v932
    %vm1409 = vcmp.eq.s32.totalorder %v765, %v936
    %vm1410 = vcmp.eq.s32.totalorder %v765, %v943
    %vm1411 = vcmp.eq.s32.totalorder %v765, %v947
    %vm1412 = vcmp.eq.s32.totalorder %v765, %v951
    %vm1413 = vcmp.eq.s32.totalorder %v765, %v955
    %vm1414 = vcmp.eq.s32.totalorder %v765, %v962
    %vm1415 = vcmp.eq.s32.totalorder %v765, %v966
    %vm1416 = vcmp.eq.s32.totalorder %v765, %v970
    %vm1417 = vcmp.eq.s32.totalorder %v765, %v974
    %vm1418 = vcmp.eq.s32.totalorder %v765, %v981
    %vm1419 = vcmp.eq.s32.totalorder %v765, %v985
    %vm1420 = vcmp.eq.s32.totalorder %v765, %v989
    %vm1421 = vcmp.eq.s32.totalorder %v765, %v993
    %vm1422 = vcmp.eq.s32.totalorder %v765, %v1000
    %vm1423 = vcmp.eq.s32.totalorder %v765, %v1004
    %vm1424 = vcmp.eq.s32.totalorder %v765, %v1008
    %vm1425 = vcmp.eq.s32.totalorder %v765, %v1012
    %vm1426 = vcmp.eq.s32.totalorder %v765, %v1019
    %vm1427 = vcmp.eq.s32.totalorder %v765, %v1023
    %vm1428 = vcmp.eq.s32.totalorder %v765, %v1027
    %vm1429 = vcmp.eq.s32.totalorder %v765, %v1031
    %vm1430 = vcmp.eq.s32.totalorder %v765, %v1038
    %vm1431 = vcmp.eq.s32.totalorder %v765, %v1042
    %vm1432 = vcmp.eq.s32.totalorder %v765, %v1046
    %vm1433 = vcmp.eq.s32.totalorder %v765, %v1050
    %vm1434 = vcmp.eq.s32.totalorder %v765, %v1057
    %vm1435 = vcmp.eq.s32.totalorder %v765, %v1061
    %vm1436 = vcmp.eq.s32.totalorder %v765, %v1065
    %vm1437 = vcmp.eq.s32.totalorder %v765, %v1069
    %vm1438 = vcmp.eq.s32.totalorder %v765, %v1076
    %vm1439 = vcmp.eq.s32.totalorder %v765, %v1080
    %vm1440 = vcmp.eq.s32.totalorder %v765, %v1084
    %vm1441 = vcmp.eq.s32.totalorder %v765, %v1088
    %vm1442 = vcmp.eq.s32.totalorder %v765, %v1095
    %vm1443 = vcmp.eq.s32.totalorder %v765, %v1099
    %vm1444 = vcmp.eq.s32.totalorder %v765, %v1103
    %vm1445 = vcmp.eq.s32.totalorder %v765, %v1107
    %vm1446 = vcmp.eq.s32.totalorder %v765, %v1114
    %vm1447 = vcmp.eq.s32.totalorder %v765, %v1118
    %vm1448 = vcmp.eq.s32.totalorder %v765, %v1122
    %vm1449 = vcmp.eq.s32.totalorder %v765, %v1126
    %vm1450 = vcmp.eq.s32.totalorder %v765, %v1133
    %vm1451 = vcmp.eq.s32.totalorder %v765, %v1137
    %vm1452 = vcmp.eq.s32.totalorder %v765, %v1141
    %vm1453 = vcmp.eq.s32.totalorder %v765, %v1145
    %vm1454 = vcmp.eq.s32.totalorder %v765, %v1152
    %vm1455 = vcmp.eq.s32.totalorder %v765, %v1156
    %vm1456 = vcmp.eq.s32.totalorder %v765, %v1160
    %vm1457 = vcmp.eq.s32.totalorder %v765, %v1164
    %vm1458 = vcmp.eq.s32.totalorder %v765, %v1171
    %vm1459 = vcmp.eq.s32.totalorder %v765, %v1175
    %vm1460 = vcmp.eq.s32.totalorder %v765, %v1179
    %vm1461 = vcmp.eq.s32.totalorder %v765, %v1183
    %vm1462 = vcmp.eq.s32.totalorder %v765, %v1190
    %vm1463 = vcmp.eq.s32.totalorder %v765, %v1194
    %vm1464 = vcmp.eq.s32.totalorder %v765, %v1198
    %vm1465 = vcmp.eq.s32.totalorder %v765, %v1202
    %vm1466 = vcmp.eq.s32.totalorder %v765, %v1209
    %vm1467 = vcmp.eq.s32.totalorder %v765, %v1213
    %vm1468 = vcmp.eq.s32.totalorder %v765, %v1217
    %vm1469 = vcmp.eq.s32.totalorder %v765, %v1221
    %vm1470 = vcmp.eq.s32.totalorder %v765, %v1228
    %vm1471 = vcmp.eq.s32.totalorder %v765, %v1232
    %vm1472 = vcmp.eq.s32.totalorder %v765, %v1236
    %vm1473 = vcmp.eq.s32.totalorder %v765, %v1240
    %vm1474 = vcmp.eq.s32.totalorder %v765, %v1247
    %vm1475 = vcmp.eq.s32.totalorder %v765, %v1251
    %vm1476 = vcmp.eq.s32.totalorder %v765, %v1255
    %vm1477 = vcmp.eq.s32.totalorder %v765, %v1259
    %vm1478 = vcmp.eq.s32.totalorder %v765, %v1266
    %vm1479 = vcmp.eq.s32.totalorder %v765, %v1270
    %vm1480 = vcmp.eq.s32.totalorder %v765, %v1274
    %vm1481 = vcmp.eq.s32.totalorder %v765, %v1278
    %vm1482 = vcmp.eq.s32.totalorder %v765, %v1285
    %vm1483 = vcmp.eq.s32.totalorder %v765, %v1289
    %vm1484 = vcmp.eq.s32.totalorder %v765, %v1293
    %vm1485 = vcmp.eq.s32.totalorder %v765, %v1297
    %vm1486 = vcmp.eq.s32.totalorder %v765, %v1304
    %vm1487 = vcmp.eq.s32.totalorder %v765, %v1308
    %vm1488 = vcmp.eq.s32.totalorder %v765, %v1312
    %vm1489 = vcmp.eq.s32.totalorder %v765, %v1316
    %vm1490 = vcmp.eq.s32.totalorder %v765, %v1323
    %vm1491 = vcmp.eq.s32.totalorder %v765, %v1327
    %vm1492 = vcmp.eq.s32.totalorder %v765, %v1331
    %vm1493 = vcmp.eq.s32.totalorder %v765, %v1335
    %vm1494 = vcmp.eq.s32.totalorder %v765, %v1342
    %vm1495 = vcmp.eq.s32.totalorder %v765, %v1346
    %vm1496 = vcmp.eq.s32.totalorder %v765, %v1350
    %vm1497 = vcmp.eq.s32.totalorder %v765, %v1354
    %vm1498 = vcmp.eq.s32.totalorder %v765, %v1361
    %vm1499 = vcmp.eq.s32.totalorder %v765, %v1365
    %vm1500 = vcmp.eq.s32.totalorder %v765, %v1369
    %vm1501 = vcmp.eq.s32.totalorder %v765, %v1373
    %v1502 = vlaneseq
    %v1503 = vshrl.u32 %v1502, 7
    %v1504 = vsub.s32 0, %v1503
    %v1505 = vrot.slane %v679, %v1504
    %s1507 = sor.u32 256, 32
    %1508 = vbcast.lane.b32.xlu0 %v1505, %s1507
    %v1509 = vpop.permute.xlu0 %1508
    %s1511 = sor.u32 256, 40
    %1512 = vbcast.lane.b32.xlu0 %v1505, %s1511
    %v1513 = vpop.permute.xlu0 %1512
    %s1515 = sor.u32 256, 48
    %1516 = vbcast.lane.b32.xlu0 %v1505, %s1515
    %v1517 = vpop.permute.xlu0 %1516
    %s1519 = sor.u32 256, 56
    %1520 = vbcast.lane.b32.xlu0 %v1505, %s1519
    %v1521 = vpop.permute.xlu0 %1520
    %v1522 = vlaneseq
    %v1523 = vshrl.u32 %v1522, 7
    %v1524 = vsub.s32 1, %v1523
    %v1525 = vrot.slane %v679, %v1524
    %s1527 = sor.u32 256, 32
    %1528 = vbcast.lane.b32.xlu0 %v1525, %s1527
    %v1529 = vpop.permute.xlu0 %1528
    %s1531 = sor.u32 256, 40
    %1532 = vbcast.lane.b32.xlu0 %v1525, %s1531
    %v1533 = vpop.permute.xlu0 %1532
    %s1535 = sor.u32 256, 48
    %1536 = vbcast.lane.b32.xlu0 %v1525, %s1535
    %v1537 = vpop.permute.xlu0 %1536
    %s1539 = sor.u32 256, 56
    %1540 = vbcast.lane.b32.xlu0 %v1525, %s1539
    %v1541 = vpop.permute.xlu0 %1540
    %v1542 = vlaneseq
    %v1543 = vshrl.u32 %v1542, 7
    %v1544 = vsub.s32 2, %v1543
    %v1545 = vrot.slane %v679, %v1544
    %s1547 = sor.u32 256, 32
    %1548 = vbcast.lane.b32.xlu0 %v1545, %s1547
    %v1549 = vpop.permute.xlu0 %1548
    %s1551 = sor.u32 256, 40
    %1552 = vbcast.lane.b32.xlu0 %v1545, %s1551
    %v1553 = vpop.permute.xlu0 %1552
    %s1555 = sor.u32 256, 48
    %1556 = vbcast.lane.b32.xlu0 %v1545, %s1555
    %v1557 = vpop.permute.xlu0 %1556
    %s1559 = sor.u32 256, 56
    %1560 = vbcast.lane.b32.xlu0 %v1545, %s1559
    %v1561 = vpop.permute.xlu0 %1560
    %v1562 = vlaneseq
    %v1563 = vshrl.u32 %v1562, 7
    %v1564 = vsub.s32 3, %v1563
    %v1565 = vrot.slane %v679, %v1564
    %s1567 = sor.u32 256, 32
    %1568 = vbcast.lane.b32.xlu0 %v1565, %s1567
    %v1569 = vpop.permute.xlu0 %1568
    %s1571 = sor.u32 256, 40
    %1572 = vbcast.lane.b32.xlu0 %v1565, %s1571
    %v1573 = vpop.permute.xlu0 %1572
    %s1575 = sor.u32 256, 48
    %1576 = vbcast.lane.b32.xlu0 %v1565, %s1575
    %v1577 = vpop.permute.xlu0 %1576
    %s1579 = sor.u32 256, 56
    %1580 = vbcast.lane.b32.xlu0 %v1565, %s1579
    %v1581 = vpop.permute.xlu0 %1580
    %v1582 = vlaneseq
    %v1583 = vshrl.u32 %v1582, 7
    %v1584 = vsub.s32 4, %v1583
    %v1585 = vrot.slane %v679, %v1584
    %s1587 = sor.u32 256, 32
    %1588 = vbcast.lane.b32.xlu0 %v1585, %s1587
    %v1589 = vpop.permute.xlu0 %1588
    %s1591 = sor.u32 256, 40
    %1592 = vbcast.lane.b32.xlu0 %v1585, %s1591
    %v1593 = vpop.permute.xlu0 %1592
    %s1595 = sor.u32 256, 48
    %1596 = vbcast.lane.b32.xlu0 %v1585, %s1595
    %v1597 = vpop.permute.xlu0 %1596
    %s1599 = sor.u32 256, 56
    %1600 = vbcast.lane.b32.xlu0 %v1585, %s1599
    %v1601 = vpop.permute.xlu0 %1600
    %v1602 = vlaneseq
    %v1603 = vshrl.u32 %v1602, 7
    %v1604 = vsub.s32 5, %v1603
    %v1605 = vrot.slane %v679, %v1604
    %s1607 = sor.u32 256, 32
    %1608 = vbcast.lane.b32.xlu0 %v1605, %s1607
    %v1609 = vpop.permute.xlu0 %1608
    %s1611 = sor.u32 256, 40
    %1612 = vbcast.lane.b32.xlu0 %v1605, %s1611
    %v1613 = vpop.permute.xlu0 %1612
    %s1615 = sor.u32 256, 48
    %1616 = vbcast.lane.b32.xlu0 %v1605, %s1615
    %v1617 = vpop.permute.xlu0 %1616
    %s1619 = sor.u32 256, 56
    %1620 = vbcast.lane.b32.xlu0 %v1605, %s1619
    %v1621 = vpop.permute.xlu0 %1620
    %v1622 = vlaneseq
    %v1623 = vshrl.u32 %v1622, 7
    %v1624 = vsub.s32 6, %v1623
    %v1625 = vrot.slane %v679, %v1624
    %s1627 = sor.u32 256, 32
    %1628 = vbcast.lane.b32.xlu0 %v1625, %s1627
    %v1629 = vpop.permute.xlu0 %1628
    %s1631 = sor.u32 256, 40
    %1632 = vbcast.lane.b32.xlu0 %v1625, %s1631
    %v1633 = vpop.permute.xlu0 %1632
    %s1635 = sor.u32 256, 48
    %1636 = vbcast.lane.b32.xlu0 %v1625, %s1635
    %v1637 = vpop.permute.xlu0 %1636
    %s1639 = sor.u32 256, 56
    %1640 = vbcast.lane.b32.xlu0 %v1625, %s1639
    %v1641 = vpop.permute.xlu0 %1640
    %v1642 = vlaneseq
    %v1643 = vshrl.u32 %v1642, 7
    %v1644 = vsub.s32 7, %v1643
    %v1645 = vrot.slane %v679, %v1644
    %s1647 = sor.u32 256, 32
    %1648 = vbcast.lane.b32.xlu0 %v1645, %s1647
    %v1649 = vpop.permute.xlu0 %1648
    %s1651 = sor.u32 256, 40
    %1652 = vbcast.lane.b32.xlu0 %v1645, %s1651
    %v1653 = vpop.permute.xlu0 %1652
    %s1655 = sor.u32 256, 48
    %1656 = vbcast.lane.b32.xlu0 %v1645, %s1655
    %v1657 = vpop.permute.xlu0 %1656
    %s1659 = sor.u32 256, 56
    %1660 = vbcast.lane.b32.xlu0 %v1645, %s1659
    %v1661 = vpop.permute.xlu0 %1660
    %v1662 = vlaneseq
    %v1663 = vshrl.u32 %v1662, 7
    %v1664 = vsub.s32 0, %v1663
    %v1665 = vrot.slane %v680, %v1664
    %s1667 = sor.u32 256, 32
    %1668 = vbcast.lane.b32.xlu0 %v1665, %s1667
    %v1669 = vpop.permute.xlu0 %1668
    %s1671 = sor.u32 256, 40
    %1672 = vbcast.lane.b32.xlu0 %v1665, %s1671
    %v1673 = vpop.permute.xlu0 %1672
    %s1675 = sor.u32 256, 48
    %1676 = vbcast.lane.b32.xlu0 %v1665, %s1675
    %v1677 = vpop.permute.xlu0 %1676
    %s1679 = sor.u32 256, 56
    %1680 = vbcast.lane.b32.xlu0 %v1665, %s1679
    %v1681 = vpop.permute.xlu0 %1680
    %v1682 = vlaneseq
    %v1683 = vshrl.u32 %v1682, 7
    %v1684 = vsub.s32 1, %v1683
    %v1685 = vrot.slane %v680, %v1684
    %s1687 = sor.u32 256, 32
    %1688 = vbcast.lane.b32.xlu0 %v1685, %s1687
    %v1689 = vpop.permute.xlu0 %1688
    %s1691 = sor.u32 256, 40
    %1692 = vbcast.lane.b32.xlu0 %v1685, %s1691
    %v1693 = vpop.permute.xlu0 %1692
    %s1695 = sor.u32 256, 48
    %1696 = vbcast.lane.b32.xlu0 %v1685, %s1695
    %v1697 = vpop.permute.xlu0 %1696
    %s1699 = sor.u32 256, 56
    %1700 = vbcast.lane.b32.xlu0 %v1685, %s1699
    %v1701 = vpop.permute.xlu0 %1700
    %v1702 = vlaneseq
    %v1703 = vshrl.u32 %v1702, 7
    %v1704 = vsub.s32 2, %v1703
    %v1705 = vrot.slane %v680, %v1704
    %s1707 = sor.u32 256, 32
    %1708 = vbcast.lane.b32.xlu0 %v1705, %s1707
    %v1709 = vpop.permute.xlu0 %1708
    %s1711 = sor.u32 256, 40
    %1712 = vbcast.lane.b32.xlu0 %v1705, %s1711
    %v1713 = vpop.permute.xlu0 %1712
    %s1715 = sor.u32 256, 48
    %1716 = vbcast.lane.b32.xlu0 %v1705, %s1715
    %v1717 = vpop.permute.xlu0 %1716
    %s1719 = sor.u32 256, 56
    %1720 = vbcast.lane.b32.xlu0 %v1705, %s1719
    %v1721 = vpop.permute.xlu0 %1720
    %v1722 = vlaneseq
    %v1723 = vshrl.u32 %v1722, 7
    %v1724 = vsub.s32 3, %v1723
    %v1725 = vrot.slane %v680, %v1724
    %s1727 = sor.u32 256, 32
    %1728 = vbcast.lane.b32.xlu0 %v1725, %s1727
    %v1729 = vpop.permute.xlu0 %1728
    %s1731 = sor.u32 256, 40
    %1732 = vbcast.lane.b32.xlu0 %v1725, %s1731
    %v1733 = vpop.permute.xlu0 %1732
    %s1735 = sor.u32 256, 48
    %1736 = vbcast.lane.b32.xlu0 %v1725, %s1735
    %v1737 = vpop.permute.xlu0 %1736
    %s1739 = sor.u32 256, 56
    %1740 = vbcast.lane.b32.xlu0 %v1725, %s1739
    %v1741 = vpop.permute.xlu0 %1740
    %v1742 = vlaneseq
    %v1743 = vshrl.u32 %v1742, 7
    %v1744 = vsub.s32 4, %v1743
    %v1745 = vrot.slane %v680, %v1744
    %s1747 = sor.u32 256, 32
    %1748 = vbcast.lane.b32.xlu0 %v1745, %s1747
    %v1749 = vpop.permute.xlu0 %1748
    %s1751 = sor.u32 256, 40
    %1752 = vbcast.lane.b32.xlu0 %v1745, %s1751
    %v1753 = vpop.permute.xlu0 %1752
    %s1755 = sor.u32 256, 48
    %1756 = vbcast.lane.b32.xlu0 %v1745, %s1755
    %v1757 = vpop.permute.xlu0 %1756
    %s1759 = sor.u32 256, 56
    %1760 = vbcast.lane.b32.xlu0 %v1745, %s1759
    %v1761 = vpop.permute.xlu0 %1760
    %v1762 = vlaneseq
    %v1763 = vshrl.u32 %v1762, 7
    %v1764 = vsub.s32 5, %v1763
    %v1765 = vrot.slane %v680, %v1764
    %s1767 = sor.u32 256, 32
    %1768 = vbcast.lane.b32.xlu0 %v1765, %s1767
    %v1769 = vpop.permute.xlu0 %1768
    %s1771 = sor.u32 256, 40
    %1772 = vbcast.lane.b32.xlu0 %v1765, %s1771
    %v1773 = vpop.permute.xlu0 %1772
    %s1775 = sor.u32 256, 48
    %1776 = vbcast.lane.b32.xlu0 %v1765, %s1775
    %v1777 = vpop.permute.xlu0 %1776
    %s1779 = sor.u32 256, 56
    %1780 = vbcast.lane.b32.xlu0 %v1765, %s1779
    %v1781 = vpop.permute.xlu0 %1780
    %v1782 = vlaneseq
    %v1783 = vshrl.u32 %v1782, 7
    %v1784 = vsub.s32 6, %v1783
    %v1785 = vrot.slane %v680, %v1784
    %s1787 = sor.u32 256, 32
    %1788 = vbcast.lane.b32.xlu0 %v1785, %s1787
    %v1789 = vpop.permute.xlu0 %1788
    %s1791 = sor.u32 256, 40
    %1792 = vbcast.lane.b32.xlu0 %v1785, %s1791
    %v1793 = vpop.permute.xlu0 %1792
    %s1795 = sor.u32 256, 48
    %1796 = vbcast.lane.b32.xlu0 %v1785, %s1795
    %v1797 = vpop.permute.xlu0 %1796
    %s1799 = sor.u32 256, 56
    %1800 = vbcast.lane.b32.xlu0 %v1785, %s1799
    %v1801 = vpop.permute.xlu0 %1800
    %v1802 = vlaneseq
    %v1803 = vshrl.u32 %v1802, 7
    %v1804 = vsub.s32 7, %v1803
    %v1805 = vrot.slane %v680, %v1804
    %s1807 = sor.u32 256, 32
    %1808 = vbcast.lane.b32.xlu0 %v1805, %s1807
    %v1809 = vpop.permute.xlu0 %1808
    %s1811 = sor.u32 256, 40
    %1812 = vbcast.lane.b32.xlu0 %v1805, %s1811
    %v1813 = vpop.permute.xlu0 %1812
    %s1815 = sor.u32 256, 48
    %1816 = vbcast.lane.b32.xlu0 %v1805, %s1815
    %v1817 = vpop.permute.xlu0 %1816
    %s1819 = sor.u32 256, 56
    %1820 = vbcast.lane.b32.xlu0 %v1805, %s1819
    %v1821 = vpop.permute.xlu0 %1820
    %v1822 = vlaneseq
    %v1823 = vshrl.u32 %v1822, 7
    %v1824 = vsub.s32 0, %v1823
    %v1825 = vrot.slane %v681, %v1824
    %s1827 = sor.u32 256, 32
    %1828 = vbcast.lane.b32.xlu0 %v1825, %s1827
    %v1829 = vpop.permute.xlu0 %1828
    %s1831 = sor.u32 256, 40
    %1832 = vbcast.lane.b32.xlu0 %v1825, %s1831
    %v1833 = vpop.permute.xlu0 %1832
    %s1835 = sor.u32 256, 48
    %1836 = vbcast.lane.b32.xlu0 %v1825, %s1835
    %v1837 = vpop.permute.xlu0 %1836
    %s1839 = sor.u32 256, 56
    %1840 = vbcast.lane.b32.xlu0 %v1825, %s1839
    %v1841 = vpop.permute.xlu0 %1840
    %v1842 = vlaneseq
    %v1843 = vshrl.u32 %v1842, 7
    %v1844 = vsub.s32 1, %v1843
    %v1845 = vrot.slane %v681, %v1844
    %s1847 = sor.u32 256, 32
    %1848 = vbcast.lane.b32.xlu0 %v1845, %s1847
    %v1849 = vpop.permute.xlu0 %1848
    %s1851 = sor.u32 256, 40
    %1852 = vbcast.lane.b32.xlu0 %v1845, %s1851
    %v1853 = vpop.permute.xlu0 %1852
    %s1855 = sor.u32 256, 48
    %1856 = vbcast.lane.b32.xlu0 %v1845, %s1855
    %v1857 = vpop.permute.xlu0 %1856
    %s1859 = sor.u32 256, 56
    %1860 = vbcast.lane.b32.xlu0 %v1845, %s1859
    %v1861 = vpop.permute.xlu0 %1860
    %v1862 = vlaneseq
    %v1863 = vshrl.u32 %v1862, 7
    %v1864 = vsub.s32 2, %v1863
    %v1865 = vrot.slane %v681, %v1864
    %s1867 = sor.u32 256, 32
    %1868 = vbcast.lane.b32.xlu0 %v1865, %s1867
    %v1869 = vpop.permute.xlu0 %1868
    %s1871 = sor.u32 256, 40
    %1872 = vbcast.lane.b32.xlu0 %v1865, %s1871
    %v1873 = vpop.permute.xlu0 %1872
    %s1875 = sor.u32 256, 48
    %1876 = vbcast.lane.b32.xlu0 %v1865, %s1875
    %v1877 = vpop.permute.xlu0 %1876
    %s1879 = sor.u32 256, 56
    %1880 = vbcast.lane.b32.xlu0 %v1865, %s1879
    %v1881 = vpop.permute.xlu0 %1880
    %v1882 = vlaneseq
    %v1883 = vshrl.u32 %v1882, 7
    %v1884 = vsub.s32 3, %v1883
    %v1885 = vrot.slane %v681, %v1884
    %s1887 = sor.u32 256, 32
    %1888 = vbcast.lane.b32.xlu0 %v1885, %s1887
    %v1889 = vpop.permute.xlu0 %1888
    %s1891 = sor.u32 256, 40
    %1892 = vbcast.lane.b32.xlu0 %v1885, %s1891
    %v1893 = vpop.permute.xlu0 %1892
    %s1895 = sor.u32 256, 48
    %1896 = vbcast.lane.b32.xlu0 %v1885, %s1895
    %v1897 = vpop.permute.xlu0 %1896
    %s1899 = sor.u32 256, 56
    %1900 = vbcast.lane.b32.xlu0 %v1885, %s1899
    %v1901 = vpop.permute.xlu0 %1900
    %v1902 = vlaneseq
    %v1903 = vshrl.u32 %v1902, 7
    %v1904 = vsub.s32 4, %v1903
    %v1905 = vrot.slane %v681, %v1904
    %s1907 = sor.u32 256, 32
    %1908 = vbcast.lane.b32.xlu0 %v1905, %s1907
    %v1909 = vpop.permute.xlu0 %1908
    %s1911 = sor.u32 256, 40
    %1912 = vbcast.lane.b32.xlu0 %v1905, %s1911
    %v1913 = vpop.permute.xlu0 %1912
    %s1915 = sor.u32 256, 48
    %1916 = vbcast.lane.b32.xlu0 %v1905, %s1915
    %v1917 = vpop.permute.xlu0 %1916
    %s1919 = sor.u32 256, 56
    %1920 = vbcast.lane.b32.xlu0 %v1905, %s1919
    %v1921 = vpop.permute.xlu0 %1920
    %v1922 = vlaneseq
    %v1923 = vshrl.u32 %v1922, 7
    %v1924 = vsub.s32 5, %v1923
    %v1925 = vrot.slane %v681, %v1924
    %s1927 = sor.u32 256, 32
    %1928 = vbcast.lane.b32.xlu0 %v1925, %s1927
    %v1929 = vpop.permute.xlu0 %1928
    %s1931 = sor.u32 256, 40
    %1932 = vbcast.lane.b32.xlu0 %v1925, %s1931
    %v1933 = vpop.permute.xlu0 %1932
    %s1935 = sor.u32 256, 48
    %1936 = vbcast.lane.b32.xlu0 %v1925, %s1935
    %v1937 = vpop.permute.xlu0 %1936
    %s1939 = sor.u32 256, 56
    %1940 = vbcast.lane.b32.xlu0 %v1925, %s1939
    %v1941 = vpop.permute.xlu0 %1940
    %v1942 = vlaneseq
    %v1943 = vshrl.u32 %v1942, 7
    %v1944 = vsub.s32 6, %v1943
    %v1945 = vrot.slane %v681, %v1944
    %s1947 = sor.u32 256, 32
    %1948 = vbcast.lane.b32.xlu0 %v1945, %s1947
    %v1949 = vpop.permute.xlu0 %1948
    %s1951 = sor.u32 256, 40
    %1952 = vbcast.lane.b32.xlu0 %v1945, %s1951
    %v1953 = vpop.permute.xlu0 %1952
    %s1955 = sor.u32 256, 48
    %1956 = vbcast.lane.b32.xlu0 %v1945, %s1955
    %v1957 = vpop.permute.xlu0 %1956
    %s1959 = sor.u32 256, 56
    %1960 = vbcast.lane.b32.xlu0 %v1945, %s1959
    %v1961 = vpop.permute.xlu0 %1960
    %v1962 = vlaneseq
    %v1963 = vshrl.u32 %v1962, 7
    %v1964 = vsub.s32 7, %v1963
    %v1965 = vrot.slane %v681, %v1964
    %s1967 = sor.u32 256, 32
    %1968 = vbcast.lane.b32.xlu0 %v1965, %s1967
    %v1969 = vpop.permute.xlu0 %1968
    %s1971 = sor.u32 256, 40
    %1972 = vbcast.lane.b32.xlu0 %v1965, %s1971
    %v1973 = vpop.permute.xlu0 %1972
    %s1975 = sor.u32 256, 48
    %1976 = vbcast.lane.b32.xlu0 %v1965, %s1975
    %v1977 = vpop.permute.xlu0 %1976
    %s1979 = sor.u32 256, 56
    %1980 = vbcast.lane.b32.xlu0 %v1965, %s1979
    %v1981 = vpop.permute.xlu0 %1980
    %v1982 = vlaneseq
    %v1983 = vshrl.u32 %v1982, 7
    %v1984 = vsub.s32 0, %v1983
    %v1985 = vrot.slane %v682, %v1984
    %s1987 = sor.u32 256, 32
    %1988 = vbcast.lane.b32.xlu0 %v1985, %s1987
    %v1989 = vpop.permute.xlu0 %1988
    %s1991 = sor.u32 256, 40
    %1992 = vbcast.lane.b32.xlu0 %v1985, %s1991
    %v1993 = vpop.permute.xlu0 %1992
    %s1995 = sor.u32 256, 48
    %1996 = vbcast.lane.b32.xlu0 %v1985, %s1995
    %v1997 = vpop.permute.xlu0 %1996
    %s1999 = sor.u32 256, 56
    %2000 = vbcast.lane.b32.xlu0 %v1985, %s1999
    %v2001 = vpop.permute.xlu0 %2000
    %v2002 = vlaneseq
    %v2003 = vshrl.u32 %v2002, 7
    %v2004 = vsub.s32 1, %v2003
    %v2005 = vrot.slane %v682, %v2004
    %s2007 = sor.u32 256, 32
    %2008 = vbcast.lane.b32.xlu0 %v2005, %s2007
    %v2009 = vpop.permute.xlu0 %2008
    %s2011 = sor.u32 256, 40
    %2012 = vbcast.lane.b32.xlu0 %v2005, %s2011
    %v2013 = vpop.permute.xlu0 %2012
    %s2015 = sor.u32 256, 48
    %2016 = vbcast.lane.b32.xlu0 %v2005, %s2015
    %v2017 = vpop.permute.xlu0 %2016
    %s2019 = sor.u32 256, 56
    %2020 = vbcast.lane.b32.xlu0 %v2005, %s2019
    %v2021 = vpop.permute.xlu0 %2020
    %v2022 = vlaneseq
    %v2023 = vshrl.u32 %v2022, 7
    %v2024 = vsub.s32 2, %v2023
    %v2025 = vrot.slane %v682, %v2024
    %s2027 = sor.u32 256, 32
    %2028 = vbcast.lane.b32.xlu0 %v2025, %s2027
    %v2029 = vpop.permute.xlu0 %2028
    %s2031 = sor.u32 256, 40
    %2032 = vbcast.lane.b32.xlu0 %v2025, %s2031
    %v2033 = vpop.permute.xlu0 %2032
    %s2035 = sor.u32 256, 48
    %2036 = vbcast.lane.b32.xlu0 %v2025, %s2035
    %v2037 = vpop.permute.xlu0 %2036
    %s2039 = sor.u32 256, 56
    %2040 = vbcast.lane.b32.xlu0 %v2025, %s2039
    %v2041 = vpop.permute.xlu0 %2040
    %v2042 = vlaneseq
    %v2043 = vshrl.u32 %v2042, 7
    %v2044 = vsub.s32 3, %v2043
    %v2045 = vrot.slane %v682, %v2044
    %s2047 = sor.u32 256, 32
    %2048 = vbcast.lane.b32.xlu0 %v2045, %s2047
    %v2049 = vpop.permute.xlu0 %2048
    %s2051 = sor.u32 256, 40
    %2052 = vbcast.lane.b32.xlu0 %v2045, %s2051
    %v2053 = vpop.permute.xlu0 %2052
    %s2055 = sor.u32 256, 48
    %2056 = vbcast.lane.b32.xlu0 %v2045, %s2055
    %v2057 = vpop.permute.xlu0 %2056
    %s2059 = sor.u32 256, 56
    %2060 = vbcast.lane.b32.xlu0 %v2045, %s2059
    %v2061 = vpop.permute.xlu0 %2060
    %v2062 = vlaneseq
    %v2063 = vshrl.u32 %v2062, 7
    %v2064 = vsub.s32 4, %v2063
    %v2065 = vrot.slane %v682, %v2064
    %s2067 = sor.u32 256, 32
    %2068 = vbcast.lane.b32.xlu0 %v2065, %s2067
    %v2069 = vpop.permute.xlu0 %2068
    %s2071 = sor.u32 256, 40
    %2072 = vbcast.lane.b32.xlu0 %v2065, %s2071
    %v2073 = vpop.permute.xlu0 %2072
    %s2075 = sor.u32 256, 48
    %2076 = vbcast.lane.b32.xlu0 %v2065, %s2075
    %v2077 = vpop.permute.xlu0 %2076
    %s2079 = sor.u32 256, 56
    %2080 = vbcast.lane.b32.xlu0 %v2065, %s2079
    %v2081 = vpop.permute.xlu0 %2080
    %v2082 = vlaneseq
    %v2083 = vshrl.u32 %v2082, 7
    %v2084 = vsub.s32 5, %v2083
    %v2085 = vrot.slane %v682, %v2084
    %s2087 = sor.u32 256, 32
    %2088 = vbcast.lane.b32.xlu0 %v2085, %s2087
    %v2089 = vpop.permute.xlu0 %2088
    %s2091 = sor.u32 256, 40
    %2092 = vbcast.lane.b32.xlu0 %v2085, %s2091
    %v2093 = vpop.permute.xlu0 %2092
    %s2095 = sor.u32 256, 48
    %2096 = vbcast.lane.b32.xlu0 %v2085, %s2095
    %v2097 = vpop.permute.xlu0 %2096
    %s2099 = sor.u32 256, 56
    %2100 = vbcast.lane.b32.xlu0 %v2085, %s2099
    %v2101 = vpop.permute.xlu0 %2100
    %v2102 = vlaneseq
    %v2103 = vshrl.u32 %v2102, 7
    %v2104 = vsub.s32 6, %v2103
    %v2105 = vrot.slane %v682, %v2104
    %s2107 = sor.u32 256, 32
    %2108 = vbcast.lane.b32.xlu0 %v2105, %s2107
    %v2109 = vpop.permute.xlu0 %2108
    %s2111 = sor.u32 256, 40
    %2112 = vbcast.lane.b32.xlu0 %v2105, %s2111
    %v2113 = vpop.permute.xlu0 %2112
    %s2115 = sor.u32 256, 48
    %2116 = vbcast.lane.b32.xlu0 %v2105, %s2115
    %v2117 = vpop.permute.xlu0 %2116
    %s2119 = sor.u32 256, 56
    %2120 = vbcast.lane.b32.xlu0 %v2105, %s2119
    %v2121 = vpop.permute.xlu0 %2120
    %v2122 = vlaneseq
    %v2123 = vshrl.u32 %v2122, 7
    %v2124 = vsub.s32 7, %v2123
    %v2125 = vrot.slane %v682, %v2124
    %s2127 = sor.u32 256, 32
    %2128 = vbcast.lane.b32.xlu0 %v2125, %s2127
    %v2129 = vpop.permute.xlu0 %2128
    %s2131 = sor.u32 256, 40
    %2132 = vbcast.lane.b32.xlu0 %v2125, %s2131
    %v2133 = vpop.permute.xlu0 %2132
    %s2135 = sor.u32 256, 48
    %2136 = vbcast.lane.b32.xlu0 %v2125, %s2135
    %v2137 = vpop.permute.xlu0 %2136
    %s2139 = sor.u32 256, 56
    %2140 = vbcast.lane.b32.xlu0 %v2125, %s2139
    %v2141 = vpop.permute.xlu0 %2140
    %v2142 = vsel %vm1374, %v1509, 0.0
    %v2143 = vsel %vm1375, %v1513, 0.0
    %v2144 = vsel %vm1376, %v1517, 0.0
    %v2145 = vsel %vm1377, %v1521, 0.0
    %v2146 = vsel %vm1378, %v1529, 0.0
    %v2147 = vsel %vm1379, %v1533, 0.0
    %v2148 = vsel %vm1380, %v1537, 0.0
    %v2149 = vsel %vm1381, %v1541, 0.0
    %v2150 = vsel %vm1382, %v1549, 0.0
    %v2151 = vsel %vm1383, %v1553, 0.0
    %v2152 = vsel %vm1384, %v1557, 0.0
    %v2153 = vsel %vm1385, %v1561, 0.0
    %v2154 = vsel %vm1386, %v1569, 0.0
    %v2155 = vsel %vm1387, %v1573, 0.0
    %v2156 = vsel %vm1388, %v1577, 0.0
    %v2157 = vsel %vm1389, %v1581, 0.0
    %v2158 = vsel %vm1390, %v1589, 0.0
    %v2159 = vsel %vm1391, %v1593, 0.0
    %v2160 = vsel %vm1392, %v1597, 0.0
    %v2161 = vsel %vm1393, %v1601, 0.0
    %v2162 = vsel %vm1394, %v1609, 0.0
    %v2163 = vsel %vm1395, %v1613, 0.0
    %v2164 = vsel %vm1396, %v1617, 0.0
    %v2165 = vsel %vm1397, %v1621, 0.0
    %v2166 = vsel %vm1398, %v1629, 0.0
    %v2167 = vsel %vm1399, %v1633, 0.0
    %v2168 = vsel %vm1400, %v1637, 0.0
    %v2169 = vsel %vm1401, %v1641, 0.0
    %v2170 = vsel %vm1402, %v1649, 0.0
    %v2171 = vsel %vm1403, %v1653, 0.0
    %v2172 = vsel %vm1404, %v1657, 0.0
    %v2173 = vsel %vm1405, %v1661, 0.0
    %v2174 = vsel %vm1406, %v1669, 0.0
    %v2175 = vsel %vm1407, %v1673, 0.0
    %v2176 = vsel %vm1408, %v1677, 0.0
    %v2177 = vsel %vm1409, %v1681, 0.0
    %v2178 = vsel %vm1410, %v1689, 0.0
    %v2179 = vsel %vm1411, %v1693, 0.0
    %v2180 = vsel %vm1412, %v1697, 0.0
    %v2181 = vsel %vm1413, %v1701, 0.0
    %v2182 = vsel %vm1414, %v1709, 0.0
    %v2183 = vsel %vm1415, %v1713, 0.0
    %v2184 = vsel %vm1416, %v1717, 0.0
    %v2185 = vsel %vm1417, %v1721, 0.0
    %v2186 = vsel %vm1418, %v1729, 0.0
    %v2187 = vsel %vm1419, %v1733, 0.0
    %v2188 = vsel %vm1420, %v1737, 0.0
    %v2189 = vsel %vm1421, %v1741, 0.0
    %v2190 = vsel %vm1422, %v1749, 0.0
    %v2191 = vsel %vm1423, %v1753, 0.0
    %v2192 = vsel %vm1424, %v1757, 0.0
    %v2193 = vsel %vm1425, %v1761, 0.0
    %v2194 = vsel %vm1426, %v1769, 0.0
    %v2195 = vsel %vm1427, %v1773, 0.0
    %v2196 = vsel %vm1428, %v1777, 0.0
    %v2197 = vsel %vm1429, %v1781, 0.0
    %v2198 = vsel %vm1430, %v1789, 0.0
    %v2199 = vsel %vm1431, %v1793, 0.0
    %v2200 = vsel %vm1432, %v1797, 0.0
    %v2201 = vsel %vm1433, %v1801, 0.0
    %v2202 = vsel %vm1434, %v1809, 0.0
    %v2203 = vsel %vm1435, %v1813, 0.0
    %v2204 = vsel %vm1436, %v1817, 0.0
    %v2205 = vsel %vm1437, %v1821, 0.0
    %v2206 = vsel %vm1438, %v1829, 0.0
    %v2207 = vsel %vm1439, %v1833, 0.0
    %v2208 = vsel %vm1440, %v1837, 0.0
    %v2209 = vsel %vm1441, %v1841, 0.0
    %v2210 = vsel %vm1442, %v1849, 0.0
    %v2211 = vsel %vm1443, %v1853, 0.0
    %v2212 = vsel %vm1444, %v1857, 0.0
    %v2213 = vsel %vm1445, %v1861, 0.0
    %v2214 = vsel %vm1446, %v1869, 0.0
    %v2215 = vsel %vm1447, %v1873, 0.0
    %v2216 = vsel %vm1448, %v1877, 0.0
    %v2217 = vsel %vm1449, %v1881, 0.0
    %v2218 = vsel %vm1450, %v1889, 0.0
    %v2219 = vsel %vm1451, %v1893, 0.0
    %v2220 = vsel %vm1452, %v1897, 0.0
    %v2221 = vsel %vm1453, %v1901, 0.0
    %v2222 = vsel %vm1454, %v1909, 0.0
    %v2223 = vsel %vm1455, %v1913, 0.0
    %v2224 = vsel %vm1456, %v1917, 0.0
    %v2225 = vsel %vm1457, %v1921, 0.0
    %v2226 = vsel %vm1458, %v1929, 0.0
    %v2227 = vsel %vm1459, %v1933, 0.0
    %v2228 = vsel %vm1460, %v1937, 0.0
    %v2229 = vsel %vm1461, %v1941, 0.0
    %v2230 = vsel %vm1462, %v1949, 0.0
    %v2231 = vsel %vm1463, %v1953, 0.0
    %v2232 = vsel %vm1464, %v1957, 0.0
    %v2233 = vsel %vm1465, %v1961, 0.0
    %v2234 = vsel %vm1466, %v1969, 0.0
    %v2235 = vsel %vm1467, %v1973, 0.0
    %v2236 = vsel %vm1468, %v1977, 0.0
    %v2237 = vsel %vm1469, %v1981, 0.0
    %v2238 = vsel %vm1470, %v1989, 0.0
    %v2239 = vsel %vm1471, %v1993, 0.0
    %v2240 = vsel %vm1472, %v1997, 0.0
    %v2241 = vsel %vm1473, %v2001, 0.0
    %v2242 = vsel %vm1474, %v2009, 0.0
    %v2243 = vsel %vm1475, %v2013, 0.0
    %v2244 = vsel %vm1476, %v2017, 0.0
    %v2245 = vsel %vm1477, %v2021, 0.0
    %v2246 = vsel %vm1478, %v2029, 0.0
    %v2247 = vsel %vm1479, %v2033, 0.0
    %v2248 = vsel %vm1480, %v2037, 0.0
    %v2249 = vsel %vm1481, %v2041, 0.0
    %v2250 = vsel %vm1482, %v2049, 0.0
    %v2251 = vsel %vm1483, %v2053, 0.0
    %v2252 = vsel %vm1484, %v2057, 0.0
    %v2253 = vsel %vm1485, %v2061, 0.0
    %v2254 = vsel %vm1486, %v2069, 0.0
    %v2255 = vsel %vm1487, %v2073, 0.0
    %v2256 = vsel %vm1488, %v2077, 0.0
    %v2257 = vsel %vm1489, %v2081, 0.0
    %v2258 = vsel %vm1490, %v2089, 0.0
    %v2259 = vsel %vm1491, %v2093, 0.0
    %v2260 = vsel %vm1492, %v2097, 0.0
    %v2261 = vsel %vm1493, %v2101, 0.0
    %v2262 = vsel %vm1494, %v2109, 0.0
    %v2263 = vsel %vm1495, %v2113, 0.0
    %v2264 = vsel %vm1496, %v2117, 0.0
    %v2265 = vsel %vm1497, %v2121, 0.0
    %v2266 = vsel %vm1498, %v2129, 0.0
    %v2267 = vsel %vm1499, %v2133, 0.0
    %v2268 = vsel %vm1500, %v2137, 0.0
    %v2269 = vsel %vm1501, %v2141, 0.0
    %v2270 = vadd.f32 %v2142, %v2143
    %v2271 = vadd.f32 %v2270, %v2144
    %v2272 = vadd.f32 %v2271, %v2145
    %v2273 = vrot.slane %v2272, 4
    %v2274 = vadd.f32 %v2272, %v2273
    %v2275 = vrot.slane %v2274, 2
    %v2276 = vadd.f32 %v2274, %v2275
    %v2277 = vrot.slane %v2276, 1
    %v2278 = vadd.f32 %v2276, %v2277
    %v2279 = vadd.f32 %v2146, %v2147
    %v2280 = vadd.f32 %v2279, %v2148
    %v2281 = vadd.f32 %v2280, %v2149
    %v2282 = vrot.slane %v2281, 4
    %v2283 = vadd.f32 %v2281, %v2282
    %v2284 = vrot.slane %v2283, 2
    %v2285 = vadd.f32 %v2283, %v2284
    %v2286 = vrot.slane %v2285, 1
    %v2287 = vadd.f32 %v2285, %v2286
    %v2288 = vadd.f32 %v2150, %v2151
    %v2289 = vadd.f32 %v2288, %v2152
    %v2290 = vadd.f32 %v2289, %v2153
    %v2291 = vrot.slane %v2290, 4
    %v2292 = vadd.f32 %v2290, %v2291
    %v2293 = vrot.slane %v2292, 2
    %v2294 = vadd.f32 %v2292, %v2293
    %v2295 = vrot.slane %v2294, 1
    %v2296 = vadd.f32 %v2294, %v2295
    %v2297 = vadd.f32 %v2154, %v2155
    %v2298 = vadd.f32 %v2297, %v2156
    %v2299 = vadd.f32 %v2298, %v2157
    %v2300 = vrot.slane %v2299, 4
    %v2301 = vadd.f32 %v2299, %v2300
    %v2302 = vrot.slane %v2301, 2
    %v2303 = vadd.f32 %v2301, %v2302
    %v2304 = vrot.slane %v2303, 1
    %v2305 = vadd.f32 %v2303, %v2304
    %v2306 = vadd.f32 %v2158, %v2159
    %v2307 = vadd.f32 %v2306, %v2160
    %v2308 = vadd.f32 %v2307, %v2161
    %v2309 = vrot.slane %v2308, 4
    %v2310 = vadd.f32 %v2308, %v2309
    %v2311 = vrot.slane %v2310, 2
    %v2312 = vadd.f32 %v2310, %v2311
    %v2313 = vrot.slane %v2312, 1
    %v2314 = vadd.f32 %v2312, %v2313
    %v2315 = vadd.f32 %v2162, %v2163
    %v2316 = vadd.f32 %v2315, %v2164
    %v2317 = vadd.f32 %v2316, %v2165
    %v2318 = vrot.slane %v2317, 4
    %v2319 = vadd.f32 %v2317, %v2318
    %v2320 = vrot.slane %v2319, 2
    %v2321 = vadd.f32 %v2319, %v2320
    %v2322 = vrot.slane %v2321, 1
    %v2323 = vadd.f32 %v2321, %v2322
    %v2324 = vadd.f32 %v2166, %v2167
    %v2325 = vadd.f32 %v2324, %v2168
    %v2326 = vadd.f32 %v2325, %v2169
    %v2327 = vrot.slane %v2326, 4
    %v2328 = vadd.f32 %v2326, %v2327
    %v2329 = vrot.slane %v2328, 2
    %v2330 = vadd.f32 %v2328, %v2329
    %v2331 = vrot.slane %v2330, 1
    %v2332 = vadd.f32 %v2330, %v2331
    %v2333 = vadd.f32 %v2170, %v2171
    %v2334 = vadd.f32 %v2333, %v2172
    %v2335 = vadd.f32 %v2334, %v2173
    %v2336 = vrot.slane %v2335, 4
    %v2337 = vadd.f32 %v2335, %v2336
    %v2338 = vrot.slane %v2337, 2
    %v2339 = vadd.f32 %v2337, %v2338
    %v2340 = vrot.slane %v2339, 1
    %v2341 = vadd.f32 %v2339, %v2340
    %v2342 = vadd.f32 %v2174, %v2175
    %v2343 = vadd.f32 %v2342, %v2176
    %v2344 = vadd.f32 %v2343, %v2177
    %v2345 = vrot.slane %v2344, 4
    %v2346 = vadd.f32 %v2344, %v2345
    %v2347 = vrot.slane %v2346, 2
    %v2348 = vadd.f32 %v2346, %v2347
    %v2349 = vrot.slane %v2348, 1
    %v2350 = vadd.f32 %v2348, %v2349
    %v2351 = vadd.f32 %v2178, %v2179
    %v2352 = vadd.f32 %v2351, %v2180
    %v2353 = vadd.f32 %v2352, %v2181
    %v2354 = vrot.slane %v2353, 4
    %v2355 = vadd.f32 %v2353, %v2354
    %v2356 = vrot.slane %v2355, 2
    %v2357 = vadd.f32 %v2355, %v2356
    %v2358 = vrot.slane %v2357, 1
    %v2359 = vadd.f32 %v2357, %v2358
    %v2360 = vadd.f32 %v2182, %v2183
    %v2361 = vadd.f32 %v2360, %v2184
    %v2362 = vadd.f32 %v2361, %v2185
    %v2363 = vrot.slane %v2362, 4
    %v2364 = vadd.f32 %v2362, %v2363
    %v2365 = vrot.slane %v2364, 2
    %v2366 = vadd.f32 %v2364, %v2365
    %v2367 = vrot.slane %v2366, 1
    %v2368 = vadd.f32 %v2366, %v2367
    %v2369 = vadd.f32 %v2186, %v2187
    %v2370 = vadd.f32 %v2369, %v2188
    %v2371 = vadd.f32 %v2370, %v2189
    %v2372 = vrot.slane %v2371, 4
    %v2373 = vadd.f32 %v2371, %v2372
    %v2374 = vrot.slane %v2373, 2
    %v2375 = vadd.f32 %v2373, %v2374
    %v2376 = vrot.slane %v2375, 1
    %v2377 = vadd.f32 %v2375, %v2376
    %v2378 = vadd.f32 %v2190, %v2191
    %v2379 = vadd.f32 %v2378, %v2192
    %v2380 = vadd.f32 %v2379, %v2193
    %v2381 = vrot.slane %v2380, 4
    %v2382 = vadd.f32 %v2380, %v2381
    %v2383 = vrot.slane %v2382, 2
    %v2384 = vadd.f32 %v2382, %v2383
    %v2385 = vrot.slane %v2384, 1
    %v2386 = vadd.f32 %v2384, %v2385
    %v2387 = vadd.f32 %v2194, %v2195
    %v2388 = vadd.f32 %v2387, %v2196
    %v2389 = vadd.f32 %v2388, %v2197
    %v2390 = vrot.slane %v2389, 4
    %v2391 = vadd.f32 %v2389, %v2390
    %v2392 = vrot.slane %v2391, 2
    %v2393 = vadd.f32 %v2391, %v2392
    %v2394 = vrot.slane %v2393, 1
    %v2395 = vadd.f32 %v2393, %v2394
    %v2396 = vadd.f32 %v2198, %v2199
    %v2397 = vadd.f32 %v2396, %v2200
    %v2398 = vadd.f32 %v2397, %v2201
    %v2399 = vrot.slane %v2398, 4
    %v2400 = vadd.f32 %v2398, %v2399
    %v2401 = vrot.slane %v2400, 2
    %v2402 = vadd.f32 %v2400, %v2401
    %v2403 = vrot.slane %v2402, 1
    %v2404 = vadd.f32 %v2402, %v2403
    %v2405 = vadd.f32 %v2202, %v2203
    %v2406 = vadd.f32 %v2405, %v2204
    %v2407 = vadd.f32 %v2406, %v2205
    %v2408 = vrot.slane %v2407, 4
    %v2409 = vadd.f32 %v2407, %v2408
    %v2410 = vrot.slane %v2409, 2
    %v2411 = vadd.f32 %v2409, %v2410
    %v2412 = vrot.slane %v2411, 1
    %v2413 = vadd.f32 %v2411, %v2412
    %v2414 = vadd.f32 %v2206, %v2207
    %v2415 = vadd.f32 %v2414, %v2208
    %v2416 = vadd.f32 %v2415, %v2209
    %v2417 = vrot.slane %v2416, 4
    %v2418 = vadd.f32 %v2416, %v2417
    %v2419 = vrot.slane %v2418, 2
    %v2420 = vadd.f32 %v2418, %v2419
    %v2421 = vrot.slane %v2420, 1
    %v2422 = vadd.f32 %v2420, %v2421
    %v2423 = vadd.f32 %v2210, %v2211
    %v2424 = vadd.f32 %v2423, %v2212
    %v2425 = vadd.f32 %v2424, %v2213
    %v2426 = vrot.slane %v2425, 4
    %v2427 = vadd.f32 %v2425, %v2426
    %v2428 = vrot.slane %v2427, 2
    %v2429 = vadd.f32 %v2427, %v2428
    %v2430 = vrot.slane %v2429, 1
    %v2431 = vadd.f32 %v2429, %v2430
    %v2432 = vadd.f32 %v2214, %v2215
    %v2433 = vadd.f32 %v2432, %v2216
    %v2434 = vadd.f32 %v2433, %v2217
    %v2435 = vrot.slane %v2434, 4
    %v2436 = vadd.f32 %v2434, %v2435
    %v2437 = vrot.slane %v2436, 2
    %v2438 = vadd.f32 %v2436, %v2437
    %v2439 = vrot.slane %v2438, 1
    %v2440 = vadd.f32 %v2438, %v2439
    %v2441 = vadd.f32 %v2218, %v2219
    %v2442 = vadd.f32 %v2441, %v2220
    %v2443 = vadd.f32 %v2442, %v2221
    %v2444 = vrot.slane %v2443, 4
    %v2445 = vadd.f32 %v2443, %v2444
    %v2446 = vrot.slane %v2445, 2
    %v2447 = vadd.f32 %v2445, %v2446
    %v2448 = vrot.slane %v2447, 1
    %v2449 = vadd.f32 %v2447, %v2448
    %v2450 = vadd.f32 %v2222, %v2223
    %v2451 = vadd.f32 %v2450, %v2224
    %v2452 = vadd.f32 %v2451, %v2225
    %v2453 = vrot.slane %v2452, 4
    %v2454 = vadd.f32 %v2452, %v2453
    %v2455 = vrot.slane %v2454, 2
    %v2456 = vadd.f32 %v2454, %v2455
    %v2457 = vrot.slane %v2456, 1
    %v2458 = vadd.f32 %v2456, %v2457
    %v2459 = vadd.f32 %v2226, %v2227
    %v2460 = vadd.f32 %v2459, %v2228
    %v2461 = vadd.f32 %v2460, %v2229
    %v2462 = vrot.slane %v2461, 4
    %v2463 = vadd.f32 %v2461, %v2462
    %v2464 = vrot.slane %v2463, 2
    %v2465 = vadd.f32 %v2463, %v2464
    %v2466 = vrot.slane %v2465, 1
    %v2467 = vadd.f32 %v2465, %v2466
    %v2468 = vadd.f32 %v2230, %v2231
    %v2469 = vadd.f32 %v2468, %v2232
    %v2470 = vadd.f32 %v2469, %v2233
    %v2471 = vrot.slane %v2470, 4
    %v2472 = vadd.f32 %v2470, %v2471
    %v2473 = vrot.slane %v2472, 2
    %v2474 = vadd.f32 %v2472, %v2473
    %v2475 = vrot.slane %v2474, 1
    %v2476 = vadd.f32 %v2474, %v2475
    %v2477 = vadd.f32 %v2234, %v2235
    %v2478 = vadd.f32 %v2477, %v2236
    %v2479 = vadd.f32 %v2478, %v2237
    %v2480 = vrot.slane %v2479, 4
    %v2481 = vadd.f32 %v2479, %v2480
    %v2482 = vrot.slane %v2481, 2
    %v2483 = vadd.f32 %v2481, %v2482
    %v2484 = vrot.slane %v2483, 1
    %v2485 = vadd.f32 %v2483, %v2484
    %v2486 = vadd.f32 %v2238, %v2239
    %v2487 = vadd.f32 %v2486, %v2240
    %v2488 = vadd.f32 %v2487, %v2241
    %v2489 = vrot.slane %v2488, 4
    %v2490 = vadd.f32 %v2488, %v2489
    %v2491 = vrot.slane %v2490, 2
    %v2492 = vadd.f32 %v2490, %v2491
    %v2493 = vrot.slane %v2492, 1
    %v2494 = vadd.f32 %v2492, %v2493
    %v2495 = vadd.f32 %v2242, %v2243
    %v2496 = vadd.f32 %v2495, %v2244
    %v2497 = vadd.f32 %v2496, %v2245
    %v2498 = vrot.slane %v2497, 4
    %v2499 = vadd.f32 %v2497, %v2498
    %v2500 = vrot.slane %v2499, 2
    %v2501 = vadd.f32 %v2499, %v2500
    %v2502 = vrot.slane %v2501, 1
    %v2503 = vadd.f32 %v2501, %v2502
    %v2504 = vadd.f32 %v2246, %v2247
    %v2505 = vadd.f32 %v2504, %v2248
    %v2506 = vadd.f32 %v2505, %v2249
    %v2507 = vrot.slane %v2506, 4
    %v2508 = vadd.f32 %v2506, %v2507
    %v2509 = vrot.slane %v2508, 2
    %v2510 = vadd.f32 %v2508, %v2509
    %v2511 = vrot.slane %v2510, 1
    %v2512 = vadd.f32 %v2510, %v2511
    %v2513 = vadd.f32 %v2250, %v2251
    %v2514 = vadd.f32 %v2513, %v2252
    %v2515 = vadd.f32 %v2514, %v2253
    %v2516 = vrot.slane %v2515, 4
    %v2517 = vadd.f32 %v2515, %v2516
    %v2518 = vrot.slane %v2517, 2
    %v2519 = vadd.f32 %v2517, %v2518
    %v2520 = vrot.slane %v2519, 1
    %v2521 = vadd.f32 %v2519, %v2520
    %v2522 = vadd.f32 %v2254, %v2255
    %v2523 = vadd.f32 %v2522, %v2256
    %v2524 = vadd.f32 %v2523, %v2257
    %v2525 = vrot.slane %v2524, 4
    %v2526 = vadd.f32 %v2524, %v2525
    %v2527 = vrot.slane %v2526, 2
    %v2528 = vadd.f32 %v2526, %v2527
    %v2529 = vrot.slane %v2528, 1
    %v2530 = vadd.f32 %v2528, %v2529
    %v2531 = vadd.f32 %v2258, %v2259
    %v2532 = vadd.f32 %v2531, %v2260
    %v2533 = vadd.f32 %v2532, %v2261
    %v2534 = vrot.slane %v2533, 4
    %v2535 = vadd.f32 %v2533, %v2534
    %v2536 = vrot.slane %v2535, 2
    %v2537 = vadd.f32 %v2535, %v2536
    %v2538 = vrot.slane %v2537, 1
    %v2539 = vadd.f32 %v2537, %v2538
    %v2540 = vadd.f32 %v2262, %v2263
    %v2541 = vadd.f32 %v2540, %v2264
    %v2542 = vadd.f32 %v2541, %v2265
    %v2543 = vrot.slane %v2542, 4
    %v2544 = vadd.f32 %v2542, %v2543
    %v2545 = vrot.slane %v2544, 2
    %v2546 = vadd.f32 %v2544, %v2545
    %v2547 = vrot.slane %v2546, 1
    %v2548 = vadd.f32 %v2546, %v2547
    %v2549 = vadd.f32 %v2266, %v2267
    %v2550 = vadd.f32 %v2549, %v2268
    %v2551 = vadd.f32 %v2550, %v2269
    %v2552 = vrot.slane %v2551, 4
    %v2553 = vadd.f32 %v2551, %v2552
    %v2554 = vrot.slane %v2553, 2
    %v2555 = vadd.f32 %v2553, %v2554
    %v2556 = vrot.slane %v2555, 1
    %v2557 = vadd.f32 %v2555, %v2556
    %v2558 = vlaneseq
    %v2559 = vshrl.u32 %v2558, 7
    %v2560 = vsub.s32 0, %v2559
    %v2561 = vrot.slane %v719, %v2560
    %s2563 = sor.u32 256, 32
    %2564 = vbcast.lane.b32.xlu0 %v2561, %s2563
    %v2565 = vpop.permute.xlu0 %2564
    %s2567 = sor.u32 256, 40
    %2568 = vbcast.lane.b32.xlu0 %v2561, %s2567
    %v2569 = vpop.permute.xlu0 %2568
    %s2571 = sor.u32 256, 48
    %2572 = vbcast.lane.b32.xlu0 %v2561, %s2571
    %v2573 = vpop.permute.xlu0 %2572
    %s2575 = sor.u32 256, 56
    %2576 = vbcast.lane.b32.xlu0 %v2561, %s2575
    %v2577 = vpop.permute.xlu0 %2576
    %v2578 = vlaneseq
    %v2579 = vshrl.u32 %v2578, 7
    %v2580 = vsub.s32 1, %v2579
    %v2581 = vrot.slane %v719, %v2580
    %s2583 = sor.u32 256, 32
    %2584 = vbcast.lane.b32.xlu0 %v2581, %s2583
    %v2585 = vpop.permute.xlu0 %2584
    %s2587 = sor.u32 256, 40
    %2588 = vbcast.lane.b32.xlu0 %v2581, %s2587
    %v2589 = vpop.permute.xlu0 %2588
    %s2591 = sor.u32 256, 48
    %2592 = vbcast.lane.b32.xlu0 %v2581, %s2591
    %v2593 = vpop.permute.xlu0 %2592
    %s2595 = sor.u32 256, 56
    %2596 = vbcast.lane.b32.xlu0 %v2581, %s2595
    %v2597 = vpop.permute.xlu0 %2596
    %v2598 = vlaneseq
    %v2599 = vshrl.u32 %v2598, 7
    %v2600 = vsub.s32 2, %v2599
    %v2601 = vrot.slane %v719, %v2600
    %s2603 = sor.u32 256, 32
    %2604 = vbcast.lane.b32.xlu0 %v2601, %s2603
    %v2605 = vpop.permute.xlu0 %2604
    %s2607 = sor.u32 256, 40
    %2608 = vbcast.lane.b32.xlu0 %v2601, %s2607
    %v2609 = vpop.permute.xlu0 %2608
    %s2611 = sor.u32 256, 48
    %2612 = vbcast.lane.b32.xlu0 %v2601, %s2611
    %v2613 = vpop.permute.xlu0 %2612
    %s2615 = sor.u32 256, 56
    %2616 = vbcast.lane.b32.xlu0 %v2601, %s2615
    %v2617 = vpop.permute.xlu0 %2616
    %v2618 = vlaneseq
    %v2619 = vshrl.u32 %v2618, 7
    %v2620 = vsub.s32 3, %v2619
    %v2621 = vrot.slane %v719, %v2620
    %s2623 = sor.u32 256, 32
    %2624 = vbcast.lane.b32.xlu0 %v2621, %s2623
    %v2625 = vpop.permute.xlu0 %2624
    %s2627 = sor.u32 256, 40
    %2628 = vbcast.lane.b32.xlu0 %v2621, %s2627
    %v2629 = vpop.permute.xlu0 %2628
    %s2631 = sor.u32 256, 48
    %2632 = vbcast.lane.b32.xlu0 %v2621, %s2631
    %v2633 = vpop.permute.xlu0 %2632
    %s2635 = sor.u32 256, 56
    %2636 = vbcast.lane.b32.xlu0 %v2621, %s2635
    %v2637 = vpop.permute.xlu0 %2636
    %v2638 = vlaneseq
    %v2639 = vshrl.u32 %v2638, 7
    %v2640 = vsub.s32 4, %v2639
    %v2641 = vrot.slane %v719, %v2640
    %s2643 = sor.u32 256, 32
    %2644 = vbcast.lane.b32.xlu0 %v2641, %s2643
    %v2645 = vpop.permute.xlu0 %2644
    %s2647 = sor.u32 256, 40
    %2648 = vbcast.lane.b32.xlu0 %v2641, %s2647
    %v2649 = vpop.permute.xlu0 %2648
    %s2651 = sor.u32 256, 48
    %2652 = vbcast.lane.b32.xlu0 %v2641, %s2651
    %v2653 = vpop.permute.xlu0 %2652
    %s2655 = sor.u32 256, 56
    %2656 = vbcast.lane.b32.xlu0 %v2641, %s2655
    %v2657 = vpop.permute.xlu0 %2656
    %v2658 = vlaneseq
    %v2659 = vshrl.u32 %v2658, 7
    %v2660 = vsub.s32 5, %v2659
    %v2661 = vrot.slane %v719, %v2660
    %s2663 = sor.u32 256, 32
    %2664 = vbcast.lane.b32.xlu0 %v2661, %s2663
    %v2665 = vpop.permute.xlu0 %2664
    %s2667 = sor.u32 256, 40
    %2668 = vbcast.lane.b32.xlu0 %v2661, %s2667
    %v2669 = vpop.permute.xlu0 %2668
    %s2671 = sor.u32 256, 48
    %2672 = vbcast.lane.b32.xlu0 %v2661, %s2671
    %v2673 = vpop.permute.xlu0 %2672
    %s2675 = sor.u32 256, 56
    %2676 = vbcast.lane.b32.xlu0 %v2661, %s2675
    %v2677 = vpop.permute.xlu0 %2676
    %v2678 = vlaneseq
    %v2679 = vshrl.u32 %v2678, 7
    %v2680 = vsub.s32 6, %v2679
    %v2681 = vrot.slane %v719, %v2680
    %s2683 = sor.u32 256, 32
    %2684 = vbcast.lane.b32.xlu0 %v2681, %s2683
    %v2685 = vpop.permute.xlu0 %2684
    %s2687 = sor.u32 256, 40
    %2688 = vbcast.lane.b32.xlu0 %v2681, %s2687
    %v2689 = vpop.permute.xlu0 %2688
    %s2691 = sor.u32 256, 48
    %2692 = vbcast.lane.b32.xlu0 %v2681, %s2691
    %v2693 = vpop.permute.xlu0 %2692
    %s2695 = sor.u32 256, 56
    %2696 = vbcast.lane.b32.xlu0 %v2681, %s2695
    %v2697 = vpop.permute.xlu0 %2696
    %v2698 = vlaneseq
    %v2699 = vshrl.u32 %v2698, 7
    %v2700 = vsub.s32 7, %v2699
    %v2701 = vrot.slane %v719, %v2700
    %s2703 = sor.u32 256, 32
    %2704 = vbcast.lane.b32.xlu0 %v2701, %s2703
    %v2705 = vpop.permute.xlu0 %2704
    %s2707 = sor.u32 256, 40
    %2708 = vbcast.lane.b32.xlu0 %v2701, %s2707
    %v2709 = vpop.permute.xlu0 %2708
    %s2711 = sor.u32 256, 48
    %2712 = vbcast.lane.b32.xlu0 %v2701, %s2711
    %v2713 = vpop.permute.xlu0 %2712
    %s2715 = sor.u32 256, 56
    %2716 = vbcast.lane.b32.xlu0 %v2701, %s2715
    %v2717 = vpop.permute.xlu0 %2716
    %v2718 = vlaneseq
    %v2719 = vshrl.u32 %v2718, 7
    %v2720 = vsub.s32 0, %v2719
    %v2721 = vrot.slane %v720, %v2720
    %s2723 = sor.u32 256, 32
    %2724 = vbcast.lane.b32.xlu0 %v2721, %s2723
    %v2725 = vpop.permute.xlu0 %2724
    %s2727 = sor.u32 256, 40
    %2728 = vbcast.lane.b32.xlu0 %v2721, %s2727
    %v2729 = vpop.permute.xlu0 %2728
    %s2731 = sor.u32 256, 48
    %2732 = vbcast.lane.b32.xlu0 %v2721, %s2731
    %v2733 = vpop.permute.xlu0 %2732
    %s2735 = sor.u32 256, 56
    %2736 = vbcast.lane.b32.xlu0 %v2721, %s2735
    %v2737 = vpop.permute.xlu0 %2736
    %v2738 = vlaneseq
    %v2739 = vshrl.u32 %v2738, 7
    %v2740 = vsub.s32 1, %v2739
    %v2741 = vrot.slane %v720, %v2740
    %s2743 = sor.u32 256, 32
    %2744 = vbcast.lane.b32.xlu0 %v2741, %s2743
    %v2745 = vpop.permute.xlu0 %2744
    %s2747 = sor.u32 256, 40
    %2748 = vbcast.lane.b32.xlu0 %v2741, %s2747
    %v2749 = vpop.permute.xlu0 %2748
    %s2751 = sor.u32 256, 48
    %2752 = vbcast.lane.b32.xlu0 %v2741, %s2751
    %v2753 = vpop.permute.xlu0 %2752
    %s2755 = sor.u32 256, 56
    %2756 = vbcast.lane.b32.xlu0 %v2741, %s2755
    %v2757 = vpop.permute.xlu0 %2756
    %v2758 = vlaneseq
    %v2759 = vshrl.u32 %v2758, 7
    %v2760 = vsub.s32 2, %v2759
    %v2761 = vrot.slane %v720, %v2760
    %s2763 = sor.u32 256, 32
    %2764 = vbcast.lane.b32.xlu0 %v2761, %s2763
    %v2765 = vpop.permute.xlu0 %2764
    %s2767 = sor.u32 256, 40
    %2768 = vbcast.lane.b32.xlu0 %v2761, %s2767
    %v2769 = vpop.permute.xlu0 %2768
    %s2771 = sor.u32 256, 48
    %2772 = vbcast.lane.b32.xlu0 %v2761, %s2771
    %v2773 = vpop.permute.xlu0 %2772
    %s2775 = sor.u32 256, 56
    %2776 = vbcast.lane.b32.xlu0 %v2761, %s2775
    %v2777 = vpop.permute.xlu0 %2776
    %v2778 = vlaneseq
    %v2779 = vshrl.u32 %v2778, 7
    %v2780 = vsub.s32 3, %v2779
    %v2781 = vrot.slane %v720, %v2780
    %s2783 = sor.u32 256, 32
    %2784 = vbcast.lane.b32.xlu0 %v2781, %s2783
    %v2785 = vpop.permute.xlu0 %2784
    %s2787 = sor.u32 256, 40
    %2788 = vbcast.lane.b32.xlu0 %v2781, %s2787
    %v2789 = vpop.permute.xlu0 %2788
    %s2791 = sor.u32 256, 48
    %2792 = vbcast.lane.b32.xlu0 %v2781, %s2791
    %v2793 = vpop.permute.xlu0 %2792
    %s2795 = sor.u32 256, 56
    %2796 = vbcast.lane.b32.xlu0 %v2781, %s2795
    %v2797 = vpop.permute.xlu0 %2796
    %v2798 = vlaneseq
    %v2799 = vshrl.u32 %v2798, 7
    %v2800 = vsub.s32 4, %v2799
    %v2801 = vrot.slane %v720, %v2800
    %s2803 = sor.u32 256, 32
    %2804 = vbcast.lane.b32.xlu0 %v2801, %s2803
    %v2805 = vpop.permute.xlu0 %2804
    %s2807 = sor.u32 256, 40
    %2808 = vbcast.lane.b32.xlu0 %v2801, %s2807
    %v2809 = vpop.permute.xlu0 %2808
    %s2811 = sor.u32 256, 48
    %2812 = vbcast.lane.b32.xlu0 %v2801, %s2811
    %v2813 = vpop.permute.xlu0 %2812
    %s2815 = sor.u32 256, 56
    %2816 = vbcast.lane.b32.xlu0 %v2801, %s2815
    %v2817 = vpop.permute.xlu0 %2816
    %v2818 = vlaneseq
    %v2819 = vshrl.u32 %v2818, 7
    %v2820 = vsub.s32 5, %v2819
    %v2821 = vrot.slane %v720, %v2820
    %s2823 = sor.u32 256, 32
    %2824 = vbcast.lane.b32.xlu0 %v2821, %s2823
    %v2825 = vpop.permute.xlu0 %2824
    %s2827 = sor.u32 256, 40
    %2828 = vbcast.lane.b32.xlu0 %v2821, %s2827
    %v2829 = vpop.permute.xlu0 %2828
    %s2831 = sor.u32 256, 48
    %2832 = vbcast.lane.b32.xlu0 %v2821, %s2831
    %v2833 = vpop.permute.xlu0 %2832
    %s2835 = sor.u32 256, 56
    %2836 = vbcast.lane.b32.xlu0 %v2821, %s2835
    %v2837 = vpop.permute.xlu0 %2836
    %v2838 = vlaneseq
    %v2839 = vshrl.u32 %v2838, 7
    %v2840 = vsub.s32 6, %v2839
    %v2841 = vrot.slane %v720, %v2840
    %s2843 = sor.u32 256, 32
    %2844 = vbcast.lane.b32.xlu0 %v2841, %s2843
    %v2845 = vpop.permute.xlu0 %2844
    %s2847 = sor.u32 256, 40
    %2848 = vbcast.lane.b32.xlu0 %v2841, %s2847
    %v2849 = vpop.permute.xlu0 %2848
    %s2851 = sor.u32 256, 48
    %2852 = vbcast.lane.b32.xlu0 %v2841, %s2851
    %v2853 = vpop.permute.xlu0 %2852
    %s2855 = sor.u32 256, 56
    %2856 = vbcast.lane.b32.xlu0 %v2841, %s2855
    %v2857 = vpop.permute.xlu0 %2856
    %v2858 = vlaneseq
    %v2859 = vshrl.u32 %v2858, 7
    %v2860 = vsub.s32 7, %v2859
    %v2861 = vrot.slane %v720, %v2860
    %s2863 = sor.u32 256, 32
    %2864 = vbcast.lane.b32.xlu0 %v2861, %s2863
    %v2865 = vpop.permute.xlu0 %2864
    %s2867 = sor.u32 256, 40
    %2868 = vbcast.lane.b32.xlu0 %v2861, %s2867
    %v2869 = vpop.permute.xlu0 %2868
    %s2871 = sor.u32 256, 48
    %2872 = vbcast.lane.b32.xlu0 %v2861, %s2871
    %v2873 = vpop.permute.xlu0 %2872
    %s2875 = sor.u32 256, 56
    %2876 = vbcast.lane.b32.xlu0 %v2861, %s2875
    %v2877 = vpop.permute.xlu0 %2876
    %v2878 = vlaneseq
    %v2879 = vshrl.u32 %v2878, 7
    %v2880 = vsub.s32 0, %v2879
    %v2881 = vrot.slane %v721, %v2880
    %s2883 = sor.u32 256, 32
    %2884 = vbcast.lane.b32.xlu0 %v2881, %s2883
    %v2885 = vpop.permute.xlu0 %2884
    %s2887 = sor.u32 256, 40
    %2888 = vbcast.lane.b32.xlu0 %v2881, %s2887
    %v2889 = vpop.permute.xlu0 %2888
    %s2891 = sor.u32 256, 48
    %2892 = vbcast.lane.b32.xlu0 %v2881, %s2891
    %v2893 = vpop.permute.xlu0 %2892
    %s2895 = sor.u32 256, 56
    %2896 = vbcast.lane.b32.xlu0 %v2881, %s2895
    %v2897 = vpop.permute.xlu0 %2896
    %v2898 = vlaneseq
    %v2899 = vshrl.u32 %v2898, 7
    %v2900 = vsub.s32 1, %v2899
    %v2901 = vrot.slane %v721, %v2900
    %s2903 = sor.u32 256, 32
    %2904 = vbcast.lane.b32.xlu0 %v2901, %s2903
    %v2905 = vpop.permute.xlu0 %2904
    %s2907 = sor.u32 256, 40
    %2908 = vbcast.lane.b32.xlu0 %v2901, %s2907
    %v2909 = vpop.permute.xlu0 %2908
    %s2911 = sor.u32 256, 48
    %2912 = vbcast.lane.b32.xlu0 %v2901, %s2911
    %v2913 = vpop.permute.xlu0 %2912
    %s2915 = sor.u32 256, 56
    %2916 = vbcast.lane.b32.xlu0 %v2901, %s2915
    %v2917 = vpop.permute.xlu0 %2916
    %v2918 = vlaneseq
    %v2919 = vshrl.u32 %v2918, 7
    %v2920 = vsub.s32 2, %v2919
    %v2921 = vrot.slane %v721, %v2920
    %s2923 = sor.u32 256, 32
    %2924 = vbcast.lane.b32.xlu0 %v2921, %s2923
    %v2925 = vpop.permute.xlu0 %2924
    %s2927 = sor.u32 256, 40
    %2928 = vbcast.lane.b32.xlu0 %v2921, %s2927
    %v2929 = vpop.permute.xlu0 %2928
    %s2931 = sor.u32 256, 48
    %2932 = vbcast.lane.b32.xlu0 %v2921, %s2931
    %v2933 = vpop.permute.xlu0 %2932
    %s2935 = sor.u32 256, 56
    %2936 = vbcast.lane.b32.xlu0 %v2921, %s2935
    %v2937 = vpop.permute.xlu0 %2936
    %v2938 = vlaneseq
    %v2939 = vshrl.u32 %v2938, 7
    %v2940 = vsub.s32 3, %v2939
    %v2941 = vrot.slane %v721, %v2940
    %s2943 = sor.u32 256, 32
    %2944 = vbcast.lane.b32.xlu0 %v2941, %s2943
    %v2945 = vpop.permute.xlu0 %2944
    %s2947 = sor.u32 256, 40
    %2948 = vbcast.lane.b32.xlu0 %v2941, %s2947
    %v2949 = vpop.permute.xlu0 %2948
    %s2951 = sor.u32 256, 48
    %2952 = vbcast.lane.b32.xlu0 %v2941, %s2951
    %v2953 = vpop.permute.xlu0 %2952
    %s2955 = sor.u32 256, 56
    %2956 = vbcast.lane.b32.xlu0 %v2941, %s2955
    %v2957 = vpop.permute.xlu0 %2956
    %v2958 = vlaneseq
    %v2959 = vshrl.u32 %v2958, 7
    %v2960 = vsub.s32 4, %v2959
    %v2961 = vrot.slane %v721, %v2960
    %s2963 = sor.u32 256, 32
    %2964 = vbcast.lane.b32.xlu0 %v2961, %s2963
    %v2965 = vpop.permute.xlu0 %2964
    %s2967 = sor.u32 256, 40
    %2968 = vbcast.lane.b32.xlu0 %v2961, %s2967
    %v2969 = vpop.permute.xlu0 %2968
    %s2971 = sor.u32 256, 48
    %2972 = vbcast.lane.b32.xlu0 %v2961, %s2971
    %v2973 = vpop.permute.xlu0 %2972
    %s2975 = sor.u32 256, 56
    %2976 = vbcast.lane.b32.xlu0 %v2961, %s2975
    %v2977 = vpop.permute.xlu0 %2976
    %v2978 = vlaneseq
    %v2979 = vshrl.u32 %v2978, 7
    %v2980 = vsub.s32 5, %v2979
    %v2981 = vrot.slane %v721, %v2980
    %s2983 = sor.u32 256, 32
    %2984 = vbcast.lane.b32.xlu0 %v2981, %s2983
    %v2985 = vpop.permute.xlu0 %2984
    %s2987 = sor.u32 256, 40
    %2988 = vbcast.lane.b32.xlu0 %v2981, %s2987
    %v2989 = vpop.permute.xlu0 %2988
    %s2991 = sor.u32 256, 48
    %2992 = vbcast.lane.b32.xlu0 %v2981, %s2991
    %v2993 = vpop.permute.xlu0 %2992
    %s2995 = sor.u32 256, 56
    %2996 = vbcast.lane.b32.xlu0 %v2981, %s2995
    %v2997 = vpop.permute.xlu0 %2996
    %v2998 = vlaneseq
    %v2999 = vshrl.u32 %v2998, 7
    %v3000 = vsub.s32 6, %v2999
    %v3001 = vrot.slane %v721, %v3000
    %s3003 = sor.u32 256, 32
    %3004 = vbcast.lane.b32.xlu0 %v3001, %s3003
    %v3005 = vpop.permute.xlu0 %3004
    %s3007 = sor.u32 256, 40
    %3008 = vbcast.lane.b32.xlu0 %v3001, %s3007
    %v3009 = vpop.permute.xlu0 %3008
    %s3011 = sor.u32 256, 48
    %3012 = vbcast.lane.b32.xlu0 %v3001, %s3011
    %v3013 = vpop.permute.xlu0 %3012
    %s3015 = sor.u32 256, 56
    %3016 = vbcast.lane.b32.xlu0 %v3001, %s3015
    %v3017 = vpop.permute.xlu0 %3016
    %v3018 = vlaneseq
    %v3019 = vshrl.u32 %v3018, 7
    %v3020 = vsub.s32 7, %v3019
    %v3021 = vrot.slane %v721, %v3020
    %s3023 = sor.u32 256, 32
    %3024 = vbcast.lane.b32.xlu0 %v3021, %s3023
    %v3025 = vpop.permute.xlu0 %3024
    %s3027 = sor.u32 256, 40
    %3028 = vbcast.lane.b32.xlu0 %v3021, %s3027
    %v3029 = vpop.permute.xlu0 %3028
    %s3031 = sor.u32 256, 48
    %3032 = vbcast.lane.b32.xlu0 %v3021, %s3031
    %v3033 = vpop.permute.xlu0 %3032
    %s3035 = sor.u32 256, 56
    %3036 = vbcast.lane.b32.xlu0 %v3021, %s3035
    %v3037 = vpop.permute.xlu0 %3036
    %v3038 = vlaneseq
    %v3039 = vshrl.u32 %v3038, 7
    %v3040 = vsub.s32 0, %v3039
    %v3041 = vrot.slane %v722, %v3040
    %s3043 = sor.u32 256, 32
    %3044 = vbcast.lane.b32.xlu0 %v3041, %s3043
    %v3045 = vpop.permute.xlu0 %3044
    %s3047 = sor.u32 256, 40
    %3048 = vbcast.lane.b32.xlu0 %v3041, %s3047
    %v3049 = vpop.permute.xlu0 %3048
    %s3051 = sor.u32 256, 48
    %3052 = vbcast.lane.b32.xlu0 %v3041, %s3051
    %v3053 = vpop.permute.xlu0 %3052
    %s3055 = sor.u32 256, 56
    %3056 = vbcast.lane.b32.xlu0 %v3041, %s3055
    %v3057 = vpop.permute.xlu0 %3056
    %v3058 = vlaneseq
    %v3059 = vshrl.u32 %v3058, 7
    %v3060 = vsub.s32 1, %v3059
    %v3061 = vrot.slane %v722, %v3060
    %s3063 = sor.u32 256, 32
    %3064 = vbcast.lane.b32.xlu0 %v3061, %s3063
    %v3065 = vpop.permute.xlu0 %3064
    %s3067 = sor.u32 256, 40
    %3068 = vbcast.lane.b32.xlu0 %v3061, %s3067
    %v3069 = vpop.permute.xlu0 %3068
    %s3071 = sor.u32 256, 48
    %3072 = vbcast.lane.b32.xlu0 %v3061, %s3071
    %v3073 = vpop.permute.xlu0 %3072
    %s3075 = sor.u32 256, 56
    %3076 = vbcast.lane.b32.xlu0 %v3061, %s3075
    %v3077 = vpop.permute.xlu0 %3076
    %v3078 = vlaneseq
    %v3079 = vshrl.u32 %v3078, 7
    %v3080 = vsub.s32 2, %v3079
    %v3081 = vrot.slane %v722, %v3080
    %s3083 = sor.u32 256, 32
    %3084 = vbcast.lane.b32.xlu0 %v3081, %s3083
    %v3085 = vpop.permute.xlu0 %3084
    %s3087 = sor.u32 256, 40
    %3088 = vbcast.lane.b32.xlu0 %v3081, %s3087
    %v3089 = vpop.permute.xlu0 %3088
    %s3091 = sor.u32 256, 48
    %3092 = vbcast.lane.b32.xlu0 %v3081, %s3091
    %v3093 = vpop.permute.xlu0 %3092
    %s3095 = sor.u32 256, 56
    %3096 = vbcast.lane.b32.xlu0 %v3081, %s3095
    %v3097 = vpop.permute.xlu0 %3096
    %v3098 = vlaneseq
    %v3099 = vshrl.u32 %v3098, 7
    %v3100 = vsub.s32 3, %v3099
    %v3101 = vrot.slane %v722, %v3100
    %s3103 = sor.u32 256, 32
    %3104 = vbcast.lane.b32.xlu0 %v3101, %s3103
    %v3105 = vpop.permute.xlu0 %3104
    %s3107 = sor.u32 256, 40
    %3108 = vbcast.lane.b32.xlu0 %v3101, %s3107
    %v3109 = vpop.permute.xlu0 %3108
    %s3111 = sor.u32 256, 48
    %3112 = vbcast.lane.b32.xlu0 %v3101, %s3111
    %v3113 = vpop.permute.xlu0 %3112
    %s3115 = sor.u32 256, 56
    %3116 = vbcast.lane.b32.xlu0 %v3101, %s3115
    %v3117 = vpop.permute.xlu0 %3116
    %v3118 = vlaneseq
    %v3119 = vshrl.u32 %v3118, 7
    %v3120 = vsub.s32 4, %v3119
    %v3121 = vrot.slane %v722, %v3120
    %s3123 = sor.u32 256, 32
    %3124 = vbcast.lane.b32.xlu0 %v3121, %s3123
    %v3125 = vpop.permute.xlu0 %3124
    %s3127 = sor.u32 256, 40
    %3128 = vbcast.lane.b32.xlu0 %v3121, %s3127
    %v3129 = vpop.permute.xlu0 %3128
    %s3131 = sor.u32 256, 48
    %3132 = vbcast.lane.b32.xlu0 %v3121, %s3131
    %v3133 = vpop.permute.xlu0 %3132
    %s3135 = sor.u32 256, 56
    %3136 = vbcast.lane.b32.xlu0 %v3121, %s3135
    %v3137 = vpop.permute.xlu0 %3136
    %v3138 = vlaneseq
    %v3139 = vshrl.u32 %v3138, 7
    %v3140 = vsub.s32 5, %v3139
    %v3141 = vrot.slane %v722, %v3140
    %s3143 = sor.u32 256, 32
    %3144 = vbcast.lane.b32.xlu0 %v3141, %s3143
    %v3145 = vpop.permute.xlu0 %3144
    %s3147 = sor.u32 256, 40
    %3148 = vbcast.lane.b32.xlu0 %v3141, %s3147
    %v3149 = vpop.permute.xlu0 %3148
    %s3151 = sor.u32 256, 48
    %3152 = vbcast.lane.b32.xlu0 %v3141, %s3151
    %v3153 = vpop.permute.xlu0 %3152
    %s3155 = sor.u32 256, 56
    %3156 = vbcast.lane.b32.xlu0 %v3141, %s3155
    %v3157 = vpop.permute.xlu0 %3156
    %v3158 = vlaneseq
    %v3159 = vshrl.u32 %v3158, 7
    %v3160 = vsub.s32 6, %v3159
    %v3161 = vrot.slane %v722, %v3160
    %s3163 = sor.u32 256, 32
    %3164 = vbcast.lane.b32.xlu0 %v3161, %s3163
    %v3165 = vpop.permute.xlu0 %3164
    %s3167 = sor.u32 256, 40
    %3168 = vbcast.lane.b32.xlu0 %v3161, %s3167
    %v3169 = vpop.permute.xlu0 %3168
    %s3171 = sor.u32 256, 48
    %3172 = vbcast.lane.b32.xlu0 %v3161, %s3171
    %v3173 = vpop.permute.xlu0 %3172
    %s3175 = sor.u32 256, 56
    %3176 = vbcast.lane.b32.xlu0 %v3161, %s3175
    %v3177 = vpop.permute.xlu0 %3176
    %v3178 = vlaneseq
    %v3179 = vshrl.u32 %v3178, 7
    %v3180 = vsub.s32 7, %v3179
    %v3181 = vrot.slane %v722, %v3180
    %s3183 = sor.u32 256, 32
    %3184 = vbcast.lane.b32.xlu0 %v3181, %s3183
    %v3185 = vpop.permute.xlu0 %3184
    %s3187 = sor.u32 256, 40
    %3188 = vbcast.lane.b32.xlu0 %v3181, %s3187
    %v3189 = vpop.permute.xlu0 %3188
    %s3191 = sor.u32 256, 48
    %3192 = vbcast.lane.b32.xlu0 %v3181, %s3191
    %v3193 = vpop.permute.xlu0 %3192
    %s3195 = sor.u32 256, 56
    %3196 = vbcast.lane.b32.xlu0 %v3181, %s3195
    %v3197 = vpop.permute.xlu0 %3196
    %v3198 = vsel %vm1374, %v2565, 0.0
    %v3199 = vsel %vm1375, %v2569, 0.0
    %v3200 = vsel %vm1376, %v2573, 0.0
    %v3201 = vsel %vm1377, %v2577, 0.0
    %v3202 = vsel %vm1378, %v2585, 0.0
    %v3203 = vsel %vm1379, %v2589, 0.0
    %v3204 = vsel %vm1380, %v2593, 0.0
    %v3205 = vsel %vm1381, %v2597, 0.0
    %v3206 = vsel %vm1382, %v2605, 0.0
    %v3207 = vsel %vm1383, %v2609, 0.0
    %v3208 = vsel %vm1384, %v2613, 0.0
    %v3209 = vsel %vm1385, %v2617, 0.0
    %v3210 = vsel %vm1386, %v2625, 0.0
    %v3211 = vsel %vm1387, %v2629, 0.0
    %v3212 = vsel %vm1388, %v2633, 0.0
    %v3213 = vsel %vm1389, %v2637, 0.0
    %v3214 = vsel %vm1390, %v2645, 0.0
    %v3215 = vsel %vm1391, %v2649, 0.0
    %v3216 = vsel %vm1392, %v2653, 0.0
    %v3217 = vsel %vm1393, %v2657, 0.0
    %v3218 = vsel %vm1394, %v2665, 0.0
    %v3219 = vsel %vm1395, %v2669, 0.0
    %v3220 = vsel %vm1396, %v2673, 0.0
    %v3221 = vsel %vm1397, %v2677, 0.0
    %v3222 = vsel %vm1398, %v2685, 0.0
    %v3223 = vsel %vm1399, %v2689, 0.0
    %v3224 = vsel %vm1400, %v2693, 0.0
    %v3225 = vsel %vm1401, %v2697, 0.0
    %v3226 = vsel %vm1402, %v2705, 0.0
    %v3227 = vsel %vm1403, %v2709, 0.0
    %v3228 = vsel %vm1404, %v2713, 0.0
    %v3229 = vsel %vm1405, %v2717, 0.0
    %v3230 = vsel %vm1406, %v2725, 0.0
    %v3231 = vsel %vm1407, %v2729, 0.0
    %v3232 = vsel %vm1408, %v2733, 0.0
    %v3233 = vsel %vm1409, %v2737, 0.0
    %v3234 = vsel %vm1410, %v2745, 0.0
    %v3235 = vsel %vm1411, %v2749, 0.0
    %v3236 = vsel %vm1412, %v2753, 0.0
    %v3237 = vsel %vm1413, %v2757, 0.0
    %v3238 = vsel %vm1414, %v2765, 0.0
    %v3239 = vsel %vm1415, %v2769, 0.0
    %v3240 = vsel %vm1416, %v2773, 0.0
    %v3241 = vsel %vm1417, %v2777, 0.0
    %v3242 = vsel %vm1418, %v2785, 0.0
    %v3243 = vsel %vm1419, %v2789, 0.0
    %v3244 = vsel %vm1420, %v2793, 0.0
    %v3245 = vsel %vm1421, %v2797, 0.0
    %v3246 = vsel %vm1422, %v2805, 0.0
    %v3247 = vsel %vm1423, %v2809, 0.0
    %v3248 = vsel %vm1424, %v2813, 0.0
    %v3249 = vsel %vm1425, %v2817, 0.0
    %v3250 = vsel %vm1426, %v2825, 0.0
    %v3251 = vsel %vm1427, %v2829, 0.0
    %v3252 = vsel %vm1428, %v2833, 0.0
    %v3253 = vsel %vm1429, %v2837, 0.0
    %v3254 = vsel %vm1430, %v2845, 0.0
    %v3255 = vsel %vm1431, %v2849, 0.0
    %v3256 = vsel %vm1432, %v2853, 0.0
    %v3257 = vsel %vm1433, %v2857, 0.0
    %v3258 = vsel %vm1434, %v2865, 0.0
    %v3259 = vsel %vm1435, %v2869, 0.0
    %v3260 = vsel %vm1436, %v2873, 0.0
    %v3261 = vsel %vm1437, %v2877, 0.0
    %v3262 = vsel %vm1438, %v2885, 0.0
    %v3263 = vsel %vm1439, %v2889, 0.0
    %v3264 = vsel %vm1440, %v2893, 0.0
    %v3265 = vsel %vm1441, %v2897, 0.0
    %v3266 = vsel %vm1442, %v2905, 0.0
    %v3267 = vsel %vm1443, %v2909, 0.0
    %v3268 = vsel %vm1444, %v2913, 0.0
    %v3269 = vsel %vm1445, %v2917, 0.0
    %v3270 = vsel %vm1446, %v2925, 0.0
    %v3271 = vsel %vm1447, %v2929, 0.0
    %v3272 = vsel %vm1448, %v2933, 0.0
    %v3273 = vsel %vm1449, %v2937, 0.0
    %v3274 = vsel %vm1450, %v2945, 0.0
    %v3275 = vsel %vm1451, %v2949, 0.0
    %v3276 = vsel %vm1452, %v2953, 0.0
    %v3277 = vsel %vm1453, %v2957, 0.0
    %v3278 = vsel %vm1454, %v2965, 0.0
    %v3279 = vsel %vm1455, %v2969, 0.0
    %v3280 = vsel %vm1456, %v2973, 0.0
    %v3281 = vsel %vm1457, %v2977, 0.0
    %v3282 = vsel %vm1458, %v2985, 0.0
    %v3283 = vsel %vm1459, %v2989, 0.0
    %v3284 = vsel %vm1460, %v2993, 0.0
    %v3285 = vsel %vm1461, %v2997, 0.0
    %v3286 = vsel %vm1462, %v3005, 0.0
    %v3287 = vsel %vm1463, %v3009, 0.0
    %v3288 = vsel %vm1464, %v3013, 0.0
    %v3289 = vsel %vm1465, %v3017, 0.0
    %v3290 = vsel %vm1466, %v3025, 0.0
    %v3291 = vsel %vm1467, %v3029, 0.0
    %v3292 = vsel %vm1468, %v3033, 0.0
    %v3293 = vsel %vm1469, %v3037, 0.0
    %v3294 = vsel %vm1470, %v3045, 0.0
    %v3295 = vsel %vm1471, %v3049, 0.0
    %v3296 = vsel %vm1472, %v3053, 0.0
    %v3297 = vsel %vm1473, %v3057, 0.0
    %v3298 = vsel %vm1474, %v3065, 0.0
    %v3299 = vsel %vm1475, %v3069, 0.0
    %v3300 = vsel %vm1476, %v3073, 0.0
    %v3301 = vsel %vm1477, %v3077, 0.0
    %v3302 = vsel %vm1478, %v3085, 0.0
    %v3303 = vsel %vm1479, %v3089, 0.0
    %v3304 = vsel %vm1480, %v3093, 0.0
    %v3305 = vsel %vm1481, %v3097, 0.0
    %v3306 = vsel %vm1482, %v3105, 0.0
    %v3307 = vsel %vm1483, %v3109, 0.0
    %v3308 = vsel %vm1484, %v3113, 0.0
    %v3309 = vsel %vm1485, %v3117, 0.0
    %v3310 = vsel %vm1486, %v3125, 0.0
    %v3311 = vsel %vm1487, %v3129, 0.0
    %v3312 = vsel %vm1488, %v3133, 0.0
    %v3313 = vsel %vm1489, %v3137, 0.0
    %v3314 = vsel %vm1490, %v3145, 0.0
    %v3315 = vsel %vm1491, %v3149, 0.0
    %v3316 = vsel %vm1492, %v3153, 0.0
    %v3317 = vsel %vm1493, %v3157, 0.0
    %v3318 = vsel %vm1494, %v3165, 0.0
    %v3319 = vsel %vm1495, %v3169, 0.0
    %v3320 = vsel %vm1496, %v3173, 0.0
    %v3321 = vsel %vm1497, %v3177, 0.0
    %v3322 = vsel %vm1498, %v3185, 0.0
    %v3323 = vsel %vm1499, %v3189, 0.0
    %v3324 = vsel %vm1500, %v3193, 0.0
    %v3325 = vsel %vm1501, %v3197, 0.0
    %v3326 = vadd.f32 %v3198, %v3199
    %v3327 = vadd.f32 %v3326, %v3200
    %v3328 = vadd.f32 %v3327, %v3201
    %v3329 = vrot.slane %v3328, 4
    %v3330 = vadd.f32 %v3328, %v3329
    %v3331 = vrot.slane %v3330, 2
    %v3332 = vadd.f32 %v3330, %v3331
    %v3333 = vrot.slane %v3332, 1
    %v3334 = vadd.f32 %v3332, %v3333
    %v3335 = vadd.f32 %v3202, %v3203
    %v3336 = vadd.f32 %v3335, %v3204
    %v3337 = vadd.f32 %v3336, %v3205
    %v3338 = vrot.slane %v3337, 4
    %v3339 = vadd.f32 %v3337, %v3338
    %v3340 = vrot.slane %v3339, 2
    %v3341 = vadd.f32 %v3339, %v3340
    %v3342 = vrot.slane %v3341, 1
    %v3343 = vadd.f32 %v3341, %v3342
    %v3344 = vadd.f32 %v3206, %v3207
    %v3345 = vadd.f32 %v3344, %v3208
    %v3346 = vadd.f32 %v3345, %v3209
    %v3347 = vrot.slane %v3346, 4
    %v3348 = vadd.f32 %v3346, %v3347
    %v3349 = vrot.slane %v3348, 2
    %v3350 = vadd.f32 %v3348, %v3349
    %v3351 = vrot.slane %v3350, 1
    %v3352 = vadd.f32 %v3350, %v3351
    %v3353 = vadd.f32 %v3210, %v3211
    %v3354 = vadd.f32 %v3353, %v3212
    %v3355 = vadd.f32 %v3354, %v3213
    %v3356 = vrot.slane %v3355, 4
    %v3357 = vadd.f32 %v3355, %v3356
    %v3358 = vrot.slane %v3357, 2
    %v3359 = vadd.f32 %v3357, %v3358
    %v3360 = vrot.slane %v3359, 1
    %v3361 = vadd.f32 %v3359, %v3360
    %v3362 = vadd.f32 %v3214, %v3215
    %v3363 = vadd.f32 %v3362, %v3216
    %v3364 = vadd.f32 %v3363, %v3217
    %v3365 = vrot.slane %v3364, 4
    %v3366 = vadd.f32 %v3364, %v3365
    %v3367 = vrot.slane %v3366, 2
    %v3368 = vadd.f32 %v3366, %v3367
    %v3369 = vrot.slane %v3368, 1
    %v3370 = vadd.f32 %v3368, %v3369
    %v3371 = vadd.f32 %v3218, %v3219
    %v3372 = vadd.f32 %v3371, %v3220
    %v3373 = vadd.f32 %v3372, %v3221
    %v3374 = vrot.slane %v3373, 4
    %v3375 = vadd.f32 %v3373, %v3374
    %v3376 = vrot.slane %v3375, 2
    %v3377 = vadd.f32 %v3375, %v3376
    %v3378 = vrot.slane %v3377, 1
    %v3379 = vadd.f32 %v3377, %v3378
    %v3380 = vadd.f32 %v3222, %v3223
    %v3381 = vadd.f32 %v3380, %v3224
    %v3382 = vadd.f32 %v3381, %v3225
    %v3383 = vrot.slane %v3382, 4
    %v3384 = vadd.f32 %v3382, %v3383
    %v3385 = vrot.slane %v3384, 2
    %v3386 = vadd.f32 %v3384, %v3385
    %v3387 = vrot.slane %v3386, 1
    %v3388 = vadd.f32 %v3386, %v3387
    %v3389 = vadd.f32 %v3226, %v3227
    %v3390 = vadd.f32 %v3389, %v3228
    %v3391 = vadd.f32 %v3390, %v3229
    %v3392 = vrot.slane %v3391, 4
    %v3393 = vadd.f32 %v3391, %v3392
    %v3394 = vrot.slane %v3393, 2
    %v3395 = vadd.f32 %v3393, %v3394
    %v3396 = vrot.slane %v3395, 1
    %v3397 = vadd.f32 %v3395, %v3396
    %v3398 = vadd.f32 %v3230, %v3231
    %v3399 = vadd.f32 %v3398, %v3232
    %v3400 = vadd.f32 %v3399, %v3233
    %v3401 = vrot.slane %v3400, 4
    %v3402 = vadd.f32 %v3400, %v3401
    %v3403 = vrot.slane %v3402, 2
    %v3404 = vadd.f32 %v3402, %v3403
    %v3405 = vrot.slane %v3404, 1
    %v3406 = vadd.f32 %v3404, %v3405
    %v3407 = vadd.f32 %v3234, %v3235
    %v3408 = vadd.f32 %v3407, %v3236
    %v3409 = vadd.f32 %v3408, %v3237
    %v3410 = vrot.slane %v3409, 4
    %v3411 = vadd.f32 %v3409, %v3410
    %v3412 = vrot.slane %v3411, 2
    %v3413 = vadd.f32 %v3411, %v3412
    %v3414 = vrot.slane %v3413, 1
    %v3415 = vadd.f32 %v3413, %v3414
    %v3416 = vadd.f32 %v3238, %v3239
    %v3417 = vadd.f32 %v3416, %v3240
    %v3418 = vadd.f32 %v3417, %v3241
    %v3419 = vrot.slane %v3418, 4
    %v3420 = vadd.f32 %v3418, %v3419
    %v3421 = vrot.slane %v3420, 2
    %v3422 = vadd.f32 %v3420, %v3421
    %v3423 = vrot.slane %v3422, 1
    %v3424 = vadd.f32 %v3422, %v3423
    %v3425 = vadd.f32 %v3242, %v3243
    %v3426 = vadd.f32 %v3425, %v3244
    %v3427 = vadd.f32 %v3426, %v3245
    %v3428 = vrot.slane %v3427, 4
    %v3429 = vadd.f32 %v3427, %v3428
    %v3430 = vrot.slane %v3429, 2
    %v3431 = vadd.f32 %v3429, %v3430
    %v3432 = vrot.slane %v3431, 1
    %v3433 = vadd.f32 %v3431, %v3432
    %v3434 = vadd.f32 %v3246, %v3247
    %v3435 = vadd.f32 %v3434, %v3248
    %v3436 = vadd.f32 %v3435, %v3249
    %v3437 = vrot.slane %v3436, 4
    %v3438 = vadd.f32 %v3436, %v3437
    %v3439 = vrot.slane %v3438, 2
    %v3440 = vadd.f32 %v3438, %v3439
    %v3441 = vrot.slane %v3440, 1
    %v3442 = vadd.f32 %v3440, %v3441
    %v3443 = vadd.f32 %v3250, %v3251
    %v3444 = vadd.f32 %v3443, %v3252
    %v3445 = vadd.f32 %v3444, %v3253
    %v3446 = vrot.slane %v3445, 4
    %v3447 = vadd.f32 %v3445, %v3446
    %v3448 = vrot.slane %v3447, 2
    %v3449 = vadd.f32 %v3447, %v3448
    %v3450 = vrot.slane %v3449, 1
    %v3451 = vadd.f32 %v3449, %v3450
    %v3452 = vadd.f32 %v3254, %v3255
    %v3453 = vadd.f32 %v3452, %v3256
    %v3454 = vadd.f32 %v3453, %v3257
    %v3455 = vrot.slane %v3454, 4
    %v3456 = vadd.f32 %v3454, %v3455
    %v3457 = vrot.slane %v3456, 2
    %v3458 = vadd.f32 %v3456, %v3457
    %v3459 = vrot.slane %v3458, 1
    %v3460 = vadd.f32 %v3458, %v3459
    %v3461 = vadd.f32 %v3258, %v3259
    %v3462 = vadd.f32 %v3461, %v3260
    %v3463 = vadd.f32 %v3462, %v3261
    %v3464 = vrot.slane %v3463, 4
    %v3465 = vadd.f32 %v3463, %v3464
    %v3466 = vrot.slane %v3465, 2
    %v3467 = vadd.f32 %v3465, %v3466
    %v3468 = vrot.slane %v3467, 1
    %v3469 = vadd.f32 %v3467, %v3468
    %v3470 = vadd.f32 %v3262, %v3263
    %v3471 = vadd.f32 %v3470, %v3264
    %v3472 = vadd.f32 %v3471, %v3265
    %v3473 = vrot.slane %v3472, 4
    %v3474 = vadd.f32 %v3472, %v3473
    %v3475 = vrot.slane %v3474, 2
    %v3476 = vadd.f32 %v3474, %v3475
    %v3477 = vrot.slane %v3476, 1
    %v3478 = vadd.f32 %v3476, %v3477
    %v3479 = vadd.f32 %v3266, %v3267
    %v3480 = vadd.f32 %v3479, %v3268
    %v3481 = vadd.f32 %v3480, %v3269
    %v3482 = vrot.slane %v3481, 4
    %v3483 = vadd.f32 %v3481, %v3482
    %v3484 = vrot.slane %v3483, 2
    %v3485 = vadd.f32 %v3483, %v3484
    %v3486 = vrot.slane %v3485, 1
    %v3487 = vadd.f32 %v3485, %v3486
    %v3488 = vadd.f32 %v3270, %v3271
    %v3489 = vadd.f32 %v3488, %v3272
    %v3490 = vadd.f32 %v3489, %v3273
    %v3491 = vrot.slane %v3490, 4
    %v3492 = vadd.f32 %v3490, %v3491
    %v3493 = vrot.slane %v3492, 2
    %v3494 = vadd.f32 %v3492, %v3493
    %v3495 = vrot.slane %v3494, 1
    %v3496 = vadd.f32 %v3494, %v3495
    %v3497 = vadd.f32 %v3274, %v3275
    %v3498 = vadd.f32 %v3497, %v3276
    %v3499 = vadd.f32 %v3498, %v3277
    %v3500 = vrot.slane %v3499, 4
    %v3501 = vadd.f32 %v3499, %v3500
    %v3502 = vrot.slane %v3501, 2
    %v3503 = vadd.f32 %v3501, %v3502
    %v3504 = vrot.slane %v3503, 1
    %v3505 = vadd.f32 %v3503, %v3504
    %v3506 = vadd.f32 %v3278, %v3279
    %v3507 = vadd.f32 %v3506, %v3280
    %v3508 = vadd.f32 %v3507, %v3281
    %v3509 = vrot.slane %v3508, 4
    %v3510 = vadd.f32 %v3508, %v3509
    %v3511 = vrot.slane %v3510, 2
    %v3512 = vadd.f32 %v3510, %v3511
    %v3513 = vrot.slane %v3512, 1
    %v3514 = vadd.f32 %v3512, %v3513
    %v3515 = vadd.f32 %v3282, %v3283
    %v3516 = vadd.f32 %v3515, %v3284
    %v3517 = vadd.f32 %v3516, %v3285
    %v3518 = vrot.slane %v3517, 4
    %v3519 = vadd.f32 %v3517, %v3518
    %v3520 = vrot.slane %v3519, 2
    %v3521 = vadd.f32 %v3519, %v3520
    %v3522 = vrot.slane %v3521, 1
    %v3523 = vadd.f32 %v3521, %v3522
    %v3524 = vadd.f32 %v3286, %v3287
    %v3525 = vadd.f32 %v3524, %v3288
    %v3526 = vadd.f32 %v3525, %v3289
    %v3527 = vrot.slane %v3526, 4
    %v3528 = vadd.f32 %v3526, %v3527
    %v3529 = vrot.slane %v3528, 2
    %v3530 = vadd.f32 %v3528, %v3529
    %v3531 = vrot.slane %v3530, 1
    %v3532 = vadd.f32 %v3530, %v3531
    %v3533 = vadd.f32 %v3290, %v3291
    %v3534 = vadd.f32 %v3533, %v3292
    %v3535 = vadd.f32 %v3534, %v3293
    %v3536 = vrot.slane %v3535, 4
    %v3537 = vadd.f32 %v3535, %v3536
    %v3538 = vrot.slane %v3537, 2
    %v3539 = vadd.f32 %v3537, %v3538
    %v3540 = vrot.slane %v3539, 1
    %v3541 = vadd.f32 %v3539, %v3540
    %v3542 = vadd.f32 %v3294, %v3295
    %v3543 = vadd.f32 %v3542, %v3296
    %v3544 = vadd.f32 %v3543, %v3297
    %v3545 = vrot.slane %v3544, 4
    %v3546 = vadd.f32 %v3544, %v3545
    %v3547 = vrot.slane %v3546, 2
    %v3548 = vadd.f32 %v3546, %v3547
    %v3549 = vrot.slane %v3548, 1
    %v3550 = vadd.f32 %v3548, %v3549
    %v3551 = vadd.f32 %v3298, %v3299
    %v3552 = vadd.f32 %v3551, %v3300
    %v3553 = vadd.f32 %v3552, %v3301
    %v3554 = vrot.slane %v3553, 4
    %v3555 = vadd.f32 %v3553, %v3554
    %v3556 = vrot.slane %v3555, 2
    %v3557 = vadd.f32 %v3555, %v3556
    %v3558 = vrot.slane %v3557, 1
    %v3559 = vadd.f32 %v3557, %v3558
    %v3560 = vadd.f32 %v3302, %v3303
    %v3561 = vadd.f32 %v3560, %v3304
    %v3562 = vadd.f32 %v3561, %v3305
    %v3563 = vrot.slane %v3562, 4
    %v3564 = vadd.f32 %v3562, %v3563
    %v3565 = vrot.slane %v3564, 2
    %v3566 = vadd.f32 %v3564, %v3565
    %v3567 = vrot.slane %v3566, 1
    %v3568 = vadd.f32 %v3566, %v3567
    %v3569 = vadd.f32 %v3306, %v3307
    %v3570 = vadd.f32 %v3569, %v3308
    %v3571 = vadd.f32 %v3570, %v3309
    %v3572 = vrot.slane %v3571, 4
    %v3573 = vadd.f32 %v3571, %v3572
    %v3574 = vrot.slane %v3573, 2
    %v3575 = vadd.f32 %v3573, %v3574
    %v3576 = vrot.slane %v3575, 1
    %v3577 = vadd.f32 %v3575, %v3576
    %v3578 = vadd.f32 %v3310, %v3311
    %v3579 = vadd.f32 %v3578, %v3312
    %v3580 = vadd.f32 %v3579, %v3313
    %v3581 = vrot.slane %v3580, 4
    %v3582 = vadd.f32 %v3580, %v3581
    %v3583 = vrot.slane %v3582, 2
    %v3584 = vadd.f32 %v3582, %v3583
    %v3585 = vrot.slane %v3584, 1
    %v3586 = vadd.f32 %v3584, %v3585
    %v3587 = vadd.f32 %v3314, %v3315
    %v3588 = vadd.f32 %v3587, %v3316
    %v3589 = vadd.f32 %v3588, %v3317
    %v3590 = vrot.slane %v3589, 4
    %v3591 = vadd.f32 %v3589, %v3590
    %v3592 = vrot.slane %v3591, 2
    %v3593 = vadd.f32 %v3591, %v3592
    %v3594 = vrot.slane %v3593, 1
    %v3595 = vadd.f32 %v3593, %v3594
    %v3596 = vadd.f32 %v3318, %v3319
    %v3597 = vadd.f32 %v3596, %v3320
    %v3598 = vadd.f32 %v3597, %v3321
    %v3599 = vrot.slane %v3598, 4
    %v3600 = vadd.f32 %v3598, %v3599
    %v3601 = vrot.slane %v3600, 2
    %v3602 = vadd.f32 %v3600, %v3601
    %v3603 = vrot.slane %v3602, 1
    %v3604 = vadd.f32 %v3602, %v3603
    %v3605 = vadd.f32 %v3322, %v3323
    %v3606 = vadd.f32 %v3605, %v3324
    %v3607 = vadd.f32 %v3606, %v3325
    %v3608 = vrot.slane %v3607, 4
    %v3609 = vadd.f32 %v3607, %v3608
    %v3610 = vrot.slane %v3609, 2
    %v3611 = vadd.f32 %v3609, %v3610
    %v3612 = vrot.slane %v3611, 1
    %v3613 = vadd.f32 %v3611, %v3612
    %vm3646 = vcmask 1041409
    %v3647 = vsel %vm3646, %v3343, %v3334
    %vm3648 = vcmask 1042434
    %v3649 = vsel %vm3648, %v3352, %v3647
    %vm3650 = vcmask 1043459
    %v3651 = vsel %vm3650, %v3361, %v3649
    %vm3652 = vcmask 1044484
    %v3653 = vsel %vm3652, %v3370, %v3651
    %vm3654 = vcmask 1045509
    %v3655 = vsel %vm3654, %v3379, %v3653
    %vm3656 = vcmask 1046534
    %v3657 = vsel %vm3656, %v3388, %v3655
    %vm3658 = vcmask 1047559
    %v3659 = vsel %vm3658, %v3397, %v3657
    %v3660 = vsel %vm3646, %v3415, %v3406
    %v3661 = vsel %vm3648, %v3424, %v3660
    %v3662 = vsel %vm3650, %v3433, %v3661
    %v3663 = vsel %vm3652, %v3442, %v3662
    %v3664 = vsel %vm3654, %v3451, %v3663
    %v3665 = vsel %vm3656, %v3460, %v3664
    %v3666 = vsel %vm3658, %v3469, %v3665
    %v3667 = vsel %vm3646, %v3487, %v3478
    %v3668 = vsel %vm3648, %v3496, %v3667
    %v3669 = vsel %vm3650, %v3505, %v3668
    %v3670 = vsel %vm3652, %v3514, %v3669
    %v3671 = vsel %vm3654, %v3523, %v3670
    %v3672 = vsel %vm3656, %v3532, %v3671
    %v3673 = vsel %vm3658, %v3541, %v3672
    %v3674 = vsel %vm3646, %v3559, %v3550
    %v3675 = vsel %vm3648, %v3568, %v3674
    %v3676 = vsel %vm3650, %v3577, %v3675
    %v3677 = vsel %vm3652, %v3586, %v3676
    %v3678 = vsel %vm3654, %v3595, %v3677
    %v3679 = vsel %vm3656, %v3604, %v3678
    %v3680 = vsel %vm3658, %v3613, %v3679
    %3685 = vrot.lane.b32.xlu0 %v3659, 1
    %v3686 = vpop.permute.xlu0 %3685
    %3687 = vrot.lane.b32.xlu0 %v3666, 1
    %v3688 = vpop.permute.xlu0 %3687
    %3689 = vrot.lane.b32.xlu0 %v3673, 1
    %v3690 = vpop.permute.xlu0 %3689
    %3691 = vrot.lane.b32.xlu0 %v3680, 1
    %v3692 = vpop.permute.xlu0 %3691
    %v3697 = vrot.slane %v3686, 1
    %v3698 = vrot.slane %v3686, 2
    %v3699 = vrot.slane %v3686, 3
    %v3700 = vrot.slane %v3686, 4
    %v3701 = vrot.slane %v3686, 5
    %v3702 = vrot.slane %v3686, 6
    %v3703 = vrot.slane %v3686, 7
    %v3704 = vrot.slane %v3688, 1
    %v3705 = vrot.slane %v3688, 2
    %v3706 = vrot.slane %v3688, 3
    %v3707 = vrot.slane %v3688, 4
    %v3708 = vrot.slane %v3688, 5
    %v3709 = vrot.slane %v3688, 6
    %v3710 = vrot.slane %v3688, 7
    %v3711 = vrot.slane %v3690, 1
    %v3712 = vrot.slane %v3690, 2
    %v3713 = vrot.slane %v3690, 3
    %v3714 = vrot.slane %v3690, 4
    %v3715 = vrot.slane %v3690, 5
    %v3716 = vrot.slane %v3690, 6
    %v3717 = vrot.slane %v3690, 7
    %v3718 = vrot.slane %v3692, 1
    %v3719 = vrot.slane %v3692, 2
    %v3720 = vrot.slane %v3692, 3
    %v3721 = vrot.slane %v3692, 4
    %v3722 = vrot.slane %v3692, 5
    %v3723 = vrot.slane %v3692, 6
    %v3724 = vrot.slane %v3692, 7
    %v3757 = vadd.f32 %v2278, %v3686
    %v3758 = vadd.f32 %v2287, %v3697
    %v3759 = vadd.f32 %v2296, %v3698
    %v3760 = vadd.f32 %v2305, %v3699
    %v3761 = vadd.f32 %v2314, %v3700
    %v3762 = vadd.f32 %v2323, %v3701
    %v3763 = vadd.f32 %v2332, %v3702
    %v3764 = vadd.f32 %v2341, %v3703
    %v3765 = vadd.f32 %v2350, %v3688
    %v3766 = vadd.f32 %v2359, %v3704
    %v3767 = vadd.f32 %v2368, %v3705
    %v3768 = vadd.f32 %v2377, %v3706
    %v3769 = vadd.f32 %v2386, %v3707
    %v3770 = vadd.f32 %v2395, %v3708
    %v3771 = vadd.f32 %v2404, %v3709
    %v3772 = vadd.f32 %v2413, %v3710
    %v3773 = vadd.f32 %v2422, %v3690
    %v3774 = vadd.f32 %v2431, %v3711
    %v3775 = vadd.f32 %v2440, %v3712
    %v3776 = vadd.f32 %v2449, %v3713
    %v3777 = vadd.f32 %v2458, %v3714
    %v3778 = vadd.f32 %v2467, %v3715
    %v3779 = vadd.f32 %v2476, %v3716
    %v3780 = vadd.f32 %v2485, %v3717
    %v3781 = vadd.f32 %v2494, %v3692
    %v3782 = vadd.f32 %v2503, %v3718
    %v3783 = vadd.f32 %v2512, %v3719
    %v3784 = vadd.f32 %v2521, %v3720
    %v3785 = vadd.f32 %v2530, %v3721
    %v3786 = vadd.f32 %v2539, %v3722
    %v3787 = vadd.f32 %v2548, %v3723
    %v3788 = vadd.f32 %v2557, %v3724
    %v3789 = vld [vmem:[%s8] sm:$0xff]
    %v3790 = vld [vmem:[%s8 + $0x8] sm:$0xff]
    %v3791 = vld [vmem:[%s8 + $0x10] sm:$0xff]
    %v3792 = vld [vmem:[%s8 + $0x18] sm:$0xff]
    %v3793 = vld [vmem:[%s8 + $0x20] sm:$0xff]
    %v3794 = vld [vmem:[%s8 + $0x28] sm:$0xff]
    %v3795 = vld [vmem:[%s8 + $0x30] sm:$0xff]
    %v3796 = vld [vmem:[%s8 + $0x38] sm:$0xff]
    %v3797 = vld [vmem:[%s8 + $0x40] sm:$0xff]
    %v3798 = vld [vmem:[%s8 + $0x48] sm:$0xff]
    %v3799 = vld [vmem:[%s8 + $0x50] sm:$0xff]
    %v3800 = vld [vmem:[%s8 + $0x58] sm:$0xff]
    %v3801 = vld [vmem:[%s8 + $0x60] sm:$0xff]
    %v3802 = vld [vmem:[%s8 + $0x68] sm:$0xff]
    %v3803 = vld [vmem:[%s8 + $0x70] sm:$0xff]
    %v3804 = vld [vmem:[%s8 + $0x78] sm:$0xff]
    %v3806 = vsel %vm105, %v3789, 0
    %v3809 = vsel %vm105, %v3790, 0
    %v3812 = vsel %vm105, %v3791, 0
    %v3815 = vsel %vm105, %v3792, 0
    %v3818 = vsel %vm105, %v3793, 0
    %v3821 = vsel %vm105, %v3794, 0
    %v3824 = vsel %vm105, %v3795, 0
    %v3827 = vsel %vm105, %v3796, 0
    %v3830 = vsel %vm105, %v3797, 0
    %v3833 = vsel %vm105, %v3798, 0
    %v3836 = vsel %vm105, %v3799, 0
    %v3839 = vsel %vm105, %v3800, 0
    %v3842 = vsel %vm105, %v3801, 0
    %v3845 = vsel %vm105, %v3802, 0
    %v3848 = vsel %vm105, %v3803, 0
    %v3851 = vsel %vm105, %v3804, 0
    %3853 = vmatprep.subr.mxu0 0.0
    %3854 = vmatpush1.msra.mxu0 0.0
    %3855 = vmatprep.subr.mxu0 0.0
    %3856 = vmatpush1.msra.mxu0 0.0
    %3857 = vmatprep.subr.mxu0 0.0
    %3858 = vmatpush1.msra.mxu0 0.0
    %3859 = vmatprep.subr.mxu0 0.0
    %3860 = vmatpush1.msra.mxu0 0.0
    %3861 = vmatprep.subr.mxu0 0.0
    %3862 = vmatpush1.msra.mxu0 0.0
    %3863 = vmatprep.subr.mxu0 0.0
    %3864 = vmatpush1.msra.mxu0 0.0
    %3865 = vmatprep.subr.mxu0 0.0
    %3866 = vmatpush1.msra.mxu0 0.0
    %3867 = vmatprep.subr.mxu0 0.0
    %3868 = vmatpush1.msra.mxu0 0.0
    %3869 = vmatprep.subr.mxu0 0.0
    %3870 = vmatpush1.msra.mxu0 0.0
    %3871 = vmatprep.subr.mxu0 0.0
    %3872 = vmatpush1.msra.mxu0 0.0
    %3873 = vmatprep.subr.mxu0 0.0
    %3874 = vmatpush1.msra.mxu0 0.0
    %3875 = vmatprep.subr.mxu0 0.0
    %3876 = vmatpush1.msra.mxu0 0.0
    %3877 = vmatprep.subr.mxu0 0.0
    %3878 = vmatpush1.msra.mxu0 %v200
    %3879 = vmatprep.subr.mxu0 0.0
    %3880 = vmatpush1.msra.mxu0 %v195
    %3881 = vmatprep.subr.mxu0 0.0
    %3882 = vmatpush1.msra.mxu0 %v190
    %3883 = vmatprep.subr.mxu0 0.0
    %3884 = vmatpush1.msra.mxu0 %v185
    %3885 = vmatprep.subr.mxu0 0.0
    %3886 = vmatpush2.msra.mxu0 0.0
    %3887 = vmatprep.subr.mxu0 0.0
    %3888 = vmatpush2.msra.mxu0 0.0
    %3889 = vmatprep.subr.mxu0 0.0
    %3890 = vmatpush2.msra.mxu0 0.0
    %3891 = vmatprep.subr.mxu0 0.0
    %3892 = vmatpush2.msra.mxu0 0.0
    %3893 = vmatprep.subr.mxu0 0.0
    %3894 = vmatpush2.msra.mxu0 0.0
    %3895 = vmatprep.subr.mxu0 0.0
    %3896 = vmatpush2.msra.mxu0 0.0
    %3897 = vmatprep.subr.mxu0 0.0
    %3898 = vmatpush2.msra.mxu0 0.0
    %3899 = vmatprep.subr.mxu0 0.0
    %3900 = vmatpush2.msra.mxu0 0.0
    %3901 = vmatprep.subr.mxu0 0.0
    %3902 = vmatpush2.msra.mxu0 0.0
    %3903 = vmatprep.subr.mxu0 0.0
    %3904 = vmatpush2.msra.mxu0 0.0
    %3905 = vmatprep.subr.mxu0 0.0
    %3906 = vmatpush2.msra.mxu0 0.0
    %3907 = vmatprep.subr.mxu0 0.0
    %3908 = vmatpush2.msra.mxu0 0.0
    %3909 = vmatprep.subr.mxu0 0.0
    %3910 = vmatpush2.msra.mxu0 0.0
    %3911 = vmatprep.subr.mxu0 0.0
    %3912 = vmatpush2.msra.mxu0 0.0
    %3913 = vmatprep.subr.mxu0 0.0
    %3914 = vmatpush2.msra.mxu0 0.0
    %3915 = vmatprep.subr.mxu0 0.0
    %3916 = vmatpush2.msra.mxu0 0.0
    %3917 = vmatprep.mubr.f32.mxu0 0.0
    %3918 = vmatmul.mubr.f32.gmra.mxu0 %v3806
    %v3919 = vpop.f32.mrf.mxu0
    %v3920 = vadd.f32 0.0, %v3919
    %v3921 = vpop.f32.mrf.mxu0
    %3922 = vmatprep.mubr.f32.mxu0 0.0
    %3923 = vmatmul.mubr.f32.gmra.mxu0 %v3809
    %v3924 = vpop.f32.mrf.mxu0
    %v3925 = vadd.f32 0.0, %v3924
    %v3926 = vpop.f32.mrf.mxu0
    %3927 = vmatprep.mubr.f32.mxu0 0.0
    %3928 = vmatmul.mubr.f32.gmra.mxu0 %v3812
    %v3929 = vpop.f32.mrf.mxu0
    %v3930 = vadd.f32 0.0, %v3929
    %v3931 = vpop.f32.mrf.mxu0
    %3932 = vmatprep.mubr.f32.mxu0 0.0
    %3933 = vmatmul.mubr.f32.gmra.mxu0 %v3815
    %v3934 = vpop.f32.mrf.mxu0
    %v3935 = vadd.f32 0.0, %v3934
    %v3936 = vpop.f32.mrf.mxu0
    %3937 = vmatprep.mubr.f32.mxu0 0.0
    %3938 = vmatmul.mubr.f32.gmra.mxu0 %v3818
    %v3939 = vpop.f32.mrf.mxu0
    %v3940 = vadd.f32 0.0, %v3939
    %v3941 = vpop.f32.mrf.mxu0
    %3942 = vmatprep.mubr.f32.mxu0 0.0
    %3943 = vmatmul.mubr.f32.gmra.mxu0 %v3821
    %v3944 = vpop.f32.mrf.mxu0
    %v3945 = vadd.f32 0.0, %v3944
    %v3946 = vpop.f32.mrf.mxu0
    %3947 = vmatprep.mubr.f32.mxu0 0.0
    %3948 = vmatmul.mubr.f32.gmra.mxu0 %v3824
    %v3949 = vpop.f32.mrf.mxu0
    %v3950 = vadd.f32 0.0, %v3949
    %v3951 = vpop.f32.mrf.mxu0
    %3952 = vmatprep.mubr.f32.mxu0 0.0
    %3953 = vmatmul.mubr.f32.gmra.mxu0 %v3827
    %v3954 = vpop.f32.mrf.mxu0
    %v3955 = vadd.f32 0.0, %v3954
    %v3956 = vpop.f32.mrf.mxu0
    %3957 = vmatprep.mubr.f32.mxu0 0.0
    %3958 = vmatmul.mubr.f32.gmra.mxu0 %v3830
    %v3959 = vpop.f32.mrf.mxu0
    %v3960 = vadd.f32 0.0, %v3959
    %v3961 = vpop.f32.mrf.mxu0
    %3962 = vmatprep.mubr.f32.mxu0 0.0
    %3963 = vmatmul.mubr.f32.gmra.mxu0 %v3833
    %v3964 = vpop.f32.mrf.mxu0
    %v3965 = vadd.f32 0.0, %v3964
    %v3966 = vpop.f32.mrf.mxu0
    %3967 = vmatprep.mubr.f32.mxu0 0.0
    %3968 = vmatmul.mubr.f32.gmra.mxu0 %v3836
    %v3969 = vpop.f32.mrf.mxu0
    %v3970 = vadd.f32 0.0, %v3969
    %v3971 = vpop.f32.mrf.mxu0
    %3972 = vmatprep.mubr.f32.mxu0 0.0
    %3973 = vmatmul.mubr.f32.gmra.mxu0 %v3839
    %v3974 = vpop.f32.mrf.mxu0
    %v3975 = vadd.f32 0.0, %v3974
    %v3976 = vpop.f32.mrf.mxu0
    %3977 = vmatprep.mubr.f32.mxu0 0.0
    %3978 = vmatmul.mubr.f32.gmra.mxu0 %v3842
    %v3979 = vpop.f32.mrf.mxu0
    %v3980 = vadd.f32 0.0, %v3979
    %v3981 = vpop.f32.mrf.mxu0
    %3982 = vmatprep.mubr.f32.mxu0 0.0
    %3983 = vmatmul.mubr.f32.gmra.mxu0 %v3845
    %v3984 = vpop.f32.mrf.mxu0
    %v3985 = vadd.f32 0.0, %v3984
    %v3986 = vpop.f32.mrf.mxu0
    %3987 = vmatprep.mubr.f32.mxu0 0.0
    %3988 = vmatmul.mubr.f32.gmra.mxu0 %v3848
    %v3989 = vpop.f32.mrf.mxu0
    %v3990 = vadd.f32 0.0, %v3989
    %v3991 = vpop.f32.mrf.mxu0
    %3992 = vmatprep.mubr.f32.mxu0 0.0
    %3993 = vmatmul.mubr.f32.gmra.mxu0 %v3851
    %v3994 = vpop.f32.mrf.mxu0
    %v3995 = vadd.f32 0.0, %v3994
    %v3996 = vpop.f32.mrf.mxu0
    %3997 = vdwg.mxu0
    %v3998 = vld [vmem:[%s9] sm:$0xff]
    %v3999 = vld [vmem:[%s9 + $0x8] sm:$0xff]
    %v4000 = vld [vmem:[%s9 + $0x10] sm:$0xff]
    %v4001 = vld [vmem:[%s9 + $0x18] sm:$0xff]
    %v4002 = vld [vmem:[%s9 + $0x20] sm:$0xff]
    %v4003 = vld [vmem:[%s9 + $0x28] sm:$0xff]
    %v4004 = vld [vmem:[%s9 + $0x30] sm:$0xff]
    %v4005 = vld [vmem:[%s9 + $0x38] sm:$0xff]
    %v4006 = vld [vmem:[%s9 + $0x40] sm:$0xff]
    %v4007 = vld [vmem:[%s9 + $0x48] sm:$0xff]
    %v4008 = vld [vmem:[%s9 + $0x50] sm:$0xff]
    %v4009 = vld [vmem:[%s9 + $0x58] sm:$0xff]
    %v4010 = vld [vmem:[%s9 + $0x60] sm:$0xff]
    %v4011 = vld [vmem:[%s9 + $0x68] sm:$0xff]
    %v4012 = vld [vmem:[%s9 + $0x70] sm:$0xff]
    %v4013 = vld [vmem:[%s9 + $0x78] sm:$0xff]
    %v4014 = vmul.f32 %v3920, %v3998
    %v4015 = vmul.f32 %v3925, %v3999
    %v4016 = vmul.f32 %v3930, %v4000
    %v4017 = vmul.f32 %v3935, %v4001
    %v4018 = vmul.f32 %v3940, %v4002
    %v4019 = vmul.f32 %v3945, %v4003
    %v4020 = vmul.f32 %v3950, %v4004
    %v4021 = vmul.f32 %v3955, %v4005
    %v4022 = vmul.f32 %v3960, %v4006
    %v4023 = vmul.f32 %v3965, %v4007
    %v4024 = vmul.f32 %v3970, %v4008
    %v4025 = vmul.f32 %v3975, %v4009
    %v4026 = vmul.f32 %v3980, %v4010
    %v4027 = vmul.f32 %v3985, %v4011
    %v4028 = vmul.f32 %v3990, %v4012
    %v4029 = vmul.f32 %v3995, %v4013
    %v4062 = vrot.slane %v3758, 7
    %v4063 = vsel %vm3646, %v4062, %v3757
    %v4064 = vrot.slane %v3759, 6
    %v4065 = vsel %vm3648, %v4064, %v4063
    %v4066 = vrot.slane %v3760, 5
    %v4067 = vsel %vm3650, %v4066, %v4065
    %v4068 = vrot.slane %v3761, 4
    %v4069 = vsel %vm3652, %v4068, %v4067
    %v4070 = vrot.slane %v3762, 3
    %v4071 = vsel %vm3654, %v4070, %v4069
    %v4072 = vrot.slane %v3763, 2
    %v4073 = vsel %vm3656, %v4072, %v4071
    %v4074 = vrot.slane %v3764, 1
    %v4075 = vsel %vm3658, %v4074, %v4073
    %v4076 = vrot.slane %v3766, 7
    %v4077 = vsel %vm3646, %v4076, %v3765
    %v4078 = vrot.slane %v3767, 6
    %v4079 = vsel %vm3648, %v4078, %v4077
    %v4080 = vrot.slane %v3768, 5
    %v4081 = vsel %vm3650, %v4080, %v4079
    %v4082 = vrot.slane %v3769, 4
    %v4083 = vsel %vm3652, %v4082, %v4081
    %v4084 = vrot.slane %v3770, 3
    %v4085 = vsel %vm3654, %v4084, %v4083
    %v4086 = vrot.slane %v3771, 2
    %v4087 = vsel %vm3656, %v4086, %v4085
    %v4088 = vrot.slane %v3772, 1
    %v4089 = vsel %vm3658, %v4088, %v4087
    %v4090 = vrot.slane %v3774, 7
    %v4091 = vsel %vm3646, %v4090, %v3773
    %v4092 = vrot.slane %v3775, 6
    %v4093 = vsel %vm3648, %v4092, %v4091
    %v4094 = vrot.slane %v3776, 5
    %v4095 = vsel %vm3650, %v4094, %v4093
    %v4096 = vrot.slane %v3777, 4
    %v4097 = vsel %vm3652, %v4096, %v4095
    %v4098 = vrot.slane %v3778, 3
    %v4099 = vsel %vm3654, %v4098, %v4097
    %v4100 = vrot.slane %v3779, 2
    %v4101 = vsel %vm3656, %v4100, %v4099
    %v4102 = vrot.slane %v3780, 1
    %v4103 = vsel %vm3658, %v4102, %v4101
    %v4104 = vrot.slane %v3782, 7
    %v4105 = vsel %vm3646, %v4104, %v3781
    %v4106 = vrot.slane %v3783, 6
    %v4107 = vsel %vm3648, %v4106, %v4105
    %v4108 = vrot.slane %v3784, 5
    %v4109 = vsel %vm3650, %v4108, %v4107
    %v4110 = vrot.slane %v3785, 4
    %v4111 = vsel %vm3652, %v4110, %v4109
    %v4112 = vrot.slane %v3786, 3
    %v4113 = vsel %vm3654, %v4112, %v4111
    %v4114 = vrot.slane %v3787, 2
    %v4115 = vsel %vm3656, %v4114, %v4113
    %v4116 = vrot.slane %v3788, 1
    %v4117 = vsel %vm3658, %v4116, %v4115
    %4122 = vmatprep.subr.mxu0 0.0
    %4123 = vmatpush1.msra.mxu0 %v4029
    %4124 = vmatprep.subr.mxu0 0.0
    %4125 = vmatpush1.msra.mxu0 %v4028
    %4126 = vmatprep.subr.mxu0 0.0
    %4127 = vmatpush1.msra.mxu0 %v4027
    %4128 = vmatprep.subr.mxu0 0.0
    %4129 = vmatpush1.msra.mxu0 %v4026
    %4130 = vmatprep.subr.mxu0 0.0
    %4131 = vmatpush1.msra.mxu0 %v4025
    %4132 = vmatprep.subr.mxu0 0.0
    %4133 = vmatpush1.msra.mxu0 %v4024
    %4134 = vmatprep.subr.mxu0 0.0
    %4135 = vmatpush1.msra.mxu0 %v4023
    %4136 = vmatprep.subr.mxu0 0.0
    %4137 = vmatpush1.msra.mxu0 %v4022
    %4138 = vmatprep.subr.mxu0 0.0
    %4139 = vmatpush1.msra.mxu0 %v4021
    %4140 = vmatprep.subr.mxu0 0.0
    %4141 = vmatpush1.msra.mxu0 %v4020
    %4142 = vmatprep.subr.mxu0 0.0
    %4143 = vmatpush1.msra.mxu0 %v4019
    %4144 = vmatprep.subr.mxu0 0.0
    %4145 = vmatpush1.msra.mxu0 %v4018
    %4146 = vmatprep.subr.mxu0 0.0
    %4147 = vmatpush1.msra.mxu0 %v4017
    %4148 = vmatprep.subr.mxu0 0.0
    %4149 = vmatpush1.msra.mxu0 %v4016
    %4150 = vmatprep.subr.mxu0 0.0
    %4151 = vmatpush1.msra.mxu0 %v4015
    %4152 = vmatprep.subr.mxu0 0.0
    %4153 = vmatpush1.msra.mxu0 %v4014
    %4154 = vmatprep.subr.mxu0 0.0
    %4155 = vmatpush2.msra.mxu0 0.0
    %4156 = vmatprep.subr.mxu0 0.0
    %4157 = vmatpush2.msra.mxu0 0.0
    %4158 = vmatprep.subr.mxu0 0.0
    %4159 = vmatpush2.msra.mxu0 0.0
    %4160 = vmatprep.subr.mxu0 0.0
    %4161 = vmatpush2.msra.mxu0 0.0
    %4162 = vmatprep.subr.mxu0 0.0
    %4163 = vmatpush2.msra.mxu0 0.0
    %4164 = vmatprep.subr.mxu0 0.0
    %4165 = vmatpush2.msra.mxu0 0.0
    %4166 = vmatprep.subr.mxu0 0.0
    %4167 = vmatpush2.msra.mxu0 0.0
    %4168 = vmatprep.subr.mxu0 0.0
    %4169 = vmatpush2.msra.mxu0 0.0
    %4170 = vmatprep.subr.mxu0 0.0
    %4171 = vmatpush2.msra.mxu0 0.0
    %4172 = vmatprep.subr.mxu0 0.0
    %4173 = vmatpush2.msra.mxu0 0.0
    %4174 = vmatprep.subr.mxu0 0.0
    %4175 = vmatpush2.msra.mxu0 0.0
    %4176 = vmatprep.subr.mxu0 0.0
    %4177 = vmatpush2.msra.mxu0 0.0
    %4178 = vmatprep.subr.mxu0 0.0
    %4179 = vmatpush2.msra.mxu0 0.0
    %4180 = vmatprep.subr.mxu0 0.0
    %4181 = vmatpush2.msra.mxu0 0.0
    %4182 = vmatprep.subr.mxu0 0.0
    %4183 = vmatpush2.msra.mxu0 0.0
    %4184 = vmatprep.subr.mxu0 0.0
    %4185 = vmatpush2.msra.mxu0 0.0
    %4186 = vmatprep.mubr.f32.mxu0 0.0
    %4187 = vmatmul.mubr.f32.gmra.mxu0 %v4075
    %v4188 = vpop.f32.mrf.mxu0
    %v4189 = vadd.f32 0.0, %v4188
    %v4190 = vpop.f32.mrf.mxu0
    %4191 = vmatprep.mubr.f32.mxu0 0.0
    %4192 = vmatmul.mubr.f32.gmra.mxu0 %v4089
    %v4193 = vpop.f32.mrf.mxu0
    %v4194 = vadd.f32 0.0, %v4193
    %v4195 = vpop.f32.mrf.mxu0
    %4196 = vmatprep.mubr.f32.mxu0 0.0
    %4197 = vmatmul.mubr.f32.gmra.mxu0 %v4103
    %v4198 = vpop.f32.mrf.mxu0
    %v4199 = vadd.f32 0.0, %v4198
    %v4200 = vpop.f32.mrf.mxu0
    %4201 = vmatprep.mubr.f32.mxu0 0.0
    %4202 = vmatmul.mubr.f32.gmra.mxu0 %v4117
    %v4203 = vpop.f32.mrf.mxu0
    %v4204 = vadd.f32 0.0, %v4203
    %v4205 = vpop.f32.mrf.mxu0
    %4206 = vdwg.mxu0
    %v4207 = vld [vmem:[%s14] sm:$0xff]
    %v4208 = vld [vmem:[%s14 + $0x8] sm:$0xff]
    %v4209 = vld [vmem:[%s14 + $0x10] sm:$0xff]
    %v4210 = vld [vmem:[%s14 + $0x18] sm:$0xff]
    %v4211 = vld [vmem:[%s15] sm:$0x1]
    %v4213 = vlaneseq
    %v4214 = vshrl.u32 %v4213, 7
    %v4215 = vsub.s32 0, %v4214
    %v4216 = vrot.slane %v4211, %v4215
    %v4219 = vsel %vm105, %v4189, 0
    %v4222 = vsel %vm105, %v4194, 0
    %v4225 = vsel %vm105, %v4199, 0
    %v4228 = vsel %vm105, %v4204, 0
    %4230 = vmatprep.subr.mxu0 0.0
    %4231 = vmatpush1.msra.mxu0 0.0
    %4232 = vmatprep.subr.mxu0 0.0
    %4233 = vmatpush1.msra.mxu0 0.0
    %4234 = vmatprep.subr.mxu0 0.0
    %4235 = vmatpush1.msra.mxu0 0.0
    %4236 = vmatprep.subr.mxu0 0.0
    %4237 = vmatpush1.msra.mxu0 0.0
    %4238 = vmatprep.subr.mxu0 0.0
    %4239 = vmatpush1.msra.mxu0 0.0
    %4240 = vmatprep.subr.mxu0 0.0
    %4241 = vmatpush1.msra.mxu0 0.0
    %4242 = vmatprep.subr.mxu0 0.0
    %4243 = vmatpush1.msra.mxu0 0.0
    %4244 = vmatprep.subr.mxu0 0.0
    %4245 = vmatpush1.msra.mxu0 0.0
    %4246 = vmatprep.subr.mxu0 0.0
    %4247 = vmatpush1.msra.mxu0 0.0
    %4248 = vmatprep.subr.mxu0 0.0
    %4249 = vmatpush1.msra.mxu0 0.0
    %4250 = vmatprep.subr.mxu0 0.0
    %4251 = vmatpush1.msra.mxu0 0.0
    %4252 = vmatprep.subr.mxu0 0.0
    %4253 = vmatpush1.msra.mxu0 0.0
    %4254 = vmatprep.subr.mxu0 0.0
    %4255 = vmatpush1.msra.mxu0 %v4210
    %4256 = vmatprep.subr.mxu0 0.0
    %4257 = vmatpush1.msra.mxu0 %v4209
    %4258 = vmatprep.subr.mxu0 0.0
    %4259 = vmatpush1.msra.mxu0 %v4208
    %4260 = vmatprep.subr.mxu0 0.0
    %4261 = vmatpush1.msra.mxu0 %v4207
    %4262 = vmatprep.subr.mxu0 0.0
    %4263 = vmatpush2.msra.mxu0 0.0
    %4264 = vmatprep.subr.mxu0 0.0
    %4265 = vmatpush2.msra.mxu0 0.0
    %4266 = vmatprep.subr.mxu0 0.0
    %4267 = vmatpush2.msra.mxu0 0.0
    %4268 = vmatprep.subr.mxu0 0.0
    %4269 = vmatpush2.msra.mxu0 0.0
    %4270 = vmatprep.subr.mxu0 0.0
    %4271 = vmatpush2.msra.mxu0 0.0
    %4272 = vmatprep.subr.mxu0 0.0
    %4273 = vmatpush2.msra.mxu0 0.0
    %4274 = vmatprep.subr.mxu0 0.0
    %4275 = vmatpush2.msra.mxu0 0.0
    %4276 = vmatprep.subr.mxu0 0.0
    %4277 = vmatpush2.msra.mxu0 0.0
    %4278 = vmatprep.subr.mxu0 0.0
    %4279 = vmatpush2.msra.mxu0 0.0
    %4280 = vmatprep.subr.mxu0 0.0
    %4281 = vmatpush2.msra.mxu0 0.0
    %4282 = vmatprep.subr.mxu0 0.0
    %4283 = vmatpush2.msra.mxu0 0.0
    %4284 = vmatprep.subr.mxu0 0.0
    %4285 = vmatpush2.msra.mxu0 0.0
    %4286 = vmatprep.subr.mxu0 0.0
    %4287 = vmatpush2.msra.mxu0 0.0
    %4288 = vmatprep.subr.mxu0 0.0
    %4289 = vmatpush2.msra.mxu0 0.0
    %4290 = vmatprep.subr.mxu0 0.0
    %4291 = vmatpush2.msra.mxu0 0.0
    %4292 = vmatprep.subr.mxu0 0.0
    %4293 = vmatpush2.msra.mxu0 0.0
    %4294 = vmatprep.mubr.f32.mxu0 0.0
    %4295 = vmatmul.mubr.f32.gmra.mxu0 %v4219
    %v4296 = vpop.f32.mrf.mxu0
    %v4297 = vadd.f32 %v4216, %v4296
    %v4298 = vpop.f32.mrf.mxu0
    %4299 = vmatprep.mubr.f32.mxu0 0.0
    %4300 = vmatmul.mubr.f32.gmra.mxu0 %v4222
    %v4301 = vpop.f32.mrf.mxu0
    %v4302 = vadd.f32 %v4216, %v4301
    %v4303 = vpop.f32.mrf.mxu0
    %4304 = vmatprep.mubr.f32.mxu0 0.0
    %4305 = vmatmul.mubr.f32.gmra.mxu0 %v4225
    %v4306 = vpop.f32.mrf.mxu0
    %v4307 = vadd.f32 %v4216, %v4306
    %v4308 = vpop.f32.mrf.mxu0
    %4309 = vmatprep.mubr.f32.mxu0 0.0
    %4310 = vmatmul.mubr.f32.gmra.mxu0 %v4228
    %v4311 = vpop.f32.mrf.mxu0
    %v4312 = vadd.f32 %v4216, %v4311
    %v4313 = vpop.f32.mrf.mxu0
    %4314 = vdwg.mxu0
    %v4315 = vadd.f32 %v78, %v4297
    %v4316 = vadd.f32 %v79, %v4302
    %v4317 = vadd.f32 %v80, %v4307
    %v4318 = vadd.f32 %v81, %v4312
    %v4319 = vsel %vm105, %v4315, 0.0
    %4320 = vadd.xlane.f32.xlu0 %v4319
    %v4321 = vpop.xlane.xlu0 %4320
    %v4322 = vsel %vm105, %v4316, 0.0
    %4323 = vadd.xlane.f32.xlu0 %v4322
    %v4324 = vpop.xlane.xlu0 %4323
    %v4325 = vsel %vm105, %v4317, 0.0
    %4326 = vadd.xlane.f32.xlu0 %v4325
    %v4327 = vpop.xlane.xlu0 %4326
    %v4328 = vsel %vm105, %v4318, 0.0
    %4329 = vadd.xlane.f32.xlu0 %v4328
    %v4330 = vpop.xlane.xlu0 %4329
    %v4331 = vrcp.pop 32.0
    %v4332 = vmul.f32 %v4321, %v4331
    %v4333 = vmul.f32 %v4324, %v4331
    %v4334 = vmul.f32 %v4327, %v4331
    %v4335 = vmul.f32 %v4330, %v4331
    %v4336 = vsub.f32 %v4315, %v4332
    %v4337 = vsub.f32 %v4316, %v4333
    %v4338 = vsub.f32 %v4317, %v4334
    %v4339 = vsub.f32 %v4318, %v4335
    %v4340 = vmul.f32 %v4336, %v4336
    %v4341 = vmul.f32 %v4337, %v4337
    %v4342 = vmul.f32 %v4338, %v4338
    %v4343 = vmul.f32 %v4339, %v4339
    %v4344 = vsel %vm105, %v4340, 0.0
    %4345 = vadd.xlane.f32.xlu0 %v4344
    %v4346 = vpop.xlane.xlu0 %4345
    %v4347 = vsel %vm105, %v4341, 0.0
    %4348 = vadd.xlane.f32.xlu0 %v4347
    %v4349 = vpop.xlane.xlu0 %4348
    %v4350 = vsel %vm105, %v4342, 0.0
    %4351 = vadd.xlane.f32.xlu0 %v4350
    %v4352 = vpop.xlane.xlu0 %4351
    %v4353 = vsel %vm105, %v4343, 0.0
    %4354 = vadd.xlane.f32.xlu0 %v4353
    %v4355 = vpop.xlane.xlu0 %4354
    %v4356 = vmul.f32 %v4346, %v4331
    %v4357 = vmul.f32 %v4349, %v4331
    %v4358 = vmul.f32 %v4352, %v4331
    %v4359 = vmul.f32 %v4355, %v4331
    %v4360 = vadd.f32 %v4356, 1e-05
    %v4361 = vadd.f32 %v4357, 1e-05
    %v4362 = vadd.f32 %v4358, 1e-05
    %v4363 = vadd.f32 %v4359, 1e-05
    %v4364 = vrsqrt.pop %v4360
    %v4365 = vrsqrt.pop %v4361
    %v4366 = vrsqrt.pop %v4362
    %v4367 = vrsqrt.pop %v4363
    %v4368 = vmul.f32 %v4336, %v4364
    %v4369 = vmul.f32 %v4337, %v4365
    %v4370 = vmul.f32 %v4338, %v4366
    %v4371 = vmul.f32 %v4339, %v4367
    %v4372 = vld [vmem:[%s16] sm:$0x1]
    %v4374 = vlaneseq
    %v4375 = vshrl.u32 %v4374, 7
    %v4376 = vsub.s32 0, %v4375
    %v4377 = vrot.slane %v4372, %v4376
    %v4379 = vmul.f32 %v4368, %v4377
    %v4380 = vmul.f32 %v4369, %v4377
    %v4381 = vmul.f32 %v4370, %v4377
    %v4382 = vmul.f32 %v4371, %v4377
    %v4383 = vld [vmem:[%s17] sm:$0x1]
    %v4385 = vlaneseq
    %v4386 = vshrl.u32 %v4385, 7
    %v4387 = vsub.s32 0, %v4386
    %v4388 = vrot.slane %v4383, %v4387
    %v4390 = vadd.f32 %v4379, %v4388
    %v4391 = vadd.f32 %v4380, %v4388
    %v4392 = vadd.f32 %v4381, %v4388
    %v4393 = vadd.f32 %v4382, %v4388
    %v4394 = vld [vmem:[%s18] sm:$0xff]
    %v4395 = vld [vmem:[%s18 + $0x8] sm:$0xff]
    %v4396 = vld [vmem:[%s18 + $0x10] sm:$0xff]
    %v4397 = vld [vmem:[%s18 + $0x18] sm:$0xff]
    %v4398 = vld [vmem:[%s19] sm:$0x1]
    %v4400 = vlaneseq
    %v4401 = vshrl.u32 %v4400, 7
    %v4402 = vsub.s32 0, %v4401
    %v4403 = vrot.slane %v4398, %v4402
    %v4406 = vsel %vm105, %v4390, 0
    %v4409 = vsel %vm105, %v4391, 0
    %v4412 = vsel %vm105, %v4392, 0
    %v4415 = vsel %vm105, %v4393, 0
    %4417 = vmatprep.subr.mxu0 0.0
    %4418 = vmatpush1.msra.mxu0 0.0
    %4419 = vmatprep.subr.mxu0 0.0
    %4420 = vmatpush1.msra.mxu0 0.0
    %4421 = vmatprep.subr.mxu0 0.0
    %4422 = vmatpush1.msra.mxu0 0.0
    %4423 = vmatprep.subr.mxu0 0.0
    %4424 = vmatpush1.msra.mxu0 0.0
    %4425 = vmatprep.subr.mxu0 0.0
    %4426 = vmatpush1.msra.mxu0 0.0
    %4427 = vmatprep.subr.mxu0 0.0
    %4428 = vmatpush1.msra.mxu0 0.0
    %4429 = vmatprep.subr.mxu0 0.0
    %4430 = vmatpush1.msra.mxu0 0.0
    %4431 = vmatprep.subr.mxu0 0.0
    %4432 = vmatpush1.msra.mxu0 0.0
    %4433 = vmatprep.subr.mxu0 0.0
    %4434 = vmatpush1.msra.mxu0 0.0
    %4435 = vmatprep.subr.mxu0 0.0
    %4436 = vmatpush1.msra.mxu0 0.0
    %4437 = vmatprep.subr.mxu0 0.0
    %4438 = vmatpush1.msra.mxu0 0.0
    %4439 = vmatprep.subr.mxu0 0.0
    %4440 = vmatpush1.msra.mxu0 0.0
    %4441 = vmatprep.subr.mxu0 0.0
    %4442 = vmatpush1.msra.mxu0 %v4397
    %4443 = vmatprep.subr.mxu0 0.0
    %4444 = vmatpush1.msra.mxu0 %v4396
    %4445 = vmatprep.subr.mxu0 0.0
    %4446 = vmatpush1.msra.mxu0 %v4395
    %4447 = vmatprep.subr.mxu0 0.0
    %4448 = vmatpush1.msra.mxu0 %v4394
    %4449 = vmatprep.subr.mxu0 0.0
    %4450 = vmatpush2.msra.mxu0 0.0
    %4451 = vmatprep.subr.mxu0 0.0
    %4452 = vmatpush2.msra.mxu0 0.0
    %4453 = vmatprep.subr.mxu0 0.0
    %4454 = vmatpush2.msra.mxu0 0.0
    %4455 = vmatprep.subr.mxu0 0.0
    %4456 = vmatpush2.msra.mxu0 0.0
    %4457 = vmatprep.subr.mxu0 0.0
    %4458 = vmatpush2.msra.mxu0 0.0
    %4459 = vmatprep.subr.mxu0 0.0
    %4460 = vmatpush2.msra.mxu0 0.0
    %4461 = vmatprep.subr.mxu0 0.0
    %4462 = vmatpush2.msra.mxu0 0.0
    %4463 = vmatprep.subr.mxu0 0.0
    %4464 = vmatpush2.msra.mxu0 0.0
    %4465 = vmatprep.subr.mxu0 0.0
    %4466 = vmatpush2.msra.mxu0 0.0
    %4467 = vmatprep.subr.mxu0 0.0
    %4468 = vmatpush2.msra.mxu0 0.0
    %4469 = vmatprep.subr.mxu0 0.0
    %4470 = vmatpush2.msra.mxu0 0.0
    %4471 = vmatprep.subr.mxu0 0.0
    %4472 = vmatpush2.msra.mxu0 0.0
    %4473 = vmatprep.subr.mxu0 0.0
    %4474 = vmatpush2.msra.mxu0 0.0
    %4475 = vmatprep.subr.mxu0 0.0
    %4476 = vmatpush2.msra.mxu0 0.0
    %4477 = vmatprep.subr.mxu0 0.0
    %4478 = vmatpush2.msra.mxu0 0.0
    %4479 = vmatprep.subr.mxu0 0.0
    %4480 = vmatpush2.msra.mxu0 0.0
    %4481 = vmatprep.mubr.f32.mxu0 0.0
    %4482 = vmatmul.mubr.f32.gmra.mxu0 %v4406
    %v4483 = vpop.f32.mrf.mxu0
    %v4484 = vadd.f32 %v4403, %v4483
    %v4485 = vpop.f32.mrf.mxu0
    %4486 = vmatprep.mubr.f32.mxu0 0.0
    %4487 = vmatmul.mubr.f32.gmra.mxu0 %v4409
    %v4488 = vpop.f32.mrf.mxu0
    %v4489 = vadd.f32 %v4403, %v4488
    %v4490 = vpop.f32.mrf.mxu0
    %4491 = vmatprep.mubr.f32.mxu0 0.0
    %4492 = vmatmul.mubr.f32.gmra.mxu0 %v4412
    %v4493 = vpop.f32.mrf.mxu0
    %v4494 = vadd.f32 %v4403, %v4493
    %v4495 = vpop.f32.mrf.mxu0
    %4496 = vmatprep.mubr.f32.mxu0 0.0
    %4497 = vmatmul.mubr.f32.gmra.mxu0 %v4415
    %v4498 = vpop.f32.mrf.mxu0
    %v4499 = vadd.f32 %v4403, %v4498
    %v4500 = vpop.f32.mrf.mxu0
    %4501 = vdwg.mxu0
    %v4502 = vmax.f32 %v4484, 0.0
    %v4503 = vmax.f32 %v4489, 0.0
    %v4504 = vmax.f32 %v4494, 0.0
    %v4505 = vmax.f32 %v4499, 0.0
    %v4506 = vld [vmem:[%s20] sm:$0xff]
    %v4507 = vld [vmem:[%s20 + $0x8] sm:$0xff]
    %v4508 = vld [vmem:[%s20 + $0x10] sm:$0xff]
    %v4509 = vld [vmem:[%s20 + $0x18] sm:$0xff]
    %v4510 = vld [vmem:[%s20 + $0x20] sm:$0xff]
    %v4511 = vld [vmem:[%s20 + $0x28] sm:$0xff]
    %v4512 = vld [vmem:[%s20 + $0x30] sm:$0xff]
    %v4513 = vld [vmem:[%s20 + $0x38] sm:$0xff]
    %v4514 = vld [vmem:[%s21] sm:$0x1]
    %v4516 = vlaneseq
    %v4517 = vshrl.u32 %v4516, 7
    %v4518 = vsub.s32 0, %v4517
    %v4519 = vrot.slane %v4514, %v4518
    %vm4521 = vcmask 523264
    %v4523 = vsel %vm4521, %v4502, 0
    %v4526 = vsel %vm4521, %v4503, 0
    %v4529 = vsel %vm4521, %v4504, 0
    %v4532 = vsel %vm4521, %v4505, 0
    %4534 = vmatprep.subr.mxu0 0.0
    %4535 = vmatpush1.msra.mxu0 0.0
    %4536 = vmatprep.subr.mxu0 0.0
    %4537 = vmatpush1.msra.mxu0 0.0
    %4538 = vmatprep.subr.mxu0 0.0
    %4539 = vmatpush1.msra.mxu0 0.0
    %4540 = vmatprep.subr.mxu0 0.0
    %4541 = vmatpush1.msra.mxu0 0.0
    %4542 = vmatprep.subr.mxu0 0.0
    %4543 = vmatpush1.msra.mxu0 0.0
    %4544 = vmatprep.subr.mxu0 0.0
    %4545 = vmatpush1.msra.mxu0 0.0
    %4546 = vmatprep.subr.mxu0 0.0
    %4547 = vmatpush1.msra.mxu0 0.0
    %4548 = vmatprep.subr.mxu0 0.0
    %4549 = vmatpush1.msra.mxu0 0.0
    %4550 = vmatprep.subr.mxu0 0.0
    %4551 = vmatpush1.msra.mxu0 %v4513
    %4552 = vmatprep.subr.mxu0 0.0
    %4553 = vmatpush1.msra.mxu0 %v4512
    %4554 = vmatprep.subr.mxu0 0.0
    %4555 = vmatpush1.msra.mxu0 %v4511
    %4556 = vmatprep.subr.mxu0 0.0
    %4557 = vmatpush1.msra.mxu0 %v4510
    %4558 = vmatprep.subr.mxu0 0.0
    %4559 = vmatpush1.msra.mxu0 %v4509
    %4560 = vmatprep.subr.mxu0 0.0
    %4561 = vmatpush1.msra.mxu0 %v4508
    %4562 = vmatprep.subr.mxu0 0.0
    %4563 = vmatpush1.msra.mxu0 %v4507
    %4564 = vmatprep.subr.mxu0 0.0
    %4565 = vmatpush1.msra.mxu0 %v4506
    %4566 = vmatprep.subr.mxu0 0.0
    %4567 = vmatpush2.msra.mxu0 0.0
    %4568 = vmatprep.subr.mxu0 0.0
    %4569 = vmatpush2.msra.mxu0 0.0
    %4570 = vmatprep.subr.mxu0 0.0
    %4571 = vmatpush2.msra.mxu0 0.0
    %4572 = vmatprep.subr.mxu0 0.0
    %4573 = vmatpush2.msra.mxu0 0.0
    %4574 = vmatprep.subr.mxu0 0.0
    %4575 = vmatpush2.msra.mxu0 0.0
    %4576 = vmatprep.subr.mxu0 0.0
    %4577 = vmatpush2.msra.mxu0 0.0
    %4578 = vmatprep.subr.mxu0 0.0
    %4579 = vmatpush2.msra.mxu0 0.0
    %4580 = vmatprep.subr.mxu0 0.0
    %4581 = vmatpush2.msra.mxu0 0.0
    %4582 = vmatprep.subr.mxu0 0.0
    %4583 = vmatpush2.msra.mxu0 0.0
    %4584 = vmatprep.subr.mxu0 0.0
    %4585 = vmatpush2.msra.mxu0 0.0
    %4586 = vmatprep.subr.mxu0 0.0
    %4587 = vmatpush2.msra.mxu0 0.0
    %4588 = vmatprep.subr.mxu0 0.0
    %4589 = vmatpush2.msra.mxu0 0.0
    %4590 = vmatprep.subr.mxu0 0.0
    %4591 = vmatpush2.msra.mxu0 0.0
    %4592 = vmatprep.subr.mxu0 0.0
    %4593 = vmatpush2.msra.mxu0 0.0
    %4594 = vmatprep.subr.mxu0 0.0
    %4595 = vmatpush2.msra.mxu0 0.0
    %4596 = vmatprep.subr.mxu0 0.0
    %4597 = vmatpush2.msra.mxu0 0.0
    %4598 = vmatprep.mubr.f32.mxu0 0.0
    %4599 = vmatmul.mubr.f32.gmra.mxu0 %v4523
    %v4600 = vpop.f32.mrf.mxu0
    %v4601 = vadd.f32 %v4519, %v4600
    %v4602 = vpop.f32.mrf.mxu0
    %4603 = vmatprep.mubr.f32.mxu0 0.0
    %4604 = vmatmul.mubr.f32.gmra.mxu0 %v4526
    %v4605 = vpop.f32.mrf.mxu0
    %v4606 = vadd.f32 %v4519, %v4605
    %v4607 = vpop.f32.mrf.mxu0
    %4608 = vmatprep.mubr.f32.mxu0 0.0
    %4609 = vmatmul.mubr.f32.gmra.mxu0 %v4529
    %v4610 = vpop.f32.mrf.mxu0
    %v4611 = vadd.f32 %v4519, %v4610
    %v4612 = vpop.f32.mrf.mxu0
    %4613 = vmatprep.mubr.f32.mxu0 0.0
    %4614 = vmatmul.mubr.f32.gmra.mxu0 %v4532
    %v4615 = vpop.f32.mrf.mxu0
    %v4616 = vadd.f32 %v4519, %v4615
    %v4617 = vpop.f32.mrf.mxu0
    %4618 = vdwg.mxu0
    %v4619 = vadd.f32 %v4390, %v4601
    %v4620 = vadd.f32 %v4391, %v4606
    %v4621 = vadd.f32 %v4392, %v4611
    %v4622 = vadd.f32 %v4393, %v4616
    %v4623 = vsel %vm105, %v4619, 0.0
    %4624 = vadd.xlane.f32.xlu0 %v4623
    %v4625 = vpop.xlane.xlu0 %4624
    %v4626 = vsel %vm105, %v4620, 0.0
    %4627 = vadd.xlane.f32.xlu0 %v4626
    %v4628 = vpop.xlane.xlu0 %4627
    %v4629 = vsel %vm105, %v4621, 0.0
    %4630 = vadd.xlane.f32.xlu0 %v4629
    %v4631 = vpop.xlane.xlu0 %4630
    %v4632 = vsel %vm105, %v4622, 0.0
    %4633 = vadd.xlane.f32.xlu0 %v4632
    %v4634 = vpop.xlane.xlu0 %4633
    %v4635 = vmul.f32 %v4625, %v4331
    %v4636 = vmul.f32 %v4628, %v4331
    %v4637 = vmul.f32 %v4631, %v4331
    %v4638 = vmul.f32 %v4634, %v4331
    %v4639 = vsub.f32 %v4619, %v4635
    %v4640 = vsub.f32 %v4620, %v4636
    %v4641 = vsub.f32 %v4621, %v4637
    %v4642 = vsub.f32 %v4622, %v4638
    %v4643 = vmul.f32 %v4639, %v4639
    %v4644 = vmul.f32 %v4640, %v4640
    %v4645 = vmul.f32 %v4641, %v4641
    %v4646 = vmul.f32 %v4642, %v4642
    %v4647 = vsel %vm105, %v4643, 0.0
    %4648 = vadd.xlane.f32.xlu0 %v4647
    %v4649 = vpop.xlane.xlu0 %4648
    %v4650 = vsel %vm105, %v4644, 0.0
    %4651 = vadd.xlane.f32.xlu0 %v4650
    %v4652 = vpop.xlane.xlu0 %4651
    %v4653 = vsel %vm105, %v4645, 0.0
    %4654 = vadd.xlane.f32.xlu0 %v4653
    %v4655 = vpop.xlane.xlu0 %4654
    %v4656 = vsel %vm105, %v4646, 0.0
    %4657 = vadd.xlane.f32.xlu0 %v4656
    %v4658 = vpop.xlane.xlu0 %4657
    %v4659 = vmul.f32 %v4649, %v4331
    %v4660 = vmul.f32 %v4652, %v4331
    %v4661 = vmul.f32 %v4655, %v4331
    %v4662 = vmul.f32 %v4658, %v4331
    %v4663 = vadd.f32 %v4659, 1e-05
    %v4664 = vadd.f32 %v4660, 1e-05
    %v4665 = vadd.f32 %v4661, 1e-05
    %v4666 = vadd.f32 %v4662, 1e-05
    %v4667 = vrsqrt.pop %v4663
    %v4668 = vrsqrt.pop %v4664
    %v4669 = vrsqrt.pop %v4665
    %v4670 = vrsqrt.pop %v4666
    %v4671 = vmul.f32 %v4639, %v4667
    %v4672 = vmul.f32 %v4640, %v4668
    %v4673 = vmul.f32 %v4641, %v4669
    %v4674 = vmul.f32 %v4642, %v4670
    %v4675 = vld [vmem:[%s22] sm:$0x1]
    %v4677 = vlaneseq
    %v4678 = vshrl.u32 %v4677, 7
    %v4679 = vsub.s32 0, %v4678
    %v4680 = vrot.slane %v4675, %v4679
    %v4682 = vmul.f32 %v4671, %v4680
    %v4683 = vmul.f32 %v4672, %v4680
    %v4684 = vmul.f32 %v4673, %v4680
    %v4685 = vmul.f32 %v4674, %v4680
    %v4686 = vld [vmem:[%s23] sm:$0x1]
    %v4688 = vlaneseq
    %v4689 = vshrl.u32 %v4688, 7
    %v4690 = vsub.s32 0, %v4689
    %v4691 = vrot.slane %v4686, %v4690
    %v4693 = vadd.f32 %v4682, %v4691
    %v4694 = vadd.f32 %v4683, %v4691
    %v4695 = vadd.f32 %v4684, %v4691
    %v4696 = vadd.f32 %v4685, %v4691
    %4697 = vst.msk [vmem:[#allocation2] sm:$0xff] %vm105, %v4693
    %4698 = vst.msk [vmem:[#allocation2 + $0x8] sm:$0xff] %vm105, %v4694
    %4699 = vst.msk [vmem:[#allocation2 + $0x10] sm:$0xff] %vm105, %v4695
    %4700 = vst.msk [vmem:[#allocation2 + $0x18] sm:$0xff] %vm105, %v4696
    // Predicated region
    $region98: #{tpu_custom_call.1} parent=1 // pred_check
      _
    $region99: #{tpu_custom_call.1} parent=1 // pred_check_branch
      %4702 = sbr.rel (0) target = $region101
    $region100: #{tpu_custom_call.1} parent=1 // pred_region
      %s4704 = ssub.s32 512, 512
      %4705 = vsyncadd [#allocation3], %s4704
      %s4706 = sshll.u32 [#allocation2], 4
      %s4707 = int_to_ptr.vmem [resolvable:$true] %s4706
      %4712 = dma.vmem_to_hbm [thread:$0]  %s4707, 512, %s24, [#allocation3], 128, 128, 8
    $region101: #{tpu_custom_call.1} parent=1 // pred_fallthru
      _
    // Predicated region
    $region102: #{tpu_custom_call.1} parent=1 // pred_check
      _
    $region103: #{tpu_custom_call.1} parent=1 // pred_check_branch
      %4714 = sbr.rel (0) target = $region105
    $region104: #{tpu_custom_call.1} parent=1 // pred_region
      %4715 = dma.done [#allocation3], 512
    $region105: #{tpu_custom_call.1} parent=1 // pred_fallthru
      _
    %4716 = vsyncpa [#allocation3], 1

</llo_original>
